<compile_context>
chip_gen: v7x
topology: tpu7x:2x2x1
jax: 0.10.0
libtpu: 0.0.40
codegen_flags: <defaults>
</compile_context>

<pallas_src>
import numpy as np
import jax
import jax.numpy as jnp
from jax import lax
from jax.experimental import pallas as pl
from jax.experimental.pallas import tpu as pltpu

H = W = 7
P = H * W                      # 49 flattened spatial positions (lane axis)
CIN = 128
COUT = 32
KH = KW = 3
NTAP = KH * KW                 # 9 conv taps

C_X481 = 896
C_SMALL = 32
C_TOTAL = C_X481 + 11 * C_SMALL     # 1248 output channels
CONV_OFF = C_X481 + 9 * C_SMALL     # 1184: channel offset of x551 in the concat

# (channel offset, channel count) of every passthrough tensor, in kernel-arg
# order: x481, x488, x495, x502, x509, x516, x523, x530, x537, x544, x558.
_PASS_OFFS = ([(0, C_X481)]
              + [(C_X481 + j * C_SMALL, C_SMALL) for j in range(9)]
              + [(CONV_OFF + C_SMALL, C_SMALL)])
N_PASS = len(_PASS_OFFS)            # 11
N_DMA = N_PASS + 1                  # + 1 for the conv-result writeback


def fused_conv_concat_kernel(x481_ref, x488_ref, x495_ref, x502_ref, x509_ref,
                             x516_ref, x523_ref, x530_ref, x537_ref, x544_ref,
                             x558_ref, x550_ref, w_ref, s_ref, o_ref,
                             y_ref, sem):
    """o_ref: (1248, 49) HBM ref.  Passthrough refs: HBM (C, 49) slabs.
    x550_ref: (128, 49) VMEM, w_ref: (9, 32, 128) VMEM, s_ref: (9, 49, 49) VMEM.
    y_ref: (32, 49) VMEM scratch, sem: (12,) DMA semaphores."""
    pass_refs = (x481_ref, x488_ref, x495_ref, x502_ref, x509_ref, x516_ref,
                 x523_ref, x530_ref, x537_ref, x544_ref, x558_ref)

    # 1) Kick off the whole concat as HBM->HBM DMAs (byte-granular, runs on
    #    the DMA engines at HBM roofline, overlapping the conv below).
    copies = []
    for idx, (src, (off, c)) in enumerate(zip(pass_refs, _PASS_OFFS)):
        cp = pltpu.make_async_copy(src, o_ref.at[pl.ds(off, c), :], sem.at[idx])
        cp.start()
        copies.append(cp)

    # 2) 3x3 'same' conv, fully channel-major, as 9 per-tap MXU matmul pairs.
    #    S_k is a precomputed 0/1 matrix: (x @ S_k)[:, q] = x[:, q + s_k] when
    #    the tap stays inside the 7x7 image, else 0 (shift + padding baked in).
    x = x550_ref[...]                                               # (128, 49)
    xs = jnp.dot(x, s_ref[0], preferred_element_type=jnp.float32)   # (128, 49)
    acc = jnp.dot(w_ref[0], xs, preferred_element_type=jnp.float32) # (32, 49)
    for k in range(1, NTAP):
        xs = jnp.dot(x, s_ref[k], preferred_element_type=jnp.float32)
        acc = acc + jnp.dot(w_ref[k], xs, preferred_element_type=jnp.float32)
    y_ref[...] = acc.astype(y_ref.dtype)

    cp = pltpu.make_async_copy(y_ref, o_ref.at[pl.ds(CONV_OFF, COUT), :],
                               sem.at[N_PASS])
    cp.start()
    copies.append(cp)

    # 3) Drain all DMAs before the kernel finishes.
    for cp in copies:
        cp.wait()


def _vmem_full(shape):
    nd = len(shape)
    return pl.BlockSpec(shape, lambda i, _n=nd: (0,) * _n)


@jax.jit
def forward(w_taps, shift_mats, x550, x481, x488, x495, x502, x509, x516,
            x523, x530, x537, x544, x558):
    # (1, C, 7, 7) -> (C, 49): row-major-preserving reshape == free bitcast.
    flat = lambda t: t.reshape(t.shape[1], P)
    any_spec = pl.BlockSpec(memory_space=pl.ANY)

    out_flat = pl.pallas_call(
        fused_conv_concat_kernel,
        out_shape=jax.ShapeDtypeStruct((C_TOTAL, P), x550.dtype),
        grid_spec=pltpu.PrefetchScalarGridSpec(
            num_scalar_prefetch=0,
            grid=(1,),
            in_specs=[any_spec] * N_PASS + [
                _vmem_full((CIN, P)),            # x550
                _vmem_full((NTAP, COUT, CIN)),   # per-tap conv weights
                _vmem_full((NTAP, P, P)),        # per-tap shift/mask matrices
            ],
            out_specs=pl.BlockSpec(memory_space=pl.ANY),
            scratch_shapes=[
                pltpu.VMEM((COUT, P), jnp.float32),      # conv result staging
                pltpu.SemaphoreType.DMA((N_DMA,)),
            ],
        ),
        compiler_params=pltpu.CompilerParams(
            dimension_semantics=("arbitrary",)),
    )(flat(x481), flat(x488), flat(x495), flat(x502), flat(x509), flat(x516),
      flat(x523), flat(x530), flat(x537), flat(x544), flat(x558),
      flat(x550), w_taps, shift_mats)

    # (1248, 49) -> (1, 1248, 7, 7): free bitcast reshape.
    return out_flat.reshape(1, C_TOTAL, H, W)


def prepare_weight(w_oihw):
    """One-time offline relayout: (COUT, CIN, 3, 3) -> per-tap (9, COUT, CIN)."""
    return jnp.transpose(w_oihw, (2, 3, 0, 1)).reshape(NTAP, COUT, CIN)


def prepare_shift_mats():
    """(9, 49, 49) 0/1 matrices S_k with S_k[p, q] = 1 iff input position p
    feeds output position q for tap k of a 3x3 'same' conv on a 7x7 image."""
    mats = np.zeros((NTAP, P, P), np.float32)
    for kh in range(KH):
        for kw in range(KW):
            k = kh * KW + kw
            dh, dw = kh - 1, kw - 1
            for q in range(P):
                h, w = divmod(q, W)
                hh, ww = h + dh, w + dw
                if 0 <= hh < H and 0 <= ww < W:
                    mats[k, hh * W + ww, q] = 1.0
    return jnp.asarray(mats)


if __name__ == "__main__":
    key = jax.random.PRNGKey(0)
    keys = jax.random.split(key, 13)

    # Conv2d weight (OIHW); per-tap relayout done once outside the jit.
    conv_w = jax.random.normal(keys[0], (COUT, CIN, KH, KW), jnp.float32) * 0.05
    w_taps = prepare_weight(conv_w)
    shift_mats = prepare_shift_mats()

    # Inputs exactly as the module's forward implies.
    x550 = jax.random.normal(keys[1], (1, CIN, H, W), jnp.float32)
    x481 = jax.random.normal(keys[2], (1, C_X481, H, W), jnp.float32)
    smalls = [jax.random.normal(keys[3 + j], (1, C_SMALL, H, W), jnp.float32)
              for j in range(10)]
    x488, x495, x502, x509, x516, x523, x530, x537, x544, x558 = smalls

    out = forward(w_taps, shift_mats, x550, x481, x488, x495, x502, x509,
                  x516, x523, x530, x537, x544, x558)
    out = jax.block_until_ready(out)

    assert out.shape == (1, C_TOTAL, H, W), out.shape

    # Reference: XLA conv + concat.
    ref_conv = lax.conv_general_dilated(
        x550, conv_w, window_strides=(1, 1), padding=((1, 1), (1, 1)),
        dimension_numbers=("NCHW", "OIHW", "NCHW"))
    ref = jnp.concatenate([x481, x488, x495, x502, x509, x516, x523, x530,
                           x537, x544, ref_conv, x558], axis=1)
    max_err = float(jnp.max(jnp.abs(out - ref)))
    assert jnp.allclose(out, ref, atol=1e-4, rtol=1e-4), max_err

    print("KERNEL_OK")
</pallas_src>

<mosaic_0001>
module attributes {stable_mosaic.version = 11 : i64} {
  func.func @fused_conv_concat_kernel(%arg0: i32, %arg1: memref<896x49xf32, #tpu.memory_space<any>>, %arg2: memref<32x49xf32, #tpu.memory_space<any>>, %arg3: memref<32x49xf32, #tpu.memory_space<any>>, %arg4: memref<32x49xf32, #tpu.memory_space<any>>, %arg5: memref<32x49xf32, #tpu.memory_space<any>>, %arg6: memref<32x49xf32, #tpu.memory_space<any>>, %arg7: memref<32x49xf32, #tpu.memory_space<any>>, %arg8: memref<32x49xf32, #tpu.memory_space<any>>, %arg9: memref<32x49xf32, #tpu.memory_space<any>>, %arg10: memref<32x49xf32, #tpu.memory_space<any>>, %arg11: memref<32x49xf32, #tpu.memory_space<any>>, %arg12: memref<128x49xf32, #tpu.memory_space<vmem>>, %arg13: memref<9x32x128xf32, #tpu.memory_space<vmem>>, %arg14: memref<9x49x49xf32, #tpu.memory_space<vmem>>, %arg15: memref<1248x49xf32, #tpu.memory_space<any>>, %arg16: memref<32x49xf32, #tpu.memory_space<vmem>>, %arg17: memref<12x!tpu.dma_semaphore, #tpu.memory_space<semaphore_mem>>) attributes {dimension_semantics = [#tpu.dimension_semantics<arbitrary>], iteration_bounds = array<i64: 1>, scalar_prefetch = 0 : i64, scratch_operands = 2 : i64, tpu.core_type = #tpu.core_type<tc>, window_params = [{}, {}, {}, {}, {}, {}, {}, {}, {}, {}, {}, {pipeline_mode = #tpu.pipeline_mode<synchronous>, transform_indices = @transform_11, window_bounds = array<i64: 128, 49>}, {pipeline_mode = #tpu.pipeline_mode<synchronous>, transform_indices = @transform_12, window_bounds = array<i64: 9, 32, 128>}, {pipeline_mode = #tpu.pipeline_mode<synchronous>, transform_indices = @transform_13, window_bounds = array<i64: 9, 49, 49>}, {}]} {
    %c0_i32 = arith.constant 0 : i32
    %c0_i32_0 = arith.constant 0 : i32
    %c0_i32_1 = arith.constant 0 : i32
    %0 = tpu.memref_slice %arg15[%c0_i32_0, %c0_i32_1] : memref<1248x49xf32, #tpu.memory_space<any>> -> memref<896x49xf32, #tpu.memory_space<any>>
    %1 = tpu.memref_slice %arg17[%c0_i32] : memref<12x!tpu.dma_semaphore, #tpu.memory_space<semaphore_mem>> -> memref<1x!tpu.dma_semaphore, #tpu.memory_space<semaphore_mem>>
    %2 = tpu.memref_squeeze %1 : memref<1x!tpu.dma_semaphore, #tpu.memory_space<semaphore_mem>> -> memref<!tpu.dma_semaphore, #tpu.memory_space<semaphore_mem>>
    tpu.enqueue_dma source(%arg1 : memref<896x49xf32, #tpu.memory_space<any>>) target(%0 : memref<896x49xf32, #tpu.memory_space<any>>) target_semaphore(%2 : memref<!tpu.dma_semaphore, #tpu.memory_space<semaphore_mem>>)
    %c1_i32 = arith.constant 1 : i32
    %c896_i32 = arith.constant 896 : i32
    %c0_i32_2 = arith.constant 0 : i32
    %3 = tpu.memref_slice %arg15[%c896_i32, %c0_i32_2] : memref<1248x49xf32, #tpu.memory_space<any>> -> memref<32x49xf32, #tpu.memory_space<any>>
    %4 = tpu.memref_slice %arg17[%c1_i32] : memref<12x!tpu.dma_semaphore, #tpu.memory_space<semaphore_mem>> -> memref<1x!tpu.dma_semaphore, #tpu.memory_space<semaphore_mem>>
    %5 = tpu.memref_squeeze %4 : memref<1x!tpu.dma_semaphore, #tpu.memory_space<semaphore_mem>> -> memref<!tpu.dma_semaphore, #tpu.memory_space<semaphore_mem>>
    tpu.enqueue_dma source(%arg2 : memref<32x49xf32, #tpu.memory_space<any>>) target(%3 : memref<32x49xf32, #tpu.memory_space<any>>) target_semaphore(%5 : memref<!tpu.dma_semaphore, #tpu.memory_space<semaphore_mem>>)
    %c2_i32 = arith.constant 2 : i32
    %c928_i32 = arith.constant 928 : i32
    %c0_i32_3 = arith.constant 0 : i32
    %6 = tpu.memref_slice %arg15[%c928_i32, %c0_i32_3] : memref<1248x49xf32, #tpu.memory_space<any>> -> memref<32x49xf32, #tpu.memory_space<any>>
    %7 = tpu.memref_slice %arg17[%c2_i32] : memref<12x!tpu.dma_semaphore, #tpu.memory_space<semaphore_mem>> -> memref<1x!tpu.dma_semaphore, #tpu.memory_space<semaphore_mem>>
    %8 = tpu.memref_squeeze %7 : memref<1x!tpu.dma_semaphore, #tpu.memory_space<semaphore_mem>> -> memref<!tpu.dma_semaphore, #tpu.memory_space<semaphore_mem>>
    tpu.enqueue_dma source(%arg3 : memref<32x49xf32, #tpu.memory_space<any>>) target(%6 : memref<32x49xf32, #tpu.memory_space<any>>) target_semaphore(%8 : memref<!tpu.dma_semaphore, #tpu.memory_space<semaphore_mem>>)
    %c3_i32 = arith.constant 3 : i32
    %c960_i32 = arith.constant 960 : i32
    %c0_i32_4 = arith.constant 0 : i32
    %9 = tpu.memref_slice %arg15[%c960_i32, %c0_i32_4] : memref<1248x49xf32, #tpu.memory_space<any>> -> memref<32x49xf32, #tpu.memory_space<any>>
    %10 = tpu.memref_slice %arg17[%c3_i32] : memref<12x!tpu.dma_semaphore, #tpu.memory_space<semaphore_mem>> -> memref<1x!tpu.dma_semaphore, #tpu.memory_space<semaphore_mem>>
    %11 = tpu.memref_squeeze %10 : memref<1x!tpu.dma_semaphore, #tpu.memory_space<semaphore_mem>> -> memref<!tpu.dma_semaphore, #tpu.memory_space<semaphore_mem>>
    tpu.enqueue_dma source(%arg4 : memref<32x49xf32, #tpu.memory_space<any>>) target(%9 : memref<32x49xf32, #tpu.memory_space<any>>) target_semaphore(%11 : memref<!tpu.dma_semaphore, #tpu.memory_space<semaphore_mem>>)
    %c4_i32 = arith.constant 4 : i32
    %c992_i32 = arith.constant 992 : i32
    %c0_i32_5 = arith.constant 0 : i32
    %12 = tpu.memref_slice %arg15[%c992_i32, %c0_i32_5] : memref<1248x49xf32, #tpu.memory_space<any>> -> memref<32x49xf32, #tpu.memory_space<any>>
    %13 = tpu.memref_slice %arg17[%c4_i32] : memref<12x!tpu.dma_semaphore, #tpu.memory_space<semaphore_mem>> -> memref<1x!tpu.dma_semaphore, #tpu.memory_space<semaphore_mem>>
    %14 = tpu.memref_squeeze %13 : memref<1x!tpu.dma_semaphore, #tpu.memory_space<semaphore_mem>> -> memref<!tpu.dma_semaphore, #tpu.memory_space<semaphore_mem>>
    tpu.enqueue_dma source(%arg5 : memref<32x49xf32, #tpu.memory_space<any>>) target(%12 : memref<32x49xf32, #tpu.memory_space<any>>) target_semaphore(%14 : memref<!tpu.dma_semaphore, #tpu.memory_space<semaphore_mem>>)
    %c5_i32 = arith.constant 5 : i32
    %c1024_i32 = arith.constant 1024 : i32
    %c0_i32_6 = arith.constant 0 : i32
    %15 = tpu.memref_slice %arg15[%c1024_i32, %c0_i32_6] : memref<1248x49xf32, #tpu.memory_space<any>> -> memref<32x49xf32, #tpu.memory_space<any>>
    %16 = tpu.memref_slice %arg17[%c5_i32] : memref<12x!tpu.dma_semaphore, #tpu.memory_space<semaphore_mem>> -> memref<1x!tpu.dma_semaphore, #tpu.memory_space<semaphore_mem>>
    %17 = tpu.memref_squeeze %16 : memref<1x!tpu.dma_semaphore, #tpu.memory_space<semaphore_mem>> -> memref<!tpu.dma_semaphore, #tpu.memory_space<semaphore_mem>>
    tpu.enqueue_dma source(%arg6 : memref<32x49xf32, #tpu.memory_space<any>>) target(%15 : memref<32x49xf32, #tpu.memory_space<any>>) target_semaphore(%17 : memref<!tpu.dma_semaphore, #tpu.memory_space<semaphore_mem>>)
    %c6_i32 = arith.constant 6 : i32
    %c1056_i32 = arith.constant 1056 : i32
    %c0_i32_7 = arith.constant 0 : i32
    %18 = tpu.memref_slice %arg15[%c1056_i32, %c0_i32_7] : memref<1248x49xf32, #tpu.memory_space<any>> -> memref<32x49xf32, #tpu.memory_space<any>>
    %19 = tpu.memref_slice %arg17[%c6_i32] : memref<12x!tpu.dma_semaphore, #tpu.memory_space<semaphore_mem>> -> memref<1x!tpu.dma_semaphore, #tpu.memory_space<semaphore_mem>>
    %20 = tpu.memref_squeeze %19 : memref<1x!tpu.dma_semaphore, #tpu.memory_space<semaphore_mem>> -> memref<!tpu.dma_semaphore, #tpu.memory_space<semaphore_mem>>
    tpu.enqueue_dma source(%arg7 : memref<32x49xf32, #tpu.memory_space<any>>) target(%18 : memref<32x49xf32, #tpu.memory_space<any>>) target_semaphore(%20 : memref<!tpu.dma_semaphore, #tpu.memory_space<semaphore_mem>>)
    %c7_i32 = arith.constant 7 : i32
    %c1088_i32 = arith.constant 1088 : i32
    %c0_i32_8 = arith.constant 0 : i32
    %21 = tpu.memref_slice %arg15[%c1088_i32, %c0_i32_8] : memref<1248x49xf32, #tpu.memory_space<any>> -> memref<32x49xf32, #tpu.memory_space<any>>
    %22 = tpu.memref_slice %arg17[%c7_i32] : memref<12x!tpu.dma_semaphore, #tpu.memory_space<semaphore_mem>> -> memref<1x!tpu.dma_semaphore, #tpu.memory_space<semaphore_mem>>
    %23 = tpu.memref_squeeze %22 : memref<1x!tpu.dma_semaphore, #tpu.memory_space<semaphore_mem>> -> memref<!tpu.dma_semaphore, #tpu.memory_space<semaphore_mem>>
    tpu.enqueue_dma source(%arg8 : memref<32x49xf32, #tpu.memory_space<any>>) target(%21 : memref<32x49xf32, #tpu.memory_space<any>>) target_semaphore(%23 : memref<!tpu.dma_semaphore, #tpu.memory_space<semaphore_mem>>)
    %c8_i32 = arith.constant 8 : i32
    %c1120_i32 = arith.constant 1120 : i32
    %c0_i32_9 = arith.constant 0 : i32
    %24 = tpu.memref_slice %arg15[%c1120_i32, %c0_i32_9] : memref<1248x49xf32, #tpu.memory_space<any>> -> memref<32x49xf32, #tpu.memory_space<any>>
    %25 = tpu.memref_slice %arg17[%c8_i32] : memref<12x!tpu.dma_semaphore, #tpu.memory_space<semaphore_mem>> -> memref<1x!tpu.dma_semaphore, #tpu.memory_space<semaphore_mem>>
    %26 = tpu.memref_squeeze %25 : memref<1x!tpu.dma_semaphore, #tpu.memory_space<semaphore_mem>> -> memref<!tpu.dma_semaphore, #tpu.memory_space<semaphore_mem>>
    tpu.enqueue_dma source(%arg9 : memref<32x49xf32, #tpu.memory_space<any>>) target(%24 : memref<32x49xf32, #tpu.memory_space<any>>) target_semaphore(%26 : memref<!tpu.dma_semaphore, #tpu.memory_space<semaphore_mem>>)
    %c9_i32 = arith.constant 9 : i32
    %c1152_i32 = arith.constant 1152 : i32
    %c0_i32_10 = arith.constant 0 : i32
    %27 = tpu.memref_slice %arg15[%c1152_i32, %c0_i32_10] : memref<1248x49xf32, #tpu.memory_space<any>> -> memref<32x49xf32, #tpu.memory_space<any>>
    %28 = tpu.memref_slice %arg17[%c9_i32] : memref<12x!tpu.dma_semaphore, #tpu.memory_space<semaphore_mem>> -> memref<1x!tpu.dma_semaphore, #tpu.memory_space<semaphore_mem>>
    %29 = tpu.memref_squeeze %28 : memref<1x!tpu.dma_semaphore, #tpu.memory_space<semaphore_mem>> -> memref<!tpu.dma_semaphore, #tpu.memory_space<semaphore_mem>>
    tpu.enqueue_dma source(%arg10 : memref<32x49xf32, #tpu.memory_space<any>>) target(%27 : memref<32x49xf32, #tpu.memory_space<any>>) target_semaphore(%29 : memref<!tpu.dma_semaphore, #tpu.memory_space<semaphore_mem>>)
    %c10_i32 = arith.constant 10 : i32
    %c1216_i32 = arith.constant 1216 : i32
    %c0_i32_11 = arith.constant 0 : i32
    %30 = tpu.memref_slice %arg15[%c1216_i32, %c0_i32_11] : memref<1248x49xf32, #tpu.memory_space<any>> -> memref<32x49xf32, #tpu.memory_space<any>>
    %31 = tpu.memref_slice %arg17[%c10_i32] : memref<12x!tpu.dma_semaphore, #tpu.memory_space<semaphore_mem>> -> memref<1x!tpu.dma_semaphore, #tpu.memory_space<semaphore_mem>>
    %32 = tpu.memref_squeeze %31 : memref<1x!tpu.dma_semaphore, #tpu.memory_space<semaphore_mem>> -> memref<!tpu.dma_semaphore, #tpu.memory_space<semaphore_mem>>
    tpu.enqueue_dma source(%arg11 : memref<32x49xf32, #tpu.memory_space<any>>) target(%30 : memref<32x49xf32, #tpu.memory_space<any>>) target_semaphore(%32 : memref<!tpu.dma_semaphore, #tpu.memory_space<semaphore_mem>>)
    %c0 = arith.constant 0 : index
    %c0_12 = arith.constant 0 : index
    %33 = vector.load %arg12[%c0, %c0_12] : memref<128x49xf32, #tpu.memory_space<vmem>>, vector<128x49xf32>
    %c0_13 = arith.constant 0 : index
    %c0_14 = arith.constant 0 : index
    %c0_15 = arith.constant 0 : index
    %34 = vector.load %arg14[%c0_13, %c0_14, %c0_15] : memref<9x49x49xf32, #tpu.memory_space<vmem>>, vector<1x49x49xf32>
    %35 = vector.shape_cast %34 : vector<1x49x49xf32> to vector<49x49xf32>
    %cst = arith.constant dense<0.000000e+00> : vector<128x49xf32>
    %36 = tpu.matmul %33, %35, %cst {dimension_numbers = #tpu.dot_dimension_numbers<[1], [0], [0], [1], [0, 0, 1, 1], [], []>} : vector<128x49xf32>, vector<49x49xf32>, vector<128x49xf32> -> vector<128x49xf32>
    %c0_16 = arith.constant 0 : index
    %c0_17 = arith.constant 0 : index
    %c0_18 = arith.constant 0 : index
    %37 = vector.load %arg13[%c0_16, %c0_17, %c0_18] : memref<9x32x128xf32, #tpu.memory_space<vmem>>, vector<1x32x128xf32>
    %38 = vector.shape_cast %37 : vector<1x32x128xf32> to vector<32x128xf32>
    %cst_19 = arith.constant dense<0.000000e+00> : vector<32x49xf32>
    %39 = tpu.matmul %38, %36, %cst_19 {dimension_numbers = #tpu.dot_dimension_numbers<[1], [0], [0], [1], [0, 0, 1, 1], [], []>} : vector<32x128xf32>, vector<128x49xf32>, vector<32x49xf32> -> vector<32x49xf32>
    %c1 = arith.constant 1 : index
    %c0_20 = arith.constant 0 : index
    %c0_21 = arith.constant 0 : index
    %40 = vector.load %arg14[%c1, %c0_20, %c0_21] : memref<9x49x49xf32, #tpu.memory_space<vmem>>, vector<1x49x49xf32>
    %41 = vector.shape_cast %40 : vector<1x49x49xf32> to vector<49x49xf32>
    %cst_22 = arith.constant dense<0.000000e+00> : vector<128x49xf32>
    %42 = tpu.matmul %33, %41, %cst_22 {dimension_numbers = #tpu.dot_dimension_numbers<[1], [0], [0], [1], [0, 0, 1, 1], [], []>} : vector<128x49xf32>, vector<49x49xf32>, vector<128x49xf32> -> vector<128x49xf32>
    %c1_23 = arith.constant 1 : index
    %c0_24 = arith.constant 0 : index
    %c0_25 = arith.constant 0 : index
    %43 = vector.load %arg13[%c1_23, %c0_24, %c0_25] : memref<9x32x128xf32, #tpu.memory_space<vmem>>, vector<1x32x128xf32>
    %44 = vector.shape_cast %43 : vector<1x32x128xf32> to vector<32x128xf32>
    %cst_26 = arith.constant dense<0.000000e+00> : vector<32x49xf32>
    %45 = tpu.matmul %44, %42, %cst_26 {dimension_numbers = #tpu.dot_dimension_numbers<[1], [0], [0], [1], [0, 0, 1, 1], [], []>} : vector<32x128xf32>, vector<128x49xf32>, vector<32x49xf32> -> vector<32x49xf32>
    %46 = arith.addf %39, %45 : vector<32x49xf32>
    %c2 = arith.constant 2 : index
    %c0_27 = arith.constant 0 : index
    %c0_28 = arith.constant 0 : index
    %47 = vector.load %arg14[%c2, %c0_27, %c0_28] : memref<9x49x49xf32, #tpu.memory_space<vmem>>, vector<1x49x49xf32>
    %48 = vector.shape_cast %47 : vector<1x49x49xf32> to vector<49x49xf32>
    %cst_29 = arith.constant dense<0.000000e+00> : vector<128x49xf32>
    %49 = tpu.matmul %33, %48, %cst_29 {dimension_numbers = #tpu.dot_dimension_numbers<[1], [0], [0], [1], [0, 0, 1, 1], [], []>} : vector<128x49xf32>, vector<49x49xf32>, vector<128x49xf32> -> vector<128x49xf32>
    %c2_30 = arith.constant 2 : index
    %c0_31 = arith.constant 0 : index
    %c0_32 = arith.constant 0 : index
    %50 = vector.load %arg13[%c2_30, %c0_31, %c0_32] : memref<9x32x128xf32, #tpu.memory_space<vmem>>, vector<1x32x128xf32>
    %51 = vector.shape_cast %50 : vector<1x32x128xf32> to vector<32x128xf32>
    %cst_33 = arith.constant dense<0.000000e+00> : vector<32x49xf32>
    %52 = tpu.matmul %51, %49, %cst_33 {dimension_numbers = #tpu.dot_dimension_numbers<[1], [0], [0], [1], [0, 0, 1, 1], [], []>} : vector<32x128xf32>, vector<128x49xf32>, vector<32x49xf32> -> vector<32x49xf32>
    %53 = arith.addf %46, %52 : vector<32x49xf32>
    %c3 = arith.constant 3 : index
    %c0_34 = arith.constant 0 : index
    %c0_35 = arith.constant 0 : index
    %54 = vector.load %arg14[%c3, %c0_34, %c0_35] : memref<9x49x49xf32, #tpu.memory_space<vmem>>, vector<1x49x49xf32>
    %55 = vector.shape_cast %54 : vector<1x49x49xf32> to vector<49x49xf32>
    %cst_36 = arith.constant dense<0.000000e+00> : vector<128x49xf32>
    %56 = tpu.matmul %33, %55, %cst_36 {dimension_numbers = #tpu.dot_dimension_numbers<[1], [0], [0], [1], [0, 0, 1, 1], [], []>} : vector<128x49xf32>, vector<49x49xf32>, vector<128x49xf32> -> vector<128x49xf32>
    %c3_37 = arith.constant 3 : index
    %c0_38 = arith.constant 0 : index
    %c0_39 = arith.constant 0 : index
    %57 = vector.load %arg13[%c3_37, %c0_38, %c0_39] : memref<9x32x128xf32, #tpu.memory_space<vmem>>, vector<1x32x128xf32>
    %58 = vector.shape_cast %57 : vector<1x32x128xf32> to vector<32x128xf32>
    %cst_40 = arith.constant dense<0.000000e+00> : vector<32x49xf32>
    %59 = tpu.matmul %58, %56, %cst_40 {dimension_numbers = #tpu.dot_dimension_numbers<[1], [0], [0], [1], [0, 0, 1, 1], [], []>} : vector<32x128xf32>, vector<128x49xf32>, vector<32x49xf32> -> vector<32x49xf32>
    %60 = arith.addf %53, %59 : vector<32x49xf32>
    %c4 = arith.constant 4 : index
    %c0_41 = arith.constant 0 : index
    %c0_42 = arith.constant 0 : index
    %61 = vector.load %arg14[%c4, %c0_41, %c0_42] : memref<9x49x49xf32, #tpu.memory_space<vmem>>, vector<1x49x49xf32>
    %62 = vector.shape_cast %61 : vector<1x49x49xf32> to vector<49x49xf32>
    %cst_43 = arith.constant dense<0.000000e+00> : vector<128x49xf32>
    %63 = tpu.matmul %33, %62, %cst_43 {dimension_numbers = #tpu.dot_dimension_numbers<[1], [0], [0], [1], [0, 0, 1, 1], [], []>} : vector<128x49xf32>, vector<49x49xf32>, vector<128x49xf32> -> vector<128x49xf32>
    %c4_44 = arith.constant 4 : index
    %c0_45 = arith.constant 0 : index
    %c0_46 = arith.constant 0 : index
    %64 = vector.load %arg13[%c4_44, %c0_45, %c0_46] : memref<9x32x128xf32, #tpu.memory_space<vmem>>, vector<1x32x128xf32>
    %65 = vector.shape_cast %64 : vector<1x32x128xf32> to vector<32x128xf32>
    %cst_47 = arith.constant dense<0.000000e+00> : vector<32x49xf32>
    %66 = tpu.matmul %65, %63, %cst_47 {dimension_numbers = #tpu.dot_dimension_numbers<[1], [0], [0], [1], [0, 0, 1, 1], [], []>} : vector<32x128xf32>, vector<128x49xf32>, vector<32x49xf32> -> vector<32x49xf32>
    %67 = arith.addf %60, %66 : vector<32x49xf32>
    %c5 = arith.constant 5 : index
    %c0_48 = arith.constant 0 : index
    %c0_49 = arith.constant 0 : index
    %68 = vector.load %arg14[%c5, %c0_48, %c0_49] : memref<9x49x49xf32, #tpu.memory_space<vmem>>, vector<1x49x49xf32>
    %69 = vector.shape_cast %68 : vector<1x49x49xf32> to vector<49x49xf32>
    %cst_50 = arith.constant dense<0.000000e+00> : vector<128x49xf32>
    %70 = tpu.matmul %33, %69, %cst_50 {dimension_numbers = #tpu.dot_dimension_numbers<[1], [0], [0], [1], [0, 0, 1, 1], [], []>} : vector<128x49xf32>, vector<49x49xf32>, vector<128x49xf32> -> vector<128x49xf32>
    %c5_51 = arith.constant 5 : index
    %c0_52 = arith.constant 0 : index
    %c0_53 = arith.constant 0 : index
    %71 = vector.load %arg13[%c5_51, %c0_52, %c0_53] : memref<9x32x128xf32, #tpu.memory_space<vmem>>, vector<1x32x128xf32>
    %72 = vector.shape_cast %71 : vector<1x32x128xf32> to vector<32x128xf32>
    %cst_54 = arith.constant dense<0.000000e+00> : vector<32x49xf32>
    %73 = tpu.matmul %72, %70, %cst_54 {dimension_numbers = #tpu.dot_dimension_numbers<[1], [0], [0], [1], [0, 0, 1, 1], [], []>} : vector<32x128xf32>, vector<128x49xf32>, vector<32x49xf32> -> vector<32x49xf32>
    %74 = arith.addf %67, %73 : vector<32x49xf32>
    %c6 = arith.constant 6 : index
    %c0_55 = arith.constant 0 : index
    %c0_56 = arith.constant 0 : index
    %75 = vector.load %arg14[%c6, %c0_55, %c0_56] : memref<9x49x49xf32, #tpu.memory_space<vmem>>, vector<1x49x49xf32>
    %76 = vector.shape_cast %75 : vector<1x49x49xf32> to vector<49x49xf32>
    %cst_57 = arith.constant dense<0.000000e+00> : vector<128x49xf32>
    %77 = tpu.matmul %33, %76, %cst_57 {dimension_numbers = #tpu.dot_dimension_numbers<[1], [0], [0], [1], [0, 0, 1, 1], [], []>} : vector<128x49xf32>, vector<49x49xf32>, vector<128x49xf32> -> vector<128x49xf32>
    %c6_58 = arith.constant 6 : index
    %c0_59 = arith.constant 0 : index
    %c0_60 = arith.constant 0 : index
    %78 = vector.load %arg13[%c6_58, %c0_59, %c0_60] : memref<9x32x128xf32, #tpu.memory_space<vmem>>, vector<1x32x128xf32>
    %79 = vector.shape_cast %78 : vector<1x32x128xf32> to vector<32x128xf32>
    %cst_61 = arith.constant dense<0.000000e+00> : vector<32x49xf32>
    %80 = tpu.matmul %79, %77, %cst_61 {dimension_numbers = #tpu.dot_dimension_numbers<[1], [0], [0], [1], [0, 0, 1, 1], [], []>} : vector<32x128xf32>, vector<128x49xf32>, vector<32x49xf32> -> vector<32x49xf32>
    %81 = arith.addf %74, %80 : vector<32x49xf32>
    %c7 = arith.constant 7 : index
    %c0_62 = arith.constant 0 : index
    %c0_63 = arith.constant 0 : index
    %82 = vector.load %arg14[%c7, %c0_62, %c0_63] : memref<9x49x49xf32, #tpu.memory_space<vmem>>, vector<1x49x49xf32>
    %83 = vector.shape_cast %82 : vector<1x49x49xf32> to vector<49x49xf32>
    %cst_64 = arith.constant dense<0.000000e+00> : vector<128x49xf32>
    %84 = tpu.matmul %33, %83, %cst_64 {dimension_numbers = #tpu.dot_dimension_numbers<[1], [0], [0], [1], [0, 0, 1, 1], [], []>} : vector<128x49xf32>, vector<49x49xf32>, vector<128x49xf32> -> vector<128x49xf32>
    %c7_65 = arith.constant 7 : index
    %c0_66 = arith.constant 0 : index
    %c0_67 = arith.constant 0 : index
    %85 = vector.load %arg13[%c7_65, %c0_66, %c0_67] : memref<9x32x128xf32, #tpu.memory_space<vmem>>, vector<1x32x128xf32>
    %86 = vector.shape_cast %85 : vector<1x32x128xf32> to vector<32x128xf32>
    %cst_68 = arith.constant dense<0.000000e+00> : vector<32x49xf32>
    %87 = tpu.matmul %86, %84, %cst_68 {dimension_numbers = #tpu.dot_dimension_numbers<[1], [0], [0], [1], [0, 0, 1, 1], [], []>} : vector<32x128xf32>, vector<128x49xf32>, vector<32x49xf32> -> vector<32x49xf32>
    %88 = arith.addf %81, %87 : vector<32x49xf32>
    %c8 = arith.constant 8 : index
    %c0_69 = arith.constant 0 : index
    %c0_70 = arith.constant 0 : index
    %89 = vector.load %arg14[%c8, %c0_69, %c0_70] : memref<9x49x49xf32, #tpu.memory_space<vmem>>, vector<1x49x49xf32>
    %90 = vector.shape_cast %89 : vector<1x49x49xf32> to vector<49x49xf32>
    %cst_71 = arith.constant dense<0.000000e+00> : vector<128x49xf32>
    %91 = tpu.matmul %33, %90, %cst_71 {dimension_numbers = #tpu.dot_dimension_numbers<[1], [0], [0], [1], [0, 0, 1, 1], [], []>} : vector<128x49xf32>, vector<49x49xf32>, vector<128x49xf32> -> vector<128x49xf32>
    %c8_72 = arith.constant 8 : index
    %c0_73 = arith.constant 0 : index
    %c0_74 = arith.constant 0 : index
    %92 = vector.load %arg13[%c8_72, %c0_73, %c0_74] : memref<9x32x128xf32, #tpu.memory_space<vmem>>, vector<1x32x128xf32>
    %93 = vector.shape_cast %92 : vector<1x32x128xf32> to vector<32x128xf32>
    %cst_75 = arith.constant dense<0.000000e+00> : vector<32x49xf32>
    %94 = tpu.matmul %93, %91, %cst_75 {dimension_numbers = #tpu.dot_dimension_numbers<[1], [0], [0], [1], [0, 0, 1, 1], [], []>} : vector<32x128xf32>, vector<128x49xf32>, vector<32x49xf32> -> vector<32x49xf32>
    %95 = arith.addf %88, %94 : vector<32x49xf32>
    %c0_76 = arith.constant 0 : index
    %c0_77 = arith.constant 0 : index
    %96 = vector.load %arg16[%c0_76, %c0_77] : memref<32x49xf32, #tpu.memory_space<vmem>>, vector<32x49xf32>
    tpu.vector_store %arg16[%c0_76, %c0_77], %95 {strides = array<i32>} : memref<32x49xf32, #tpu.memory_space<vmem>>, vector<32x49xf32>,
    %c11_i32 = arith.constant 11 : i32
    %c1184_i32 = arith.constant 1184 : i32
    %c0_i32_78 = arith.constant 0 : i32
    %97 = tpu.memref_slice %arg15[%c1184_i32, %c0_i32_78] : memref<1248x49xf32, #tpu.memory_space<any>> -> memref<32x49xf32, #tpu.memory_space<any>>
    %98 = tpu.memref_slice %arg17[%c11_i32] : memref<12x!tpu.dma_semaphore, #tpu.memory_space<semaphore_mem>> -> memref<1x!tpu.dma_semaphore, #tpu.memory_space<semaphore_mem>>
    %99 = tpu.memref_squeeze %98 : memref<1x!tpu.dma_semaphore, #tpu.memory_space<semaphore_mem>> -> memref<!tpu.dma_semaphore, #tpu.memory_space<semaphore_mem>>
    tpu.enqueue_dma source(%arg16 : memref<32x49xf32, #tpu.memory_space<vmem>>) target(%97 : memref<32x49xf32, #tpu.memory_space<any>>) target_semaphore(%99 : memref<!tpu.dma_semaphore, #tpu.memory_space<semaphore_mem>>)
    %c0_i32_79 = arith.constant 0 : i32
    %c0_i32_80 = arith.constant 0 : i32
    %c0_i32_81 = arith.constant 0 : i32
    %100 = tpu.memref_slice %arg15[%c0_i32_80, %c0_i32_81] : memref<1248x49xf32, #tpu.memory_space<any>> -> memref<896x49xf32, #tpu.memory_space<any>>
    %101 = tpu.memref_slice %arg17[%c0_i32_79] : memref<12x!tpu.dma_semaphore, #tpu.memory_space<semaphore_mem>> -> memref<1x!tpu.dma_semaphore, #tpu.memory_space<semaphore_mem>>
    %102 = tpu.memref_squeeze %101 : memref<1x!tpu.dma_semaphore, #tpu.memory_space<semaphore_mem>> -> memref<!tpu.dma_semaphore, #tpu.memory_space<semaphore_mem>>
    tpu.wait_dma2 semaphore(%102 : memref<!tpu.dma_semaphore, #tpu.memory_space<semaphore_mem>>) src(%arg1 : memref<896x49xf32, #tpu.memory_space<any>>) dst(%100 : memref<896x49xf32, #tpu.memory_space<any>>)
    %c1_i32_82 = arith.constant 1 : i32
    %c896_i32_83 = arith.constant 896 : i32
    %c0_i32_84 = arith.constant 0 : i32
    %103 = tpu.memref_slice %arg15[%c896_i32_83, %c0_i32_84] : memref<1248x49xf32, #tpu.memory_space<any>> -> memref<32x49xf32, #tpu.memory_space<any>>
    %104 = tpu.memref_slice %arg17[%c1_i32_82] : memref<12x!tpu.dma_semaphore, #tpu.memory_space<semaphore_mem>> -> memref<1x!tpu.dma_semaphore, #tpu.memory_space<semaphore_mem>>
    %105 = tpu.memref_squeeze %104 : memref<1x!tpu.dma_semaphore, #tpu.memory_space<semaphore_mem>> -> memref<!tpu.dma_semaphore, #tpu.memory_space<semaphore_mem>>
    tpu.wait_dma2 semaphore(%105 : memref<!tpu.dma_semaphore, #tpu.memory_space<semaphore_mem>>) src(%arg2 : memref<32x49xf32, #tpu.memory_space<any>>) dst(%103 : memref<32x49xf32, #tpu.memory_space<any>>)
    %c2_i32_85 = arith.constant 2 : i32
    %c928_i32_86 = arith.constant 928 : i32
    %c0_i32_87 = arith.constant 0 : i32
    %106 = tpu.memref_slice %arg15[%c928_i32_86, %c0_i32_87] : memref<1248x49xf32, #tpu.memory_space<any>> -> memref<32x49xf32, #tpu.memory_space<any>>
    %107 = tpu.memref_slice %arg17[%c2_i32_85] : memref<12x!tpu.dma_semaphore, #tpu.memory_space<semaphore_mem>> -> memref<1x!tpu.dma_semaphore, #tpu.memory_space<semaphore_mem>>
    %108 = tpu.memref_squeeze %107 : memref<1x!tpu.dma_semaphore, #tpu.memory_space<semaphore_mem>> -> memref<!tpu.dma_semaphore, #tpu.memory_space<semaphore_mem>>
    tpu.wait_dma2 semaphore(%108 : memref<!tpu.dma_semaphore, #tpu.memory_space<semaphore_mem>>) src(%arg3 : memref<32x49xf32, #tpu.memory_space<any>>) dst(%106 : memref<32x49xf32, #tpu.memory_space<any>>)
    %c3_i32_88 = arith.constant 3 : i32
    %c960_i32_89 = arith.constant 960 : i32
    %c0_i32_90 = arith.constant 0 : i32
    %109 = tpu.memref_slice %arg15[%c960_i32_89, %c0_i32_90] : memref<1248x49xf32, #tpu.memory_space<any>> -> memref<32x49xf32, #tpu.memory_space<any>>
    %110 = tpu.memref_slice %arg17[%c3_i32_88] : memref<12x!tpu.dma_semaphore, #tpu.memory_space<semaphore_mem>> -> memref<1x!tpu.dma_semaphore, #tpu.memory_space<semaphore_mem>>
    %111 = tpu.memref_squeeze %110 : memref<1x!tpu.dma_semaphore, #tpu.memory_space<semaphore_mem>> -> memref<!tpu.dma_semaphore, #tpu.memory_space<semaphore_mem>>
    tpu.wait_dma2 semaphore(%111 : memref<!tpu.dma_semaphore, #tpu.memory_space<semaphore_mem>>) src(%arg4 : memref<32x49xf32, #tpu.memory_space<any>>) dst(%109 : memref<32x49xf32, #tpu.memory_space<any>>)
    %c4_i32_91 = arith.constant 4 : i32
    %c992_i32_92 = arith.constant 992 : i32
    %c0_i32_93 = arith.constant 0 : i32
    %112 = tpu.memref_slice %arg15[%c992_i32_92, %c0_i32_93] : memref<1248x49xf32, #tpu.memory_space<any>> -> memref<32x49xf32, #tpu.memory_space<any>>
    %113 = tpu.memref_slice %arg17[%c4_i32_91] : memref<12x!tpu.dma_semaphore, #tpu.memory_space<semaphore_mem>> -> memref<1x!tpu.dma_semaphore, #tpu.memory_space<semaphore_mem>>
    %114 = tpu.memref_squeeze %113 : memref<1x!tpu.dma_semaphore, #tpu.memory_space<semaphore_mem>> -> memref<!tpu.dma_semaphore, #tpu.memory_space<semaphore_mem>>
    tpu.wait_dma2 semaphore(%114 : memref<!tpu.dma_semaphore, #tpu.memory_space<semaphore_mem>>) src(%arg5 : memref<32x49xf32, #tpu.memory_space<any>>) dst(%112 : memref<32x49xf32, #tpu.memory_space<any>>)
    %c5_i32_94 = arith.constant 5 : i32
    %c1024_i32_95 = arith.constant 1024 : i32
    %c0_i32_96 = arith.constant 0 : i32
    %115 = tpu.memref_slice %arg15[%c1024_i32_95, %c0_i32_96] : memref<1248x49xf32, #tpu.memory_space<any>> -> memref<32x49xf32, #tpu.memory_space<any>>
    %116 = tpu.memref_slice %arg17[%c5_i32_94] : memref<12x!tpu.dma_semaphore, #tpu.memory_space<semaphore_mem>> -> memref<1x!tpu.dma_semaphore, #tpu.memory_space<semaphore_mem>>
    %117 = tpu.memref_squeeze %116 : memref<1x!tpu.dma_semaphore, #tpu.memory_space<semaphore_mem>> -> memref<!tpu.dma_semaphore, #tpu.memory_space<semaphore_mem>>
    tpu.wait_dma2 semaphore(%117 : memref<!tpu.dma_semaphore, #tpu.memory_space<semaphore_mem>>) src(%arg6 : memref<32x49xf32, #tpu.memory_space<any>>) dst(%115 : memref<32x49xf32, #tpu.memory_space<any>>)
    %c6_i32_97 = arith.constant 6 : i32
    %c1056_i32_98 = arith.constant 1056 : i32
    %c0_i32_99 = arith.constant 0 : i32
    %118 = tpu.memref_slice %arg15[%c1056_i32_98, %c0_i32_99] : memref<1248x49xf32, #tpu.memory_space<any>> -> memref<32x49xf32, #tpu.memory_space<any>>
    %119 = tpu.memref_slice %arg17[%c6_i32_97] : memref<12x!tpu.dma_semaphore, #tpu.memory_space<semaphore_mem>> -> memref<1x!tpu.dma_semaphore, #tpu.memory_space<semaphore_mem>>
    %120 = tpu.memref_squeeze %119 : memref<1x!tpu.dma_semaphore, #tpu.memory_space<semaphore_mem>> -> memref<!tpu.dma_semaphore, #tpu.memory_space<semaphore_mem>>
    tpu.wait_dma2 semaphore(%120 : memref<!tpu.dma_semaphore, #tpu.memory_space<semaphore_mem>>) src(%arg7 : memref<32x49xf32, #tpu.memory_space<any>>) dst(%118 : memref<32x49xf32, #tpu.memory_space<any>>)
    %c7_i32_100 = arith.constant 7 : i32
    %c1088_i32_101 = arith.constant 1088 : i32
    %c0_i32_102 = arith.constant 0 : i32
    %121 = tpu.memref_slice %arg15[%c1088_i32_101, %c0_i32_102] : memref<1248x49xf32, #tpu.memory_space<any>> -> memref<32x49xf32, #tpu.memory_space<any>>
    %122 = tpu.memref_slice %arg17[%c7_i32_100] : memref<12x!tpu.dma_semaphore, #tpu.memory_space<semaphore_mem>> -> memref<1x!tpu.dma_semaphore, #tpu.memory_space<semaphore_mem>>
    %123 = tpu.memref_squeeze %122 : memref<1x!tpu.dma_semaphore, #tpu.memory_space<semaphore_mem>> -> memref<!tpu.dma_semaphore, #tpu.memory_space<semaphore_mem>>
    tpu.wait_dma2 semaphore(%123 : memref<!tpu.dma_semaphore, #tpu.memory_space<semaphore_mem>>) src(%arg8 : memref<32x49xf32, #tpu.memory_space<any>>) dst(%121 : memref<32x49xf32, #tpu.memory_space<any>>)
    %c8_i32_103 = arith.constant 8 : i32
    %c1120_i32_104 = arith.constant 1120 : i32
    %c0_i32_105 = arith.constant 0 : i32
    %124 = tpu.memref_slice %arg15[%c1120_i32_104, %c0_i32_105] : memref<1248x49xf32, #tpu.memory_space<any>> -> memref<32x49xf32, #tpu.memory_space<any>>
    %125 = tpu.memref_slice %arg17[%c8_i32_103] : memref<12x!tpu.dma_semaphore, #tpu.memory_space<semaphore_mem>> -> memref<1x!tpu.dma_semaphore, #tpu.memory_space<semaphore_mem>>
    %126 = tpu.memref_squeeze %125 : memref<1x!tpu.dma_semaphore, #tpu.memory_space<semaphore_mem>> -> memref<!tpu.dma_semaphore, #tpu.memory_space<semaphore_mem>>
    tpu.wait_dma2 semaphore(%126 : memref<!tpu.dma_semaphore, #tpu.memory_space<semaphore_mem>>) src(%arg9 : memref<32x49xf32, #tpu.memory_space<any>>) dst(%124 : memref<32x49xf32, #tpu.memory_space<any>>)
    %c9_i32_106 = arith.constant 9 : i32
    %c1152_i32_107 = arith.constant 1152 : i32
    %c0_i32_108 = arith.constant 0 : i32
    %127 = tpu.memref_slice %arg15[%c1152_i32_107, %c0_i32_108] : memref<1248x49xf32, #tpu.memory_space<any>> -> memref<32x49xf32, #tpu.memory_space<any>>
    %128 = tpu.memref_slice %arg17[%c9_i32_106] : memref<12x!tpu.dma_semaphore, #tpu.memory_space<semaphore_mem>> -> memref<1x!tpu.dma_semaphore, #tpu.memory_space<semaphore_mem>>
    %129 = tpu.memref_squeeze %128 : memref<1x!tpu.dma_semaphore, #tpu.memory_space<semaphore_mem>> -> memref<!tpu.dma_semaphore, #tpu.memory_space<semaphore_mem>>
    tpu.wait_dma2 semaphore(%129 : memref<!tpu.dma_semaphore, #tpu.memory_space<semaphore_mem>>) src(%arg10 : memref<32x49xf32, #tpu.memory_space<any>>) dst(%127 : memref<32x49xf32, #tpu.memory_space<any>>)
    %c10_i32_109 = arith.constant 10 : i32
    %c1216_i32_110 = arith.constant 1216 : i32
    %c0_i32_111 = arith.constant 0 : i32
    %130 = tpu.memref_slice %arg15[%c1216_i32_110, %c0_i32_111] : memref<1248x49xf32, #tpu.memory_space<any>> -> memref<32x49xf32, #tpu.memory_space<any>>
    %131 = tpu.memref_slice %arg17[%c10_i32_109] : memref<12x!tpu.dma_semaphore, #tpu.memory_space<semaphore_mem>> -> memref<1x!tpu.dma_semaphore, #tpu.memory_space<semaphore_mem>>
    %132 = tpu.memref_squeeze %131 : memref<1x!tpu.dma_semaphore, #tpu.memory_space<semaphore_mem>> -> memref<!tpu.dma_semaphore, #tpu.memory_space<semaphore_mem>>
    tpu.wait_dma2 semaphore(%132 : memref<!tpu.dma_semaphore, #tpu.memory_space<semaphore_mem>>) src(%arg11 : memref<32x49xf32, #tpu.memory_space<any>>) dst(%130 : memref<32x49xf32, #tpu.memory_space<any>>)
    %c11_i32_112 = arith.constant 11 : i32
    %c1184_i32_113 = arith.constant 1184 : i32
    %c0_i32_114 = arith.constant 0 : i32
    %133 = tpu.memref_slice %arg15[%c1184_i32_113, %c0_i32_114] : memref<1248x49xf32, #tpu.memory_space<any>> -> memref<32x49xf32, #tpu.memory_space<any>>
    %134 = tpu.memref_slice %arg17[%c11_i32_112] : memref<12x!tpu.dma_semaphore, #tpu.memory_space<semaphore_mem>> -> memref<1x!tpu.dma_semaphore, #tpu.memory_space<semaphore_mem>>
    %135 = tpu.memref_squeeze %134 : memref<1x!tpu.dma_semaphore, #tpu.memory_space<semaphore_mem>> -> memref<!tpu.dma_semaphore, #tpu.memory_space<semaphore_mem>>
    tpu.wait_dma2 semaphore(%135 : memref<!tpu.dma_semaphore, #tpu.memory_space<semaphore_mem>>) src(%arg16 : memref<32x49xf32, #tpu.memory_space<vmem>>) dst(%133 : memref<32x49xf32, #tpu.memory_space<any>>)
    return
  }
  func.func @transform_11(%arg0: i32) -> (i32, i32) {
    %c0_i32 = arith.constant 0 : i32
    %c0_i32_0 = arith.constant 0 : i32
    %c0_i32_1 = arith.constant 0 : i32
    return %c0_i32, %c0_i32_0 : i32, i32
  }
  func.func @transform_12(%arg0: i32) -> (i32, i32, i32) {
    %c0_i32 = arith.constant 0 : i32
    %c0_i32_0 = arith.constant 0 : i32
    %c0_i32_1 = arith.constant 0 : i32
    %c0_i32_2 = arith.constant 0 : i32
    return %c0_i32, %c0_i32_0, %c0_i32_1 : i32, i32, i32
  }
  func.func @transform_13(%arg0: i32) -> (i32, i32, i32) {
    %c0_i32 = arith.constant 0 : i32
    %c0_i32_0 = arith.constant 0 : i32
    %c0_i32_1 = arith.constant 0 : i32
    %c0_i32_2 = arith.constant 0 : i32
    return %c0_i32, %c0_i32_0, %c0_i32_1 : i32, i32, i32
  }
}

</mosaic_0001>

<llo_original>
// kernel: forward.1
$region0: #{forward.1}
  #allocation0 [shape = 'u32[]', space=smem, size = 0x4, offset = 0x4, fixed_abs, tag = 'smem constant byte address 0x4 - core index']
  #allocation1 [shape = 'u32[144,128]{1,0:T(1,128)}', space=vmem, size = 0x12000, scoped, tag = 'internal scratch']
  #allocation2 [shape = 'f32[32,49]{1,0:T(8,128)}', space=vmem, size = 0x4000, scoped, tag = 'scratch operand']
  #allocation3 [shape = 's32[12]{0}', space=sflag, size = 0x30, scoped, tag = 'scratch operand']
  #allocation4 [shape = 's32[]', space=sflag, size = 0x4, offset = 0, fixed_abs, tag = 'sflag constant byte address 0x0 - dummy sync flag']
  #allocation5 [shape = 's32[]', space=sflag, size = 0x4, offset = 0, fixed_abs, tag = 'sflag constant byte address 0x0 - dummy sync flag']
  #allocation6 [shape = 's32[]', space=sflag, size = 0x4, offset = 0, fixed_abs, tag = 'sflag constant byte address 0x0 - dummy sync flag']
  #allocation7 [shape = 's32[]', space=sflag, size = 0x4, offset = 0, fixed_abs, tag = 'sflag constant byte address 0x0 - dummy sync flag']
  #allocation8 [shape = 's32[]', space=sflag, size = 0x4, offset = 0, fixed_abs, tag = 'sflag constant byte address 0x0 - dummy sync flag']
  #allocation9 [shape = 's32[]', space=sflag, size = 0x4, offset = 0, fixed_abs, tag = 'sflag constant byte address 0x0 - dummy sync flag']
  #allocation10 [shape = 's32[]', space=sflag, size = 0x4, offset = 0, fixed_abs, tag = 'sflag constant byte address 0x0 - dummy sync flag']
  #allocation11 [shape = 's32[]', space=sflag, size = 0x4, offset = 0, fixed_abs, tag = 'sflag constant byte address 0x0 - dummy sync flag']
  #allocation12 [shape = 's32[]', space=sflag, size = 0x4, offset = 0, fixed_abs, tag = 'sflag constant byte address 0x0 - dummy sync flag']
  #allocation13 [shape = 's32[]', space=sflag, size = 0x4, offset = 0, fixed_abs, tag = 'sflag constant byte address 0x0 - dummy sync flag']
  #allocation14 [shape = 's32[]', space=sflag, size = 0x4, offset = 0, fixed_abs, tag = 'sflag constant byte address 0x0 - dummy sync flag']
  #allocation15 [shape = 's32[]', space=sflag, size = 0x4, offset = 0, fixed_abs, tag = 'sflag constant byte address 0x0 - dummy sync flag']
  %s0 = inlined_call_operand.vmem [shape: f32[896,49], index: 0, kind: input, shape index: {}]
  %s1 = inlined_call_operand.vmem [shape: f32[32,49], index: 1, kind: input, shape index: {}]
  %s2 = inlined_call_operand.vmem [shape: f32[32,49], index: 2, kind: input, shape index: {}]
  %s3 = inlined_call_operand.vmem [shape: f32[32,49], index: 3, kind: input, shape index: {}]
  %s4 = inlined_call_operand.vmem [shape: f32[32,49], index: 4, kind: input, shape index: {}]
  %s5 = inlined_call_operand.vmem [shape: f32[32,49], index: 5, kind: input, shape index: {}]
  %s6 = inlined_call_operand.vmem [shape: f32[32,49], index: 6, kind: input, shape index: {}]
  %s7 = inlined_call_operand.vmem [shape: f32[32,49], index: 7, kind: input, shape index: {}]
  %s8 = inlined_call_operand.vmem [shape: f32[32,49], index: 8, kind: input, shape index: {}]
  %s9 = inlined_call_operand.vmem [shape: f32[32,49], index: 9, kind: input, shape index: {}]
  %s10 = inlined_call_operand.vmem [shape: f32[32,49], index: 10, kind: input, shape index: {}]
  %s11 = inlined_call_operand.vmem [shape: f32[128,49], index: 11, kind: input, shape index: {}]
  %s12 = inlined_call_operand.vmem [shape: f32[9,32,128], index: 12, kind: input, shape index: {}]
  %s13 = inlined_call_operand.vmem [shape: f32[9,49,49], index: 13, kind: input, shape index: {}]
  %s14 = inlined_call_operand.vmem [shape: f32[1248,49], index: 14, kind: output, shape index: {}]
  %s15 = sld [smem:[#allocation0]]
  $region422: #{forward.1} parent=0
    _
  %s17 = ssub.s32 1, %s15
  %s18 = scalar_select 0, %s17, %s15
  // Predicated region
  $region2: #{forward.1} parent=0 // pred_check
    _
  $region3: #{forward.1} parent=0 // pred_check_branch
    %20 = sbr.rel (0) target = $region5
  $region4: #{forward.1} parent=0 // pred_region
    _
  $region5: #{forward.1} parent=0 // pred_fallthru
    _
  // Predicated region
  $region6: #{forward.1} parent=0 // pred_check
    _
  $region7: #{forward.1} parent=0 // pred_check_branch
    %22 = sbr.rel (0) target = $region9
  $region8: #{forward.1} parent=0 // pred_region
    _
  $region9: #{forward.1} parent=0 // pred_fallthru
    _
  // Predicated region
  $region10: #{forward.1} parent=0 // pred_check
    _
  $region11: #{forward.1} parent=0 // pred_check_branch
    %24 = sbr.rel (0) target = $region13
  $region12: #{forward.1} parent=0 // pred_region
    _
  $region13: #{forward.1} parent=0 // pred_fallthru
    _
  %p26 = scmp.lt.u32.totalorder 896, 8
  %p27 = pneg %p26
  // Predicated region
  $region14: #{forward.1} parent=0 // pred_check
    _
  $region15: #{forward.1} parent=0 // pred_check_branch
    %29 = sbr.rel (%p26) target = $region17
  $region16: #{forward.1} parent=0 // pred_region
    %s44 = sand.u32 896, 7
    %p45 = scmp.eq.s32.totalorder %s44, 0
    // Predicated region
    $region29: #{forward.1} parent=16 // pred_check
      %p46 = pneg %p45
    $region30: #{forward.1} parent=16 // pred_check_branch
      %48 = sbr.rel (%p46) target = $region32
    $region31: #{forward.1} parent=16 // pred_region
      loop: start=0, step=1, limit=1
      $region33: #{forward.1} parent=31 // loop_pre_header
        _
      $region34: #{forward.1} parent=31 // loop_header
        %s50 = sphi 0, %s54
        %p51 = scmp.ge.s32.totalorder %s50, 1
        %s55 = sphi %s0, %s0
        %s56 = sphi %s14, %s14
      $region35: #{forward.1} parent=31 // loop_header_branch
        %53 = sbr.rel (%p51) target = $region39
      $region36: #{forward.1} parent=31 // loop_body
        %v57 = vld [vmem:[%s55] sm:$0xff]
        %58 = vst [vmem:[%s56] sm:$0xff] %v57
        %v59 = vld [vmem:[%s55 + $0x8] sm:$0xff]
        %60 = vst [vmem:[%s56 + $0x8] sm:$0xff] %v59
        %v61 = vld [vmem:[%s55 + $0x10] sm:$0xff]
        %62 = vst [vmem:[%s56 + $0x10] sm:$0xff] %v61
        %v63 = vld [vmem:[%s55 + $0x18] sm:$0xff]
        %64 = vst [vmem:[%s56 + $0x18] sm:$0xff] %v63
        %v65 = vld [vmem:[%s55 + $0x20] sm:$0xff]
        %66 = vst [vmem:[%s56 + $0x20] sm:$0xff] %v65
        %v67 = vld [vmem:[%s55 + $0x28] sm:$0xff]
        %68 = vst [vmem:[%s56 + $0x28] sm:$0xff] %v67
        %v69 = vld [vmem:[%s55 + $0x30] sm:$0xff]
        %70 = vst [vmem:[%s56 + $0x30] sm:$0xff] %v69
        %v71 = vld [vmem:[%s55 + $0x38] sm:$0xff]
        %72 = vst [vmem:[%s56 + $0x38] sm:$0xff] %v71
        %v73 = vld [vmem:[%s55 + $0x40] sm:$0xff]
        %74 = vst [vmem:[%s56 + $0x40] sm:$0xff] %v73
        %v75 = vld [vmem:[%s55 + $0x48] sm:$0xff]
        %76 = vst [vmem:[%s56 + $0x48] sm:$0xff] %v75
        %v77 = vld [vmem:[%s55 + $0x50] sm:$0xff]
        %78 = vst [vmem:[%s56 + $0x50] sm:$0xff] %v77
        %v79 = vld [vmem:[%s55 + $0x58] sm:$0xff]
        %80 = vst [vmem:[%s56 + $0x58] sm:$0xff] %v79
        %v81 = vld [vmem:[%s55 + $0x60] sm:$0xff]
        %82 = vst [vmem:[%s56 + $0x60] sm:$0xff] %v81
        %v83 = vld [vmem:[%s55 + $0x68] sm:$0xff]
        %84 = vst [vmem:[%s56 + $0x68] sm:$0xff] %v83
        %v85 = vld [vmem:[%s55 + $0x70] sm:$0xff]
        %86 = vst [vmem:[%s56 + $0x70] sm:$0xff] %v85
        %v87 = vld [vmem:[%s55 + $0x78] sm:$0xff]
        %88 = vst [vmem:[%s56 + $0x78] sm:$0xff] %v87
        %v89 = vld [vmem:[%s55 + $0x80] sm:$0xff]
        %90 = vst [vmem:[%s56 + $0x80] sm:$0xff] %v89
        %v91 = vld [vmem:[%s55 + $0x88] sm:$0xff]
        %92 = vst [vmem:[%s56 + $0x88] sm:$0xff] %v91
        %v93 = vld [vmem:[%s55 + $0x90] sm:$0xff]
        %94 = vst [vmem:[%s56 + $0x90] sm:$0xff] %v93
        %v95 = vld [vmem:[%s55 + $0x98] sm:$0xff]
        %96 = vst [vmem:[%s56 + $0x98] sm:$0xff] %v95
        %v97 = vld [vmem:[%s55 + $0xa0] sm:$0xff]
        %98 = vst [vmem:[%s56 + $0xa0] sm:$0xff] %v97
        %v99 = vld [vmem:[%s55 + $0xa8] sm:$0xff]
        %100 = vst [vmem:[%s56 + $0xa8] sm:$0xff] %v99
        %v101 = vld [vmem:[%s55 + $0xb0] sm:$0xff]
        %102 = vst [vmem:[%s56 + $0xb0] sm:$0xff] %v101
        %v103 = vld [vmem:[%s55 + $0xb8] sm:$0xff]
        %104 = vst [vmem:[%s56 + $0xb8] sm:$0xff] %v103
        %v105 = vld [vmem:[%s55 + $0xc0] sm:$0xff]
        %106 = vst [vmem:[%s56 + $0xc0] sm:$0xff] %v105
        %v107 = vld [vmem:[%s55 + $0xc8] sm:$0xff]
        %108 = vst [vmem:[%s56 + $0xc8] sm:$0xff] %v107
        %v109 = vld [vmem:[%s55 + $0xd0] sm:$0xff]
        %110 = vst [vmem:[%s56 + $0xd0] sm:$0xff] %v109
        %v111 = vld [vmem:[%s55 + $0xd8] sm:$0xff]
        %112 = vst [vmem:[%s56 + $0xd8] sm:$0xff] %v111
        %v113 = vld [vmem:[%s55 + $0xe0] sm:$0xff]
        %114 = vst [vmem:[%s56 + $0xe0] sm:$0xff] %v113
        %v115 = vld [vmem:[%s55 + $0xe8] sm:$0xff]
        %116 = vst [vmem:[%s56 + $0xe8] sm:$0xff] %v115
        %v117 = vld [vmem:[%s55 + $0xf0] sm:$0xff]
        %118 = vst [vmem:[%s56 + $0xf0] sm:$0xff] %v117
        %v119 = vld [vmem:[%s55 + $0xf8] sm:$0xff]
        %120 = vst [vmem:[%s56 + $0xf8] sm:$0xff] %v119
        %v121 = vld [vmem:[%s55 + $0x100] sm:$0xff]
        %122 = vst [vmem:[%s56 + $0x100] sm:$0xff] %v121
        %v123 = vld [vmem:[%s55 + $0x108] sm:$0xff]
        %124 = vst [vmem:[%s56 + $0x108] sm:$0xff] %v123
        %v125 = vld [vmem:[%s55 + $0x110] sm:$0xff]
        %126 = vst [vmem:[%s56 + $0x110] sm:$0xff] %v125
        %v127 = vld [vmem:[%s55 + $0x118] sm:$0xff]
        %128 = vst [vmem:[%s56 + $0x118] sm:$0xff] %v127
        %v129 = vld [vmem:[%s55 + $0x120] sm:$0xff]
        %130 = vst [vmem:[%s56 + $0x120] sm:$0xff] %v129
        %v131 = vld [vmem:[%s55 + $0x128] sm:$0xff]
        %132 = vst [vmem:[%s56 + $0x128] sm:$0xff] %v131
        %v133 = vld [vmem:[%s55 + $0x130] sm:$0xff]
        %134 = vst [vmem:[%s56 + $0x130] sm:$0xff] %v133
        %v135 = vld [vmem:[%s55 + $0x138] sm:$0xff]
        %136 = vst [vmem:[%s56 + $0x138] sm:$0xff] %v135
        %v137 = vld [vmem:[%s55 + $0x140] sm:$0xff]
        %138 = vst [vmem:[%s56 + $0x140] sm:$0xff] %v137
        %v139 = vld [vmem:[%s55 + $0x148] sm:$0xff]
        %140 = vst [vmem:[%s56 + $0x148] sm:$0xff] %v139
        %v141 = vld [vmem:[%s55 + $0x150] sm:$0xff]
        %142 = vst [vmem:[%s56 + $0x150] sm:$0xff] %v141
        %v143 = vld [vmem:[%s55 + $0x158] sm:$0xff]
        %144 = vst [vmem:[%s56 + $0x158] sm:$0xff] %v143
        %v145 = vld [vmem:[%s55 + $0x160] sm:$0xff]
        %146 = vst [vmem:[%s56 + $0x160] sm:$0xff] %v145
        %v147 = vld [vmem:[%s55 + $0x168] sm:$0xff]
        %148 = vst [vmem:[%s56 + $0x168] sm:$0xff] %v147
        %v149 = vld [vmem:[%s55 + $0x170] sm:$0xff]
        %150 = vst [vmem:[%s56 + $0x170] sm:$0xff] %v149
        %v151 = vld [vmem:[%s55 + $0x178] sm:$0xff]
        %152 = vst [vmem:[%s56 + $0x178] sm:$0xff] %v151
        %v153 = vld [vmem:[%s55 + $0x180] sm:$0xff]
        %154 = vst [vmem:[%s56 + $0x180] sm:$0xff] %v153
        %v155 = vld [vmem:[%s55 + $0x188] sm:$0xff]
        %156 = vst [vmem:[%s56 + $0x188] sm:$0xff] %v155
        %v157 = vld [vmem:[%s55 + $0x190] sm:$0xff]
        %158 = vst [vmem:[%s56 + $0x190] sm:$0xff] %v157
        %v159 = vld [vmem:[%s55 + $0x198] sm:$0xff]
        %160 = vst [vmem:[%s56 + $0x198] sm:$0xff] %v159
        %v161 = vld [vmem:[%s55 + $0x1a0] sm:$0xff]
        %162 = vst [vmem:[%s56 + $0x1a0] sm:$0xff] %v161
        %v163 = vld [vmem:[%s55 + $0x1a8] sm:$0xff]
        %164 = vst [vmem:[%s56 + $0x1a8] sm:$0xff] %v163
        %v165 = vld [vmem:[%s55 + $0x1b0] sm:$0xff]
        %166 = vst [vmem:[%s56 + $0x1b0] sm:$0xff] %v165
        %v167 = vld [vmem:[%s55 + $0x1b8] sm:$0xff]
        %168 = vst [vmem:[%s56 + $0x1b8] sm:$0xff] %v167
        %v169 = vld [vmem:[%s55 + $0x1c0] sm:$0xff]
        %170 = vst [vmem:[%s56 + $0x1c0] sm:$0xff] %v169
        %v171 = vld [vmem:[%s55 + $0x1c8] sm:$0xff]
        %172 = vst [vmem:[%s56 + $0x1c8] sm:$0xff] %v171
        %v173 = vld [vmem:[%s55 + $0x1d0] sm:$0xff]
        %174 = vst [vmem:[%s56 + $0x1d0] sm:$0xff] %v173
        %v175 = vld [vmem:[%s55 + $0x1d8] sm:$0xff]
        %176 = vst [vmem:[%s56 + $0x1d8] sm:$0xff] %v175
        %v177 = vld [vmem:[%s55 + $0x1e0] sm:$0xff]
        %178 = vst [vmem:[%s56 + $0x1e0] sm:$0xff] %v177
        %v179 = vld [vmem:[%s55 + $0x1e8] sm:$0xff]
        %180 = vst [vmem:[%s56 + $0x1e8] sm:$0xff] %v179
        %v181 = vld [vmem:[%s55 + $0x1f0] sm:$0xff]
        %182 = vst [vmem:[%s56 + $0x1f0] sm:$0xff] %v181
        %v183 = vld [vmem:[%s55 + $0x1f8] sm:$0xff]
        %184 = vst [vmem:[%s56 + $0x1f8] sm:$0xff] %v183
        %v185 = vld [vmem:[%s55 + $0x200] sm:$0xff]
        %186 = vst [vmem:[%s56 + $0x200] sm:$0xff] %v185
        %v187 = vld [vmem:[%s55 + $0x208] sm:$0xff]
        %188 = vst [vmem:[%s56 + $0x208] sm:$0xff] %v187
        %v189 = vld [vmem:[%s55 + $0x210] sm:$0xff]
        %190 = vst [vmem:[%s56 + $0x210] sm:$0xff] %v189
        %v191 = vld [vmem:[%s55 + $0x218] sm:$0xff]
        %192 = vst [vmem:[%s56 + $0x218] sm:$0xff] %v191
        %v193 = vld [vmem:[%s55 + $0x220] sm:$0xff]
        %194 = vst [vmem:[%s56 + $0x220] sm:$0xff] %v193
        %v195 = vld [vmem:[%s55 + $0x228] sm:$0xff]
        %196 = vst [vmem:[%s56 + $0x228] sm:$0xff] %v195
        %v197 = vld [vmem:[%s55 + $0x230] sm:$0xff]
        %198 = vst [vmem:[%s56 + $0x230] sm:$0xff] %v197
        %v199 = vld [vmem:[%s55 + $0x238] sm:$0xff]
        %200 = vst [vmem:[%s56 + $0x238] sm:$0xff] %v199
        %v201 = vld [vmem:[%s55 + $0x240] sm:$0xff]
        %202 = vst [vmem:[%s56 + $0x240] sm:$0xff] %v201
        %v203 = vld [vmem:[%s55 + $0x248] sm:$0xff]
        %204 = vst [vmem:[%s56 + $0x248] sm:$0xff] %v203
        %v205 = vld [vmem:[%s55 + $0x250] sm:$0xff]
        %206 = vst [vmem:[%s56 + $0x250] sm:$0xff] %v205
        %v207 = vld [vmem:[%s55 + $0x258] sm:$0xff]
        %208 = vst [vmem:[%s56 + $0x258] sm:$0xff] %v207
        %v209 = vld [vmem:[%s55 + $0x260] sm:$0xff]
        %210 = vst [vmem:[%s56 + $0x260] sm:$0xff] %v209
        %v211 = vld [vmem:[%s55 + $0x268] sm:$0xff]
        %212 = vst [vmem:[%s56 + $0x268] sm:$0xff] %v211
        %v213 = vld [vmem:[%s55 + $0x270] sm:$0xff]
        %214 = vst [vmem:[%s56 + $0x270] sm:$0xff] %v213
        %v215 = vld [vmem:[%s55 + $0x278] sm:$0xff]
        %216 = vst [vmem:[%s56 + $0x278] sm:$0xff] %v215
        %v217 = vld [vmem:[%s55 + $0x280] sm:$0xff]
        %218 = vst [vmem:[%s56 + $0x280] sm:$0xff] %v217
        %v219 = vld [vmem:[%s55 + $0x288] sm:$0xff]
        %220 = vst [vmem:[%s56 + $0x288] sm:$0xff] %v219
        %v221 = vld [vmem:[%s55 + $0x290] sm:$0xff]
        %222 = vst [vmem:[%s56 + $0x290] sm:$0xff] %v221
        %v223 = vld [vmem:[%s55 + $0x298] sm:$0xff]
        %224 = vst [vmem:[%s56 + $0x298] sm:$0xff] %v223
        %v225 = vld [vmem:[%s55 + $0x2a0] sm:$0xff]
        %226 = vst [vmem:[%s56 + $0x2a0] sm:$0xff] %v225
        %v227 = vld [vmem:[%s55 + $0x2a8] sm:$0xff]
        %228 = vst [vmem:[%s56 + $0x2a8] sm:$0xff] %v227
        %v229 = vld [vmem:[%s55 + $0x2b0] sm:$0xff]
        %230 = vst [vmem:[%s56 + $0x2b0] sm:$0xff] %v229
        %v231 = vld [vmem:[%s55 + $0x2b8] sm:$0xff]
        %232 = vst [vmem:[%s56 + $0x2b8] sm:$0xff] %v231
        %v233 = vld [vmem:[%s55 + $0x2c0] sm:$0xff]
        %234 = vst [vmem:[%s56 + $0x2c0] sm:$0xff] %v233
        %v235 = vld [vmem:[%s55 + $0x2c8] sm:$0xff]
        %236 = vst [vmem:[%s56 + $0x2c8] sm:$0xff] %v235
        %v237 = vld [vmem:[%s55 + $0x2d0] sm:$0xff]
        %238 = vst [vmem:[%s56 + $0x2d0] sm:$0xff] %v237
        %v239 = vld [vmem:[%s55 + $0x2d8] sm:$0xff]
        %240 = vst [vmem:[%s56 + $0x2d8] sm:$0xff] %v239
        %v241 = vld [vmem:[%s55 + $0x2e0] sm:$0xff]
        %242 = vst [vmem:[%s56 + $0x2e0] sm:$0xff] %v241
        %v243 = vld [vmem:[%s55 + $0x2e8] sm:$0xff]
        %244 = vst [vmem:[%s56 + $0x2e8] sm:$0xff] %v243
        %v245 = vld [vmem:[%s55 + $0x2f0] sm:$0xff]
        %246 = vst [vmem:[%s56 + $0x2f0] sm:$0xff] %v245
        %v247 = vld [vmem:[%s55 + $0x2f8] sm:$0xff]
        %248 = vst [vmem:[%s56 + $0x2f8] sm:$0xff] %v247
        %v249 = vld [vmem:[%s55 + $0x300] sm:$0xff]
        %250 = vst [vmem:[%s56 + $0x300] sm:$0xff] %v249
        %v251 = vld [vmem:[%s55 + $0x308] sm:$0xff]
        %252 = vst [vmem:[%s56 + $0x308] sm:$0xff] %v251
        %v253 = vld [vmem:[%s55 + $0x310] sm:$0xff]
        %254 = vst [vmem:[%s56 + $0x310] sm:$0xff] %v253
        %v255 = vld [vmem:[%s55 + $0x318] sm:$0xff]
        %256 = vst [vmem:[%s56 + $0x318] sm:$0xff] %v255
        %v257 = vld [vmem:[%s55 + $0x320] sm:$0xff]
        %258 = vst [vmem:[%s56 + $0x320] sm:$0xff] %v257
        %v259 = vld [vmem:[%s55 + $0x328] sm:$0xff]
        %260 = vst [vmem:[%s56 + $0x328] sm:$0xff] %v259
        %v261 = vld [vmem:[%s55 + $0x330] sm:$0xff]
        %262 = vst [vmem:[%s56 + $0x330] sm:$0xff] %v261
        %v263 = vld [vmem:[%s55 + $0x338] sm:$0xff]
        %264 = vst [vmem:[%s56 + $0x338] sm:$0xff] %v263
        %v265 = vld [vmem:[%s55 + $0x340] sm:$0xff]
        %266 = vst [vmem:[%s56 + $0x340] sm:$0xff] %v265
        %v267 = vld [vmem:[%s55 + $0x348] sm:$0xff]
        %268 = vst [vmem:[%s56 + $0x348] sm:$0xff] %v267
        %v269 = vld [vmem:[%s55 + $0x350] sm:$0xff]
        %270 = vst [vmem:[%s56 + $0x350] sm:$0xff] %v269
        %v271 = vld [vmem:[%s55 + $0x358] sm:$0xff]
        %272 = vst [vmem:[%s56 + $0x358] sm:$0xff] %v271
        %v273 = vld [vmem:[%s55 + $0x360] sm:$0xff]
        %274 = vst [vmem:[%s56 + $0x360] sm:$0xff] %v273
        %v275 = vld [vmem:[%s55 + $0x368] sm:$0xff]
        %276 = vst [vmem:[%s56 + $0x368] sm:$0xff] %v275
        %v277 = vld [vmem:[%s55 + $0x370] sm:$0xff]
        %278 = vst [vmem:[%s56 + $0x370] sm:$0xff] %v277
        %v279 = vld [vmem:[%s55 + $0x378] sm:$0xff]
        %280 = vst [vmem:[%s56 + $0x378] sm:$0xff] %v279
      $region37: #{forward.1} parent=31 // loop_footer
        %s54 = sadd.s32 1, %s50
      $region38: #{forward.1} parent=31 // loop_footer_branch
        %49 = sbr.rel target = $region34
      $region39: #{forward.1} parent=31 // loop_exit
        _
    $region32: #{forward.1} parent=16 // pred_fallthru
      _
    %p281 = pneg %p45
    // Predicated region
    $region40: #{forward.1} parent=16 // pred_check
      _
    $region41: #{forward.1} parent=16 // pred_check_branch
      %283 = sbr.rel (%p45) target = $region43
    $region42: #{forward.1} parent=16 // pred_region
      %s284 = sand.u32 896, 7
    $region43: #{forward.1} parent=16 // pred_fallthru
      _
  $region17: #{forward.1} parent=0 // pred_fallthru
    _
  // Predicated region
  $region18: #{forward.1} parent=0 // pred_check
    %p30 = pneg %p26
  $region19: #{forward.1} parent=0 // pred_check_branch
    %32 = sbr.rel (%p30) target = $region21
  $region20: #{forward.1} parent=0 // pred_region
    %s33 = sshllo.u32 0, 896
    loop: start=0, step=1, limit=1
    $region22: #{forward.1} parent=20 // loop_pre_header
      _
    $region23: #{forward.1} parent=20 // loop_header
      %s35 = sphi 0, %s39
      %p36 = scmp.ge.s32.totalorder %s35, 1
      %s40 = sphi %s0, %s0
      %s41 = sphi %s14, %s14
    $region24: #{forward.1} parent=20 // loop_header_branch
      %38 = sbr.rel (%p36) target = $region28
    $region25: #{forward.1} parent=20 // loop_body
      %v42 = vld [vmem:[%s40] sm:%s33]
      %43 = vst [vmem:[%s41] sm:%s33] %v42
    $region26: #{forward.1} parent=20 // loop_footer
      %s39 = sadd.s32 1, %s35
    $region27: #{forward.1} parent=20 // loop_footer_branch
      %34 = sbr.rel target = $region23
    $region28: #{forward.1} parent=20 // loop_exit
      _
  $region21: #{forward.1} parent=0 // pred_fallthru
    _
  // Predicated region
  $region44: #{forward.1} parent=0 // pred_check
    _
  $region45: #{forward.1} parent=0 // pred_check_branch
    %287 = sbr.rel (0) target = $region47
  $region46: #{forward.1} parent=0 // pred_region
    %288 = vsyncadd [#allocation3], 14336
  $region47: #{forward.1} parent=0 // pred_fallthru
    _
  %s289 = scalar_lea.vmem %s14, 896
  %s290 = scalar_lea.sflag [#allocation3], 1
  %p292 = scmp.lt.u32.totalorder 32, 8
  %p293 = pneg %p292
  // Predicated region
  $region48: #{forward.1} parent=0 // pred_check
    _
  $region49: #{forward.1} parent=0 // pred_check_branch
    %295 = sbr.rel (%p292) target = $region51
  $region50: #{forward.1} parent=0 // pred_region
    %s310 = sand.u32 32, 7
    %p311 = scmp.eq.s32.totalorder %s310, 0
    // Predicated region
    $region63: #{forward.1} parent=50 // pred_check
      %p312 = pneg %p311
    $region64: #{forward.1} parent=50 // pred_check_branch
      %314 = sbr.rel (%p312) target = $region66
    $region65: #{forward.1} parent=50 // pred_region
      loop: start=0, step=1, limit=1
      $region67: #{forward.1} parent=65 // loop_pre_header
        _
      $region68: #{forward.1} parent=65 // loop_header
        %s316 = sphi 0, %s320
        %p317 = scmp.ge.s32.totalorder %s316, 1
        %s321 = sphi %s1, %s1
        %s322 = sphi %s289, %s289
      $region69: #{forward.1} parent=65 // loop_header_branch
        %319 = sbr.rel (%p317) target = $region73
      $region70: #{forward.1} parent=65 // loop_body
        %v323 = vld [vmem:[%s321] sm:$0xff]
        %324 = vst [vmem:[%s322] sm:$0xff] %v323
        %v325 = vld [vmem:[%s321 + $0x8] sm:$0xff]
        %326 = vst [vmem:[%s322 + $0x8] sm:$0xff] %v325
        %v327 = vld [vmem:[%s321 + $0x10] sm:$0xff]
        %328 = vst [vmem:[%s322 + $0x10] sm:$0xff] %v327
        %v329 = vld [vmem:[%s321 + $0x18] sm:$0xff]
        %330 = vst [vmem:[%s322 + $0x18] sm:$0xff] %v329
      $region71: #{forward.1} parent=65 // loop_footer
        %s320 = sadd.s32 1, %s316
      $region72: #{forward.1} parent=65 // loop_footer_branch
        %315 = sbr.rel target = $region68
      $region73: #{forward.1} parent=65 // loop_exit
        _
    $region66: #{forward.1} parent=50 // pred_fallthru
      _
    %p331 = pneg %p311
    // Predicated region
    $region74: #{forward.1} parent=50 // pred_check
      _
    $region75: #{forward.1} parent=50 // pred_check_branch
      %333 = sbr.rel (%p311) target = $region77
    $region76: #{forward.1} parent=50 // pred_region
      %s334 = sand.u32 32, 7
    $region77: #{forward.1} parent=50 // pred_fallthru
      _
  $region51: #{forward.1} parent=0 // pred_fallthru
    _
  // Predicated region
  $region52: #{forward.1} parent=0 // pred_check
    %p296 = pneg %p292
  $region53: #{forward.1} parent=0 // pred_check_branch
    %298 = sbr.rel (%p296) target = $region55
  $region54: #{forward.1} parent=0 // pred_region
    %s299 = sshllo.u32 0, 32
    loop: start=0, step=1, limit=1
    $region56: #{forward.1} parent=54 // loop_pre_header
      _
    $region57: #{forward.1} parent=54 // loop_header
      %s301 = sphi 0, %s305
      %p302 = scmp.ge.s32.totalorder %s301, 1
      %s306 = sphi %s1, %s1
      %s307 = sphi %s289, %s289
    $region58: #{forward.1} parent=54 // loop_header_branch
      %304 = sbr.rel (%p302) target = $region62
    $region59: #{forward.1} parent=54 // loop_body
      %v308 = vld [vmem:[%s306] sm:%s299]
      %309 = vst [vmem:[%s307] sm:%s299] %v308
    $region60: #{forward.1} parent=54 // loop_footer
      %s305 = sadd.s32 1, %s301
    $region61: #{forward.1} parent=54 // loop_footer_branch
      %300 = sbr.rel target = $region57
    $region62: #{forward.1} parent=54 // loop_exit
      _
  $region55: #{forward.1} parent=0 // pred_fallthru
    _
  // Predicated region
  $region78: #{forward.1} parent=0 // pred_check
    _
  $region79: #{forward.1} parent=0 // pred_check_branch
    %337 = sbr.rel (0) target = $region81
  $region80: #{forward.1} parent=0 // pred_region
    %338 = vsyncadd %s290, 512
  $region81: #{forward.1} parent=0 // pred_fallthru
    _
  %s339 = scalar_lea.vmem %s14, 928
  %s340 = scalar_lea.sflag [#allocation3], 2
  %p342 = scmp.lt.u32.totalorder 32, 8
  %p343 = pneg %p342
  // Predicated region
  $region82: #{forward.1} parent=0 // pred_check
    _
  $region83: #{forward.1} parent=0 // pred_check_branch
    %345 = sbr.rel (%p342) target = $region85
  $region84: #{forward.1} parent=0 // pred_region
    %s360 = sand.u32 32, 7
    %p361 = scmp.eq.s32.totalorder %s360, 0
    // Predicated region
    $region97: #{forward.1} parent=84 // pred_check
      %p362 = pneg %p361
    $region98: #{forward.1} parent=84 // pred_check_branch
      %364 = sbr.rel (%p362) target = $region100
    $region99: #{forward.1} parent=84 // pred_region
      loop: start=0, step=1, limit=1
      $region101: #{forward.1} parent=99 // loop_pre_header
        _
      $region102: #{forward.1} parent=99 // loop_header
        %s366 = sphi 0, %s370
        %p367 = scmp.ge.s32.totalorder %s366, 1
        %s371 = sphi %s2, %s2
        %s372 = sphi %s339, %s339
      $region103: #{forward.1} parent=99 // loop_header_branch
        %369 = sbr.rel (%p367) target = $region107
      $region104: #{forward.1} parent=99 // loop_body
        %v373 = vld [vmem:[%s371] sm:$0xff]
        %374 = vst [vmem:[%s372] sm:$0xff] %v373
        %v375 = vld [vmem:[%s371 + $0x8] sm:$0xff]
        %376 = vst [vmem:[%s372 + $0x8] sm:$0xff] %v375
        %v377 = vld [vmem:[%s371 + $0x10] sm:$0xff]
        %378 = vst [vmem:[%s372 + $0x10] sm:$0xff] %v377
        %v379 = vld [vmem:[%s371 + $0x18] sm:$0xff]
        %380 = vst [vmem:[%s372 + $0x18] sm:$0xff] %v379
      $region105: #{forward.1} parent=99 // loop_footer
        %s370 = sadd.s32 1, %s366
      $region106: #{forward.1} parent=99 // loop_footer_branch
        %365 = sbr.rel target = $region102
      $region107: #{forward.1} parent=99 // loop_exit
        _
    $region100: #{forward.1} parent=84 // pred_fallthru
      _
    %p381 = pneg %p361
    // Predicated region
    $region108: #{forward.1} parent=84 // pred_check
      _
    $region109: #{forward.1} parent=84 // pred_check_branch
      %383 = sbr.rel (%p361) target = $region111
    $region110: #{forward.1} parent=84 // pred_region
      %s384 = sand.u32 32, 7
    $region111: #{forward.1} parent=84 // pred_fallthru
      _
  $region85: #{forward.1} parent=0 // pred_fallthru
    _
  // Predicated region
  $region86: #{forward.1} parent=0 // pred_check
    %p346 = pneg %p342
  $region87: #{forward.1} parent=0 // pred_check_branch
    %348 = sbr.rel (%p346) target = $region89
  $region88: #{forward.1} parent=0 // pred_region
    %s349 = sshllo.u32 0, 32
    loop: start=0, step=1, limit=1
    $region90: #{forward.1} parent=88 // loop_pre_header
      _
    $region91: #{forward.1} parent=88 // loop_header
      %s351 = sphi 0, %s355
      %p352 = scmp.ge.s32.totalorder %s351, 1
      %s356 = sphi %s2, %s2
      %s357 = sphi %s339, %s339
    $region92: #{forward.1} parent=88 // loop_header_branch
      %354 = sbr.rel (%p352) target = $region96
    $region93: #{forward.1} parent=88 // loop_body
      %v358 = vld [vmem:[%s356] sm:%s349]
      %359 = vst [vmem:[%s357] sm:%s349] %v358
    $region94: #{forward.1} parent=88 // loop_footer
      %s355 = sadd.s32 1, %s351
    $region95: #{forward.1} parent=88 // loop_footer_branch
      %350 = sbr.rel target = $region91
    $region96: #{forward.1} parent=88 // loop_exit
      _
  $region89: #{forward.1} parent=0 // pred_fallthru
    _
  // Predicated region
  $region112: #{forward.1} parent=0 // pred_check
    _
  $region113: #{forward.1} parent=0 // pred_check_branch
    %387 = sbr.rel (0) target = $region115
  $region114: #{forward.1} parent=0 // pred_region
    %388 = vsyncadd %s340, 512
  $region115: #{forward.1} parent=0 // pred_fallthru
    _
  %s389 = scalar_lea.vmem %s14, 960
  %s390 = scalar_lea.sflag [#allocation3], 3
  %p392 = scmp.lt.u32.totalorder 32, 8
  %p393 = pneg %p392
  // Predicated region
  $region116: #{forward.1} parent=0 // pred_check
    _
  $region117: #{forward.1} parent=0 // pred_check_branch
    %395 = sbr.rel (%p392) target = $region119
  $region118: #{forward.1} parent=0 // pred_region
    %s410 = sand.u32 32, 7
    %p411 = scmp.eq.s32.totalorder %s410, 0
    // Predicated region
    $region131: #{forward.1} parent=118 // pred_check
      %p412 = pneg %p411
    $region132: #{forward.1} parent=118 // pred_check_branch
      %414 = sbr.rel (%p412) target = $region134
    $region133: #{forward.1} parent=118 // pred_region
      loop: start=0, step=1, limit=1
      $region135: #{forward.1} parent=133 // loop_pre_header
        _
      $region136: #{forward.1} parent=133 // loop_header
        %s416 = sphi 0, %s420
        %p417 = scmp.ge.s32.totalorder %s416, 1
        %s421 = sphi %s3, %s3
        %s422 = sphi %s389, %s389
      $region137: #{forward.1} parent=133 // loop_header_branch
        %419 = sbr.rel (%p417) target = $region141
      $region138: #{forward.1} parent=133 // loop_body
        %v423 = vld [vmem:[%s421] sm:$0xff]
        %424 = vst [vmem:[%s422] sm:$0xff] %v423
        %v425 = vld [vmem:[%s421 + $0x8] sm:$0xff]
        %426 = vst [vmem:[%s422 + $0x8] sm:$0xff] %v425
        %v427 = vld [vmem:[%s421 + $0x10] sm:$0xff]
        %428 = vst [vmem:[%s422 + $0x10] sm:$0xff] %v427
        %v429 = vld [vmem:[%s421 + $0x18] sm:$0xff]
        %430 = vst [vmem:[%s422 + $0x18] sm:$0xff] %v429
      $region139: #{forward.1} parent=133 // loop_footer
        %s420 = sadd.s32 1, %s416
      $region140: #{forward.1} parent=133 // loop_footer_branch
        %415 = sbr.rel target = $region136
      $region141: #{forward.1} parent=133 // loop_exit
        _
    $region134: #{forward.1} parent=118 // pred_fallthru
      _
    %p431 = pneg %p411
    // Predicated region
    $region142: #{forward.1} parent=118 // pred_check
      _
    $region143: #{forward.1} parent=118 // pred_check_branch
      %433 = sbr.rel (%p411) target = $region145
    $region144: #{forward.1} parent=118 // pred_region
      %s434 = sand.u32 32, 7
    $region145: #{forward.1} parent=118 // pred_fallthru
      _
  $region119: #{forward.1} parent=0 // pred_fallthru
    _
  // Predicated region
  $region120: #{forward.1} parent=0 // pred_check
    %p396 = pneg %p392
  $region121: #{forward.1} parent=0 // pred_check_branch
    %398 = sbr.rel (%p396) target = $region123
  $region122: #{forward.1} parent=0 // pred_region
    %s399 = sshllo.u32 0, 32
    loop: start=0, step=1, limit=1
    $region124: #{forward.1} parent=122 // loop_pre_header
      _
    $region125: #{forward.1} parent=122 // loop_header
      %s401 = sphi 0, %s405
      %p402 = scmp.ge.s32.totalorder %s401, 1
      %s406 = sphi %s3, %s3
      %s407 = sphi %s389, %s389
    $region126: #{forward.1} parent=122 // loop_header_branch
      %404 = sbr.rel (%p402) target = $region130
    $region127: #{forward.1} parent=122 // loop_body
      %v408 = vld [vmem:[%s406] sm:%s399]
      %409 = vst [vmem:[%s407] sm:%s399] %v408
    $region128: #{forward.1} parent=122 // loop_footer
      %s405 = sadd.s32 1, %s401
    $region129: #{forward.1} parent=122 // loop_footer_branch
      %400 = sbr.rel target = $region125
    $region130: #{forward.1} parent=122 // loop_exit
      _
  $region123: #{forward.1} parent=0 // pred_fallthru
    _
  // Predicated region
  $region146: #{forward.1} parent=0 // pred_check
    _
  $region147: #{forward.1} parent=0 // pred_check_branch
    %437 = sbr.rel (0) target = $region149
  $region148: #{forward.1} parent=0 // pred_region
    %438 = vsyncadd %s390, 512
  $region149: #{forward.1} parent=0 // pred_fallthru
    _
  %s439 = scalar_lea.vmem %s14, 992
  %s440 = scalar_lea.sflag [#allocation3], 4
  %p442 = scmp.lt.u32.totalorder 32, 8
  %p443 = pneg %p442
  // Predicated region
  $region150: #{forward.1} parent=0 // pred_check
    _
  $region151: #{forward.1} parent=0 // pred_check_branch
    %445 = sbr.rel (%p442) target = $region153
  $region152: #{forward.1} parent=0 // pred_region
    %s460 = sand.u32 32, 7
    %p461 = scmp.eq.s32.totalorder %s460, 0
    // Predicated region
    $region165: #{forward.1} parent=152 // pred_check
      %p462 = pneg %p461
    $region166: #{forward.1} parent=152 // pred_check_branch
      %464 = sbr.rel (%p462) target = $region168
    $region167: #{forward.1} parent=152 // pred_region
      loop: start=0, step=1, limit=1
      $region169: #{forward.1} parent=167 // loop_pre_header
        _
      $region170: #{forward.1} parent=167 // loop_header
        %s466 = sphi 0, %s470
        %p467 = scmp.ge.s32.totalorder %s466, 1
        %s471 = sphi %s4, %s4
        %s472 = sphi %s439, %s439
      $region171: #{forward.1} parent=167 // loop_header_branch
        %469 = sbr.rel (%p467) target = $region175
      $region172: #{forward.1} parent=167 // loop_body
        %v473 = vld [vmem:[%s471] sm:$0xff]
        %474 = vst [vmem:[%s472] sm:$0xff] %v473
        %v475 = vld [vmem:[%s471 + $0x8] sm:$0xff]
        %476 = vst [vmem:[%s472 + $0x8] sm:$0xff] %v475
        %v477 = vld [vmem:[%s471 + $0x10] sm:$0xff]
        %478 = vst [vmem:[%s472 + $0x10] sm:$0xff] %v477
        %v479 = vld [vmem:[%s471 + $0x18] sm:$0xff]
        %480 = vst [vmem:[%s472 + $0x18] sm:$0xff] %v479
      $region173: #{forward.1} parent=167 // loop_footer
        %s470 = sadd.s32 1, %s466
      $region174: #{forward.1} parent=167 // loop_footer_branch
        %465 = sbr.rel target = $region170
      $region175: #{forward.1} parent=167 // loop_exit
        _
    $region168: #{forward.1} parent=152 // pred_fallthru
      _
    %p481 = pneg %p461
    // Predicated region
    $region176: #{forward.1} parent=152 // pred_check
      _
    $region177: #{forward.1} parent=152 // pred_check_branch
      %483 = sbr.rel (%p461) target = $region179
    $region178: #{forward.1} parent=152 // pred_region
      %s484 = sand.u32 32, 7
    $region179: #{forward.1} parent=152 // pred_fallthru
      _
  $region153: #{forward.1} parent=0 // pred_fallthru
    _
  // Predicated region
  $region154: #{forward.1} parent=0 // pred_check
    %p446 = pneg %p442
  $region155: #{forward.1} parent=0 // pred_check_branch
    %448 = sbr.rel (%p446) target = $region157
  $region156: #{forward.1} parent=0 // pred_region
    %s449 = sshllo.u32 0, 32
    loop: start=0, step=1, limit=1
    $region158: #{forward.1} parent=156 // loop_pre_header
      _
    $region159: #{forward.1} parent=156 // loop_header
      %s451 = sphi 0, %s455
      %p452 = scmp.ge.s32.totalorder %s451, 1
      %s456 = sphi %s4, %s4
      %s457 = sphi %s439, %s439
    $region160: #{forward.1} parent=156 // loop_header_branch
      %454 = sbr.rel (%p452) target = $region164
    $region161: #{forward.1} parent=156 // loop_body
      %v458 = vld [vmem:[%s456] sm:%s449]
      %459 = vst [vmem:[%s457] sm:%s449] %v458
    $region162: #{forward.1} parent=156 // loop_footer
      %s455 = sadd.s32 1, %s451
    $region163: #{forward.1} parent=156 // loop_footer_branch
      %450 = sbr.rel target = $region159
    $region164: #{forward.1} parent=156 // loop_exit
      _
  $region157: #{forward.1} parent=0 // pred_fallthru
    _
  // Predicated region
  $region180: #{forward.1} parent=0 // pred_check
    _
  $region181: #{forward.1} parent=0 // pred_check_branch
    %487 = sbr.rel (0) target = $region183
  $region182: #{forward.1} parent=0 // pred_region
    %488 = vsyncadd %s440, 512
  $region183: #{forward.1} parent=0 // pred_fallthru
    _
  %s489 = scalar_lea.vmem %s14, 1024
  %s490 = scalar_lea.sflag [#allocation3], 5
  %p492 = scmp.lt.u32.totalorder 32, 8
  %p493 = pneg %p492
  // Predicated region
  $region184: #{forward.1} parent=0 // pred_check
    _
  $region185: #{forward.1} parent=0 // pred_check_branch
    %495 = sbr.rel (%p492) target = $region187
  $region186: #{forward.1} parent=0 // pred_region
    %s510 = sand.u32 32, 7
    %p511 = scmp.eq.s32.totalorder %s510, 0
    // Predicated region
    $region199: #{forward.1} parent=186 // pred_check
      %p512 = pneg %p511
    $region200: #{forward.1} parent=186 // pred_check_branch
      %514 = sbr.rel (%p512) target = $region202
    $region201: #{forward.1} parent=186 // pred_region
      loop: start=0, step=1, limit=1
      $region203: #{forward.1} parent=201 // loop_pre_header
        _
      $region204: #{forward.1} parent=201 // loop_header
        %s516 = sphi 0, %s520
        %p517 = scmp.ge.s32.totalorder %s516, 1
        %s521 = sphi %s5, %s5
        %s522 = sphi %s489, %s489
      $region205: #{forward.1} parent=201 // loop_header_branch
        %519 = sbr.rel (%p517) target = $region209
      $region206: #{forward.1} parent=201 // loop_body
        %v523 = vld [vmem:[%s521] sm:$0xff]
        %524 = vst [vmem:[%s522] sm:$0xff] %v523
        %v525 = vld [vmem:[%s521 + $0x8] sm:$0xff]
        %526 = vst [vmem:[%s522 + $0x8] sm:$0xff] %v525
        %v527 = vld [vmem:[%s521 + $0x10] sm:$0xff]
        %528 = vst [vmem:[%s522 + $0x10] sm:$0xff] %v527
        %v529 = vld [vmem:[%s521 + $0x18] sm:$0xff]
        %530 = vst [vmem:[%s522 + $0x18] sm:$0xff] %v529
      $region207: #{forward.1} parent=201 // loop_footer
        %s520 = sadd.s32 1, %s516
      $region208: #{forward.1} parent=201 // loop_footer_branch
        %515 = sbr.rel target = $region204
      $region209: #{forward.1} parent=201 // loop_exit
        _
    $region202: #{forward.1} parent=186 // pred_fallthru
      _
    %p531 = pneg %p511
    // Predicated region
    $region210: #{forward.1} parent=186 // pred_check
      _
    $region211: #{forward.1} parent=186 // pred_check_branch
      %533 = sbr.rel (%p511) target = $region213
    $region212: #{forward.1} parent=186 // pred_region
      %s534 = sand.u32 32, 7
    $region213: #{forward.1} parent=186 // pred_fallthru
      _
  $region187: #{forward.1} parent=0 // pred_fallthru
    _
  // Predicated region
  $region188: #{forward.1} parent=0 // pred_check
    %p496 = pneg %p492
  $region189: #{forward.1} parent=0 // pred_check_branch
    %498 = sbr.rel (%p496) target = $region191
  $region190: #{forward.1} parent=0 // pred_region
    %s499 = sshllo.u32 0, 32
    loop: start=0, step=1, limit=1
    $region192: #{forward.1} parent=190 // loop_pre_header
      _
    $region193: #{forward.1} parent=190 // loop_header
      %s501 = sphi 0, %s505
      %p502 = scmp.ge.s32.totalorder %s501, 1
      %s506 = sphi %s5, %s5
      %s507 = sphi %s489, %s489
    $region194: #{forward.1} parent=190 // loop_header_branch
      %504 = sbr.rel (%p502) target = $region198
    $region195: #{forward.1} parent=190 // loop_body
      %v508 = vld [vmem:[%s506] sm:%s499]
      %509 = vst [vmem:[%s507] sm:%s499] %v508
    $region196: #{forward.1} parent=190 // loop_footer
      %s505 = sadd.s32 1, %s501
    $region197: #{forward.1} parent=190 // loop_footer_branch
      %500 = sbr.rel target = $region193
    $region198: #{forward.1} parent=190 // loop_exit
      _
  $region191: #{forward.1} parent=0 // pred_fallthru
    _
  // Predicated region
  $region214: #{forward.1} parent=0 // pred_check
    _
  $region215: #{forward.1} parent=0 // pred_check_branch
    %537 = sbr.rel (0) target = $region217
  $region216: #{forward.1} parent=0 // pred_region
    %538 = vsyncadd %s490, 512
  $region217: #{forward.1} parent=0 // pred_fallthru
    _
  %s539 = scalar_lea.vmem %s14, 1056
  %s540 = scalar_lea.sflag [#allocation3], 6
  %p542 = scmp.lt.u32.totalorder 32, 8
  %p543 = pneg %p542
  // Predicated region
  $region218: #{forward.1} parent=0 // pred_check
    _
  $region219: #{forward.1} parent=0 // pred_check_branch
    %545 = sbr.rel (%p542) target = $region221
  $region220: #{forward.1} parent=0 // pred_region
    %s560 = sand.u32 32, 7
    %p561 = scmp.eq.s32.totalorder %s560, 0
    // Predicated region
    $region233: #{forward.1} parent=220 // pred_check
      %p562 = pneg %p561
    $region234: #{forward.1} parent=220 // pred_check_branch
      %564 = sbr.rel (%p562) target = $region236
    $region235: #{forward.1} parent=220 // pred_region
      loop: start=0, step=1, limit=1
      $region237: #{forward.1} parent=235 // loop_pre_header
        _
      $region238: #{forward.1} parent=235 // loop_header
        %s566 = sphi 0, %s570
        %p567 = scmp.ge.s32.totalorder %s566, 1
        %s571 = sphi %s6, %s6
        %s572 = sphi %s539, %s539
      $region239: #{forward.1} parent=235 // loop_header_branch
        %569 = sbr.rel (%p567) target = $region243
      $region240: #{forward.1} parent=235 // loop_body
        %v573 = vld [vmem:[%s571] sm:$0xff]
        %574 = vst [vmem:[%s572] sm:$0xff] %v573
        %v575 = vld [vmem:[%s571 + $0x8] sm:$0xff]
        %576 = vst [vmem:[%s572 + $0x8] sm:$0xff] %v575
        %v577 = vld [vmem:[%s571 + $0x10] sm:$0xff]
        %578 = vst [vmem:[%s572 + $0x10] sm:$0xff] %v577
        %v579 = vld [vmem:[%s571 + $0x18] sm:$0xff]
        %580 = vst [vmem:[%s572 + $0x18] sm:$0xff] %v579
      $region241: #{forward.1} parent=235 // loop_footer
        %s570 = sadd.s32 1, %s566
      $region242: #{forward.1} parent=235 // loop_footer_branch
        %565 = sbr.rel target = $region238
      $region243: #{forward.1} parent=235 // loop_exit
        _
    $region236: #{forward.1} parent=220 // pred_fallthru
      _
    %p581 = pneg %p561
    // Predicated region
    $region244: #{forward.1} parent=220 // pred_check
      _
    $region245: #{forward.1} parent=220 // pred_check_branch
      %583 = sbr.rel (%p561) target = $region247
    $region246: #{forward.1} parent=220 // pred_region
      %s584 = sand.u32 32, 7
    $region247: #{forward.1} parent=220 // pred_fallthru
      _
  $region221: #{forward.1} parent=0 // pred_fallthru
    _
  // Predicated region
  $region222: #{forward.1} parent=0 // pred_check
    %p546 = pneg %p542
  $region223: #{forward.1} parent=0 // pred_check_branch
    %548 = sbr.rel (%p546) target = $region225
  $region224: #{forward.1} parent=0 // pred_region
    %s549 = sshllo.u32 0, 32
    loop: start=0, step=1, limit=1
    $region226: #{forward.1} parent=224 // loop_pre_header
      _
    $region227: #{forward.1} parent=224 // loop_header
      %s551 = sphi 0, %s555
      %p552 = scmp.ge.s32.totalorder %s551, 1
      %s556 = sphi %s6, %s6
      %s557 = sphi %s539, %s539
    $region228: #{forward.1} parent=224 // loop_header_branch
      %554 = sbr.rel (%p552) target = $region232
    $region229: #{forward.1} parent=224 // loop_body
      %v558 = vld [vmem:[%s556] sm:%s549]
      %559 = vst [vmem:[%s557] sm:%s549] %v558
    $region230: #{forward.1} parent=224 // loop_footer
      %s555 = sadd.s32 1, %s551
    $region231: #{forward.1} parent=224 // loop_footer_branch
      %550 = sbr.rel target = $region227
    $region232: #{forward.1} parent=224 // loop_exit
      _
  $region225: #{forward.1} parent=0 // pred_fallthru
    _
  // Predicated region
  $region248: #{forward.1} parent=0 // pred_check
    _
  $region249: #{forward.1} parent=0 // pred_check_branch
    %587 = sbr.rel (0) target = $region251
  $region250: #{forward.1} parent=0 // pred_region
    %588 = vsyncadd %s540, 512
  $region251: #{forward.1} parent=0 // pred_fallthru
    _
  %s589 = scalar_lea.vmem %s14, 1088
  %s590 = scalar_lea.sflag [#allocation3], 7
  %p592 = scmp.lt.u32.totalorder 32, 8
  %p593 = pneg %p592
  // Predicated region
  $region252: #{forward.1} parent=0 // pred_check
    _
  $region253: #{forward.1} parent=0 // pred_check_branch
    %595 = sbr.rel (%p592) target = $region255
  $region254: #{forward.1} parent=0 // pred_region
    %s610 = sand.u32 32, 7
    %p611 = scmp.eq.s32.totalorder %s610, 0
    // Predicated region
    $region267: #{forward.1} parent=254 // pred_check
      %p612 = pneg %p611
    $region268: #{forward.1} parent=254 // pred_check_branch
      %614 = sbr.rel (%p612) target = $region270
    $region269: #{forward.1} parent=254 // pred_region
      loop: start=0, step=1, limit=1
      $region271: #{forward.1} parent=269 // loop_pre_header
        _
      $region272: #{forward.1} parent=269 // loop_header
        %s616 = sphi 0, %s620
        %p617 = scmp.ge.s32.totalorder %s616, 1
        %s621 = sphi %s7, %s7
        %s622 = sphi %s589, %s589
      $region273: #{forward.1} parent=269 // loop_header_branch
        %619 = sbr.rel (%p617) target = $region277
      $region274: #{forward.1} parent=269 // loop_body
        %v623 = vld [vmem:[%s621] sm:$0xff]
        %624 = vst [vmem:[%s622] sm:$0xff] %v623
        %v625 = vld [vmem:[%s621 + $0x8] sm:$0xff]
        %626 = vst [vmem:[%s622 + $0x8] sm:$0xff] %v625
        %v627 = vld [vmem:[%s621 + $0x10] sm:$0xff]
        %628 = vst [vmem:[%s622 + $0x10] sm:$0xff] %v627
        %v629 = vld [vmem:[%s621 + $0x18] sm:$0xff]
        %630 = vst [vmem:[%s622 + $0x18] sm:$0xff] %v629
      $region275: #{forward.1} parent=269 // loop_footer
        %s620 = sadd.s32 1, %s616
      $region276: #{forward.1} parent=269 // loop_footer_branch
        %615 = sbr.rel target = $region272
      $region277: #{forward.1} parent=269 // loop_exit
        _
    $region270: #{forward.1} parent=254 // pred_fallthru
      _
    %p631 = pneg %p611
    // Predicated region
    $region278: #{forward.1} parent=254 // pred_check
      _
    $region279: #{forward.1} parent=254 // pred_check_branch
      %633 = sbr.rel (%p611) target = $region281
    $region280: #{forward.1} parent=254 // pred_region
      %s634 = sand.u32 32, 7
    $region281: #{forward.1} parent=254 // pred_fallthru
      _
  $region255: #{forward.1} parent=0 // pred_fallthru
    _
  // Predicated region
  $region256: #{forward.1} parent=0 // pred_check
    %p596 = pneg %p592
  $region257: #{forward.1} parent=0 // pred_check_branch
    %598 = sbr.rel (%p596) target = $region259
  $region258: #{forward.1} parent=0 // pred_region
    %s599 = sshllo.u32 0, 32
    loop: start=0, step=1, limit=1
    $region260: #{forward.1} parent=258 // loop_pre_header
      _
    $region261: #{forward.1} parent=258 // loop_header
      %s601 = sphi 0, %s605
      %p602 = scmp.ge.s32.totalorder %s601, 1
      %s606 = sphi %s7, %s7
      %s607 = sphi %s589, %s589
    $region262: #{forward.1} parent=258 // loop_header_branch
      %604 = sbr.rel (%p602) target = $region266
    $region263: #{forward.1} parent=258 // loop_body
      %v608 = vld [vmem:[%s606] sm:%s599]
      %609 = vst [vmem:[%s607] sm:%s599] %v608
    $region264: #{forward.1} parent=258 // loop_footer
      %s605 = sadd.s32 1, %s601
    $region265: #{forward.1} parent=258 // loop_footer_branch
      %600 = sbr.rel target = $region261
    $region266: #{forward.1} parent=258 // loop_exit
      _
  $region259: #{forward.1} parent=0 // pred_fallthru
    _
  // Predicated region
  $region282: #{forward.1} parent=0 // pred_check
    _
  $region283: #{forward.1} parent=0 // pred_check_branch
    %637 = sbr.rel (0) target = $region285
  $region284: #{forward.1} parent=0 // pred_region
    %638 = vsyncadd %s590, 512
  $region285: #{forward.1} parent=0 // pred_fallthru
    _
  %s639 = scalar_lea.vmem %s14, 1120
  %s640 = scalar_lea.sflag [#allocation3], 8
  %p642 = scmp.lt.u32.totalorder 32, 8
  %p643 = pneg %p642
  // Predicated region
  $region286: #{forward.1} parent=0 // pred_check
    _
  $region287: #{forward.1} parent=0 // pred_check_branch
    %645 = sbr.rel (%p642) target = $region289
  $region288: #{forward.1} parent=0 // pred_region
    %s660 = sand.u32 32, 7
    %p661 = scmp.eq.s32.totalorder %s660, 0
    // Predicated region
    $region301: #{forward.1} parent=288 // pred_check
      %p662 = pneg %p661
    $region302: #{forward.1} parent=288 // pred_check_branch
      %664 = sbr.rel (%p662) target = $region304
    $region303: #{forward.1} parent=288 // pred_region
      loop: start=0, step=1, limit=1
      $region305: #{forward.1} parent=303 // loop_pre_header
        _
      $region306: #{forward.1} parent=303 // loop_header
        %s666 = sphi 0, %s670
        %p667 = scmp.ge.s32.totalorder %s666, 1
        %s671 = sphi %s8, %s8
        %s672 = sphi %s639, %s639
      $region307: #{forward.1} parent=303 // loop_header_branch
        %669 = sbr.rel (%p667) target = $region311
      $region308: #{forward.1} parent=303 // loop_body
        %v673 = vld [vmem:[%s671] sm:$0xff]
        %674 = vst [vmem:[%s672] sm:$0xff] %v673
        %v675 = vld [vmem:[%s671 + $0x8] sm:$0xff]
        %676 = vst [vmem:[%s672 + $0x8] sm:$0xff] %v675
        %v677 = vld [vmem:[%s671 + $0x10] sm:$0xff]
        %678 = vst [vmem:[%s672 + $0x10] sm:$0xff] %v677
        %v679 = vld [vmem:[%s671 + $0x18] sm:$0xff]
        %680 = vst [vmem:[%s672 + $0x18] sm:$0xff] %v679
      $region309: #{forward.1} parent=303 // loop_footer
        %s670 = sadd.s32 1, %s666
      $region310: #{forward.1} parent=303 // loop_footer_branch
        %665 = sbr.rel target = $region306
      $region311: #{forward.1} parent=303 // loop_exit
        _
    $region304: #{forward.1} parent=288 // pred_fallthru
      _
    %p681 = pneg %p661
    // Predicated region
    $region312: #{forward.1} parent=288 // pred_check
      _
    $region313: #{forward.1} parent=288 // pred_check_branch
      %683 = sbr.rel (%p661) target = $region315
    $region314: #{forward.1} parent=288 // pred_region
      %s684 = sand.u32 32, 7
    $region315: #{forward.1} parent=288 // pred_fallthru
      _
  $region289: #{forward.1} parent=0 // pred_fallthru
    _
  // Predicated region
  $region290: #{forward.1} parent=0 // pred_check
    %p646 = pneg %p642
  $region291: #{forward.1} parent=0 // pred_check_branch
    %648 = sbr.rel (%p646) target = $region293
  $region292: #{forward.1} parent=0 // pred_region
    %s649 = sshllo.u32 0, 32
    loop: start=0, step=1, limit=1
    $region294: #{forward.1} parent=292 // loop_pre_header
      _
    $region295: #{forward.1} parent=292 // loop_header
      %s651 = sphi 0, %s655
      %p652 = scmp.ge.s32.totalorder %s651, 1
      %s656 = sphi %s8, %s8
      %s657 = sphi %s639, %s639
    $region296: #{forward.1} parent=292 // loop_header_branch
      %654 = sbr.rel (%p652) target = $region300
    $region297: #{forward.1} parent=292 // loop_body
      %v658 = vld [vmem:[%s656] sm:%s649]
      %659 = vst [vmem:[%s657] sm:%s649] %v658
    $region298: #{forward.1} parent=292 // loop_footer
      %s655 = sadd.s32 1, %s651
    $region299: #{forward.1} parent=292 // loop_footer_branch
      %650 = sbr.rel target = $region295
    $region300: #{forward.1} parent=292 // loop_exit
      _
  $region293: #{forward.1} parent=0 // pred_fallthru
    _
  // Predicated region
  $region316: #{forward.1} parent=0 // pred_check
    _
  $region317: #{forward.1} parent=0 // pred_check_branch
    %687 = sbr.rel (0) target = $region319
  $region318: #{forward.1} parent=0 // pred_region
    %688 = vsyncadd %s640, 512
  $region319: #{forward.1} parent=0 // pred_fallthru
    _
  %s689 = scalar_lea.vmem %s14, 1152
  %s690 = scalar_lea.sflag [#allocation3], 9
  %p692 = scmp.lt.u32.totalorder 32, 8
  %p693 = pneg %p692
  // Predicated region
  $region320: #{forward.1} parent=0 // pred_check
    _
  $region321: #{forward.1} parent=0 // pred_check_branch
    %695 = sbr.rel (%p692) target = $region323
  $region322: #{forward.1} parent=0 // pred_region
    %s710 = sand.u32 32, 7
    %p711 = scmp.eq.s32.totalorder %s710, 0
    // Predicated region
    $region335: #{forward.1} parent=322 // pred_check
      %p712 = pneg %p711
    $region336: #{forward.1} parent=322 // pred_check_branch
      %714 = sbr.rel (%p712) target = $region338
    $region337: #{forward.1} parent=322 // pred_region
      loop: start=0, step=1, limit=1
      $region339: #{forward.1} parent=337 // loop_pre_header
        _
      $region340: #{forward.1} parent=337 // loop_header
        %s716 = sphi 0, %s720
        %p717 = scmp.ge.s32.totalorder %s716, 1
        %s721 = sphi %s9, %s9
        %s722 = sphi %s689, %s689
      $region341: #{forward.1} parent=337 // loop_header_branch
        %719 = sbr.rel (%p717) target = $region345
      $region342: #{forward.1} parent=337 // loop_body
        %v723 = vld [vmem:[%s721] sm:$0xff]
        %724 = vst [vmem:[%s722] sm:$0xff] %v723
        %v725 = vld [vmem:[%s721 + $0x8] sm:$0xff]
        %726 = vst [vmem:[%s722 + $0x8] sm:$0xff] %v725
        %v727 = vld [vmem:[%s721 + $0x10] sm:$0xff]
        %728 = vst [vmem:[%s722 + $0x10] sm:$0xff] %v727
        %v729 = vld [vmem:[%s721 + $0x18] sm:$0xff]
        %730 = vst [vmem:[%s722 + $0x18] sm:$0xff] %v729
      $region343: #{forward.1} parent=337 // loop_footer
        %s720 = sadd.s32 1, %s716
      $region344: #{forward.1} parent=337 // loop_footer_branch
        %715 = sbr.rel target = $region340
      $region345: #{forward.1} parent=337 // loop_exit
        _
    $region338: #{forward.1} parent=322 // pred_fallthru
      _
    %p731 = pneg %p711
    // Predicated region
    $region346: #{forward.1} parent=322 // pred_check
      _
    $region347: #{forward.1} parent=322 // pred_check_branch
      %733 = sbr.rel (%p711) target = $region349
    $region348: #{forward.1} parent=322 // pred_region
      %s734 = sand.u32 32, 7
    $region349: #{forward.1} parent=322 // pred_fallthru
      _
  $region323: #{forward.1} parent=0 // pred_fallthru
    _
  // Predicated region
  $region324: #{forward.1} parent=0 // pred_check
    %p696 = pneg %p692
  $region325: #{forward.1} parent=0 // pred_check_branch
    %698 = sbr.rel (%p696) target = $region327
  $region326: #{forward.1} parent=0 // pred_region
    %s699 = sshllo.u32 0, 32
    loop: start=0, step=1, limit=1
    $region328: #{forward.1} parent=326 // loop_pre_header
      _
    $region329: #{forward.1} parent=326 // loop_header
      %s701 = sphi 0, %s705
      %p702 = scmp.ge.s32.totalorder %s701, 1
      %s706 = sphi %s9, %s9
      %s707 = sphi %s689, %s689
    $region330: #{forward.1} parent=326 // loop_header_branch
      %704 = sbr.rel (%p702) target = $region334
    $region331: #{forward.1} parent=326 // loop_body
      %v708 = vld [vmem:[%s706] sm:%s699]
      %709 = vst [vmem:[%s707] sm:%s699] %v708
    $region332: #{forward.1} parent=326 // loop_footer
      %s705 = sadd.s32 1, %s701
    $region333: #{forward.1} parent=326 // loop_footer_branch
      %700 = sbr.rel target = $region329
    $region334: #{forward.1} parent=326 // loop_exit
      _
  $region327: #{forward.1} parent=0 // pred_fallthru
    _
  // Predicated region
  $region350: #{forward.1} parent=0 // pred_check
    _
  $region351: #{forward.1} parent=0 // pred_check_branch
    %737 = sbr.rel (0) target = $region353
  $region352: #{forward.1} parent=0 // pred_region
    %738 = vsyncadd %s690, 512
  $region353: #{forward.1} parent=0 // pred_fallthru
    _
  %s739 = scalar_lea.vmem %s14, 1216
  %s740 = scalar_lea.sflag [#allocation3], 10
  %p742 = scmp.lt.u32.totalorder 32, 8
  %p743 = pneg %p742
  // Predicated region
  $region354: #{forward.1} parent=0 // pred_check
    _
  $region355: #{forward.1} parent=0 // pred_check_branch
    %745 = sbr.rel (%p742) target = $region357
  $region356: #{forward.1} parent=0 // pred_region
    %s760 = sand.u32 32, 7
    %p761 = scmp.eq.s32.totalorder %s760, 0
    // Predicated region
    $region369: #{forward.1} parent=356 // pred_check
      %p762 = pneg %p761
    $region370: #{forward.1} parent=356 // pred_check_branch
      %764 = sbr.rel (%p762) target = $region372
    $region371: #{forward.1} parent=356 // pred_region
      loop: start=0, step=1, limit=1
      $region373: #{forward.1} parent=371 // loop_pre_header
        _
      $region374: #{forward.1} parent=371 // loop_header
        %s766 = sphi 0, %s770
        %p767 = scmp.ge.s32.totalorder %s766, 1
        %s771 = sphi %s10, %s10
        %s772 = sphi %s739, %s739
      $region375: #{forward.1} parent=371 // loop_header_branch
        %769 = sbr.rel (%p767) target = $region379
      $region376: #{forward.1} parent=371 // loop_body
        %v773 = vld [vmem:[%s771] sm:$0xff]
        %774 = vst [vmem:[%s772] sm:$0xff] %v773
        %v775 = vld [vmem:[%s771 + $0x8] sm:$0xff]
        %776 = vst [vmem:[%s772 + $0x8] sm:$0xff] %v775
        %v777 = vld [vmem:[%s771 + $0x10] sm:$0xff]
        %778 = vst [vmem:[%s772 + $0x10] sm:$0xff] %v777
        %v779 = vld [vmem:[%s771 + $0x18] sm:$0xff]
        %780 = vst [vmem:[%s772 + $0x18] sm:$0xff] %v779
      $region377: #{forward.1} parent=371 // loop_footer
        %s770 = sadd.s32 1, %s766
      $region378: #{forward.1} parent=371 // loop_footer_branch
        %765 = sbr.rel target = $region374
      $region379: #{forward.1} parent=371 // loop_exit
        _
    $region372: #{forward.1} parent=356 // pred_fallthru
      _
    %p781 = pneg %p761
    // Predicated region
    $region380: #{forward.1} parent=356 // pred_check
      _
    $region381: #{forward.1} parent=356 // pred_check_branch
      %783 = sbr.rel (%p761) target = $region383
    $region382: #{forward.1} parent=356 // pred_region
      %s784 = sand.u32 32, 7
    $region383: #{forward.1} parent=356 // pred_fallthru
      _
  $region357: #{forward.1} parent=0 // pred_fallthru
    _
  // Predicated region
  $region358: #{forward.1} parent=0 // pred_check
    %p746 = pneg %p742
  $region359: #{forward.1} parent=0 // pred_check_branch
    %748 = sbr.rel (%p746) target = $region361
  $region360: #{forward.1} parent=0 // pred_region
    %s749 = sshllo.u32 0, 32
    loop: start=0, step=1, limit=1
    $region362: #{forward.1} parent=360 // loop_pre_header
      _
    $region363: #{forward.1} parent=360 // loop_header
      %s751 = sphi 0, %s755
      %p752 = scmp.ge.s32.totalorder %s751, 1
      %s756 = sphi %s10, %s10
      %s757 = sphi %s739, %s739
    $region364: #{forward.1} parent=360 // loop_header_branch
      %754 = sbr.rel (%p752) target = $region368
    $region365: #{forward.1} parent=360 // loop_body
      %v758 = vld [vmem:[%s756] sm:%s749]
      %759 = vst [vmem:[%s757] sm:%s749] %v758
    $region366: #{forward.1} parent=360 // loop_footer
      %s755 = sadd.s32 1, %s751
    $region367: #{forward.1} parent=360 // loop_footer_branch
      %750 = sbr.rel target = $region363
    $region368: #{forward.1} parent=360 // loop_exit
      _
  $region361: #{forward.1} parent=0 // pred_fallthru
    _
  // Predicated region
  $region384: #{forward.1} parent=0 // pred_check
    _
  $region385: #{forward.1} parent=0 // pred_check_branch
    %787 = sbr.rel (0) target = $region387
  $region386: #{forward.1} parent=0 // pred_region
    %788 = vsyncadd %s740, 512
  $region387: #{forward.1} parent=0 // pred_fallthru
    _
  %v789 = vld [vmem:[%s11] sm:$0xff]
  %v790 = vld [vmem:[%s11 + $0x8] sm:$0xff]
  %v791 = vld [vmem:[%s11 + $0x10] sm:$0xff]
  %v792 = vld [vmem:[%s11 + $0x18] sm:$0xff]
  %v793 = vld [vmem:[%s11 + $0x20] sm:$0xff]
  %v794 = vld [vmem:[%s11 + $0x28] sm:$0xff]
  %v795 = vld [vmem:[%s11 + $0x30] sm:$0xff]
  %v796 = vld [vmem:[%s11 + $0x38] sm:$0xff]
  %v797 = vld [vmem:[%s11 + $0x40] sm:$0xff]
  %v798 = vld [vmem:[%s11 + $0x48] sm:$0xff]
  %v799 = vld [vmem:[%s11 + $0x50] sm:$0xff]
  %v800 = vld [vmem:[%s11 + $0x58] sm:$0xff]
  %v801 = vld [vmem:[%s11 + $0x60] sm:$0xff]
  %v802 = vld [vmem:[%s11 + $0x68] sm:$0xff]
  %v803 = vld [vmem:[%s11 + $0x70] sm:$0xff]
  %v804 = vld [vmem:[%s11 + $0x78] sm:$0xff]
  %v805 = vld [vmem:[%s13] sm:$0xff]
  %v806 = vld [vmem:[%s13 + $0x8] sm:$0xff]
  %v807 = vld [vmem:[%s13 + $0x10] sm:$0xff]
  %v808 = vld [vmem:[%s13 + $0x18] sm:$0xff]
  %v809 = vld [vmem:[%s13 + $0x20] sm:$0xff]
  %v810 = vld [vmem:[%s13 + $0x28] sm:$0xff]
  %v811 = vld [vmem:[%s13 + $0x30] sm:$0x1]
  %vm812 = vcmask 400384
  %v814 = vsel %vm812, %v789, 0
  %v817 = vsel %vm812, %v790, 0
  %v820 = vsel %vm812, %v791, 0
  %v823 = vsel %vm812, %v792, 0
  %v826 = vsel %vm812, %v793, 0
  %v829 = vsel %vm812, %v794, 0
  %v832 = vsel %vm812, %v795, 0
  %v835 = vsel %vm812, %v796, 0
  %v838 = vsel %vm812, %v797, 0
  %v841 = vsel %vm812, %v798, 0
  %v844 = vsel %vm812, %v799, 0
  %v847 = vsel %vm812, %v800, 0
  %v850 = vsel %vm812, %v801, 0
  %v853 = vsel %vm812, %v802, 0
  %v856 = vsel %vm812, %v803, 0
  %v859 = vsel %vm812, %v804, 0
  %vm861 = vcmask 1040384
  %v863 = vsel %vm861, %v811, 0
  %865 = vmatprep.subr.mxu0 0.0
  %866 = vmatpush1.msra.mxu0 %v805
  %867 = vmatprep.subr.mxu0 0.0
  %868 = vmatpush1.msra.mxu0 %v806
  %869 = vmatprep.subr.mxu0 0.0
  %870 = vmatpush1.msra.mxu0 %v807
  %871 = vmatprep.subr.mxu0 0.0
  %872 = vmatpush1.msra.mxu0 %v808
  %873 = vmatprep.subr.mxu0 0.0
  %874 = vmatpush1.msra.mxu0 %v809
  %875 = vmatprep.subr.mxu0 0.0
  %876 = vmatpush1.msra.mxu0 %v810
  %877 = vmatprep.subr.mxu0 0.0
  %878 = vmatpush1.msra.mxu0 %v863
  %879 = vmatprep.subr.mxu0 0.0
  %880 = vmatpush1.msra.mxu0 0.0
  %881 = vmatprep.subr.mxu0 0.0
  %882 = vmatpush1.msra.mxu0 0.0
  %883 = vmatprep.subr.mxu0 0.0
  %884 = vmatpush1.msra.mxu0 0.0
  %885 = vmatprep.subr.mxu0 0.0
  %886 = vmatpush1.msra.mxu0 0.0
  %887 = vmatprep.subr.mxu0 0.0
  %888 = vmatpush1.msra.mxu0 0.0
  %889 = vmatprep.subr.mxu0 0.0
  %890 = vmatpush1.msra.mxu0 0.0
  %891 = vmatprep.subr.mxu0 0.0
  %892 = vmatpush1.msra.mxu0 0.0
  %893 = vmatprep.subr.mxu0 0.0
  %894 = vmatpush1.msra.mxu0 0.0
  %895 = vmatprep.subr.mxu0 0.0
  %896 = vmatpush1.msra.mxu0 0.0
  %897 = vmatprep.subr.mxu0 0.0
  %898 = vmatpush1.msra.mxu0 0.0
  %899 = vmatprep.subr.mxu0 0.0
  %900 = vmatpush1.msra.mxu0 0.0
  %901 = vmatprep.subr.mxu0 0.0
  %902 = vmatpush1.msra.mxu0 0.0
  %903 = vmatprep.subr.mxu0 0.0
  %904 = vmatpush1.msra.mxu0 0.0
  %905 = vmatprep.subr.mxu0 0.0
  %906 = vmatpush1.msra.mxu0 0.0
  %907 = vmatprep.subr.mxu0 0.0
  %908 = vmatpush1.msra.mxu0 0.0
  %909 = vmatprep.subr.mxu0 0.0
  %910 = vmatpush1.msra.mxu0 0.0
  %911 = vmatprep.subr.mxu0 0.0
  %912 = vmatpush1.msra.mxu0 0.0
  %913 = vmatprep.subr.mxu0 0.0
  %914 = vmatpush1.msra.mxu0 0.0
  %915 = vmatprep.subr.mxu0 0.0
  %916 = vmatpush1.msra.mxu0 0.0
  %917 = vmatprep.subr.mxu0 0.0
  %918 = vmatpush1.msra.mxu0 0.0
  %919 = vmatprep.subr.mxu0 0.0
  %920 = vmatpush1.msra.mxu0 0.0
  %921 = vmatprep.subr.mxu0 0.0
  %922 = vmatpush1.msra.mxu0 0.0
  %923 = vmatprep.subr.mxu0 0.0
  %924 = vmatpush1.msra.mxu0 0.0
  %925 = vmatprep.subr.mxu0 0.0
  %926 = vmatpush1.msra.mxu0 0.0
  %927 = vmatprep.subr.mxu0 0.0
  %928 = vmatpush1.msra.mxu0 0.0
  %929 = vmatprep.mubr.f32.mxu0 0.0
  %930 = vmatmul.mubr.f32.gmra.mrb[0].mxu0 %v814
  %v931 = vpop.f32.mrb[0].mxu0
  %v932 = vadd.f32 0.0, %v931
  %v933 = vpop.f32.mrb[0].mxu0
  %934 = vmatprep.mubr.f32.mxu0 0.0
  %935 = vmatmul.mubr.f32.gmra.mrb[0].mxu0 %v817
  %v936 = vpop.f32.mrb[0].mxu0
  %v937 = vadd.f32 0.0, %v936
  %v938 = vpop.f32.mrb[0].mxu0
  %939 = vmatprep.mubr.f32.mxu0 0.0
  %940 = vmatmul.mubr.f32.gmra.mrb[0].mxu0 %v820
  %v941 = vpop.f32.mrb[0].mxu0
  %v942 = vadd.f32 0.0, %v941
  %v943 = vpop.f32.mrb[0].mxu0
  %944 = vmatprep.mubr.f32.mxu0 0.0
  %945 = vmatmul.mubr.f32.gmra.mrb[0].mxu0 %v823
  %v946 = vpop.f32.mrb[0].mxu0
  %v947 = vadd.f32 0.0, %v946
  %v948 = vpop.f32.mrb[0].mxu0
  %949 = vmatprep.mubr.f32.mxu0 0.0
  %950 = vmatmul.mubr.f32.gmra.mrb[0].mxu0 %v826
  %v951 = vpop.f32.mrb[0].mxu0
  %v952 = vadd.f32 0.0, %v951
  %v953 = vpop.f32.mrb[0].mxu0
  %954 = vmatprep.mubr.f32.mxu0 0.0
  %955 = vmatmul.mubr.f32.gmra.mrb[0].mxu0 %v829
  %v956 = vpop.f32.mrb[0].mxu0
  %v957 = vadd.f32 0.0, %v956
  %v958 = vpop.f32.mrb[0].mxu0
  %959 = vmatprep.mubr.f32.mxu0 0.0
  %960 = vmatmul.mubr.f32.gmra.mrb[0].mxu0 %v832
  %v961 = vpop.f32.mrb[0].mxu0
  %v962 = vadd.f32 0.0, %v961
  %v963 = vpop.f32.mrb[0].mxu0
  %964 = vmatprep.mubr.f32.mxu0 0.0
  %965 = vmatmul.mubr.f32.gmra.mrb[0].mxu0 %v835
  %v966 = vpop.f32.mrb[0].mxu0
  %v967 = vadd.f32 0.0, %v966
  %v968 = vpop.f32.mrb[0].mxu0
  %969 = vmatprep.mubr.f32.mxu0 0.0
  %970 = vmatmul.mubr.f32.gmra.mrb[0].mxu0 %v838
  %v971 = vpop.f32.mrb[0].mxu0
  %v972 = vadd.f32 0.0, %v971
  %v973 = vpop.f32.mrb[0].mxu0
  %974 = vmatprep.mubr.f32.mxu0 0.0
  %975 = vmatmul.mubr.f32.gmra.mrb[0].mxu0 %v841
  %v976 = vpop.f32.mrb[0].mxu0
  %v977 = vadd.f32 0.0, %v976
  %v978 = vpop.f32.mrb[0].mxu0
  %979 = vmatprep.mubr.f32.mxu0 0.0
  %980 = vmatmul.mubr.f32.gmra.mrb[0].mxu0 %v844
  %v981 = vpop.f32.mrb[0].mxu0
  %v982 = vadd.f32 0.0, %v981
  %v983 = vpop.f32.mrb[0].mxu0
  %984 = vmatprep.mubr.f32.mxu0 0.0
  %985 = vmatmul.mubr.f32.gmra.mrb[0].mxu0 %v847
  %v986 = vpop.f32.mrb[0].mxu0
  %v987 = vadd.f32 0.0, %v986
  %v988 = vpop.f32.mrb[0].mxu0
  %989 = vmatprep.mubr.f32.mxu0 0.0
  %990 = vmatmul.mubr.f32.gmra.mrb[0].mxu0 %v850
  %v991 = vpop.f32.mrb[0].mxu0
  %v992 = vadd.f32 0.0, %v991
  %v993 = vpop.f32.mrb[0].mxu0
  %994 = vmatprep.mubr.f32.mxu0 0.0
  %995 = vmatmul.mubr.f32.gmra.mrb[0].mxu0 %v853
  %v996 = vpop.f32.mrb[0].mxu0
  %v997 = vadd.f32 0.0, %v996
  %v998 = vpop.f32.mrb[0].mxu0
  %999 = vmatprep.mubr.f32.mxu0 0.0
  %1000 = vmatmul.mubr.f32.gmra.mrb[0].mxu0 %v856
  %v1001 = vpop.f32.mrb[0].mxu0
  %v1002 = vadd.f32 0.0, %v1001
  %v1003 = vpop.f32.mrb[0].mxu0
  %1004 = vmatprep.mubr.f32.mxu0 0.0
  %1005 = vmatmul.mubr.f32.gmra.mrb[0].mxu0 %v859
  %v1006 = vpop.f32.mrb[0].mxu0
  %v1007 = vadd.f32 0.0, %v1006
  %v1008 = vpop.f32.mrb[0].mxu0
  %1009 = vdwg.mxu0
  %v1010 = vld [vmem:[%s12] sm:$0xff]
  %v1011 = vld [vmem:[%s12 + $0x8] sm:$0xff]
  %v1012 = vld [vmem:[%s12 + $0x10] sm:$0xff]
  %v1013 = vld [vmem:[%s12 + $0x18] sm:$0xff]
  %s1014 = scalar_lea.vmem %s13, 56
  %v1015 = vld [vmem:[%s1014] sm:$0xff]
  %v1016 = vld [vmem:[%s1014 + $0x8] sm:$0xff]
  %v1017 = vld [vmem:[%s1014 + $0x10] sm:$0xff]
  %v1018 = vld [vmem:[%s1014 + $0x18] sm:$0xff]
  %v1019 = vld [vmem:[%s1014 + $0x20] sm:$0xff]
  %v1020 = vld [vmem:[%s1014 + $0x28] sm:$0xff]
  %v1021 = vld [vmem:[%s1014 + $0x30] sm:$0x1]
  %v1023 = vsel %vm861, %v1021, 0
  %1025 = vmatprep.subr.mxu0 0.0
  %1026 = vmatpush1.msra.mxu0 %v1015
  %1027 = vmatprep.subr.mxu0 0.0
  %1028 = vmatpush1.msra.mxu0 %v1016
  %1029 = vmatprep.subr.mxu0 0.0
  %1030 = vmatpush1.msra.mxu0 %v1017
  %1031 = vmatprep.subr.mxu0 0.0
  %1032 = vmatpush1.msra.mxu0 %v1018
  %1033 = vmatprep.subr.mxu0 0.0
  %1034 = vmatpush1.msra.mxu0 %v1019
  %1035 = vmatprep.subr.mxu0 0.0
  %1036 = vmatpush1.msra.mxu0 %v1020
  %1037 = vmatprep.subr.mxu0 0.0
  %1038 = vmatpush1.msra.mxu0 %v1023
  %1039 = vmatprep.subr.mxu0 0.0
  %1040 = vmatpush1.msra.mxu0 0.0
  %1041 = vmatprep.subr.mxu0 0.0
  %1042 = vmatpush1.msra.mxu0 0.0
  %1043 = vmatprep.subr.mxu0 0.0
  %1044 = vmatpush1.msra.mxu0 0.0
  %1045 = vmatprep.subr.mxu0 0.0
  %1046 = vmatpush1.msra.mxu0 0.0
  %1047 = vmatprep.subr.mxu0 0.0
  %1048 = vmatpush1.msra.mxu0 0.0
  %1049 = vmatprep.subr.mxu0 0.0
  %1050 = vmatpush1.msra.mxu0 0.0
  %1051 = vmatprep.subr.mxu0 0.0
  %1052 = vmatpush1.msra.mxu0 0.0
  %1053 = vmatprep.subr.mxu0 0.0
  %1054 = vmatpush1.msra.mxu0 0.0
  %1055 = vmatprep.subr.mxu0 0.0
  %1056 = vmatpush1.msra.mxu0 0.0
  %1057 = vmatprep.subr.mxu0 0.0
  %1058 = vmatpush1.msra.mxu0 0.0
  %1059 = vmatprep.subr.mxu0 0.0
  %1060 = vmatpush1.msra.mxu0 0.0
  %1061 = vmatprep.subr.mxu0 0.0
  %1062 = vmatpush1.msra.mxu0 0.0
  %1063 = vmatprep.subr.mxu0 0.0
  %1064 = vmatpush1.msra.mxu0 0.0
  %1065 = vmatprep.subr.mxu0 0.0
  %1066 = vmatpush1.msra.mxu0 0.0
  %1067 = vmatprep.subr.mxu0 0.0
  %1068 = vmatpush1.msra.mxu0 0.0
  %1069 = vmatprep.subr.mxu0 0.0
  %1070 = vmatpush1.msra.mxu0 0.0
  %1071 = vmatprep.subr.mxu0 0.0
  %1072 = vmatpush1.msra.mxu0 0.0
  %1073 = vmatprep.subr.mxu0 0.0
  %1074 = vmatpush1.msra.mxu0 0.0
  %1075 = vmatprep.subr.mxu0 0.0
  %1076 = vmatpush1.msra.mxu0 0.0
  %1077 = vmatprep.subr.mxu0 0.0
  %1078 = vmatpush1.msra.mxu0 0.0
  %1079 = vmatprep.subr.mxu0 0.0
  %1080 = vmatpush1.msra.mxu0 0.0
  %1081 = vmatprep.subr.mxu0 0.0
  %1082 = vmatpush1.msra.mxu0 0.0
  %1083 = vmatprep.subr.mxu0 0.0
  %1084 = vmatpush1.msra.mxu0 0.0
  %1085 = vmatprep.subr.mxu0 0.0
  %1086 = vmatpush1.msra.mxu0 0.0
  %1087 = vmatprep.subr.mxu0 0.0
  %1088 = vmatpush1.msra.mxu0 0.0
  %1089 = vmatprep.mubr.f32.mxu0 0.0
  %1090 = vmatmul.mubr.f32.gmra.mrb[0].mxu0 %v814
  %v1091 = vpop.f32.mrb[0].mxu0
  %v1092 = vadd.f32 0.0, %v1091
  %v1093 = vpop.f32.mrb[0].mxu0
  %1094 = vmatprep.mubr.f32.mxu0 0.0
  %1095 = vmatmul.mubr.f32.gmra.mrb[0].mxu0 %v817
  %v1096 = vpop.f32.mrb[0].mxu0
  %v1097 = vadd.f32 0.0, %v1096
  %v1098 = vpop.f32.mrb[0].mxu0
  %1099 = vmatprep.mubr.f32.mxu0 0.0
  %1100 = vmatmul.mubr.f32.gmra.mrb[0].mxu0 %v820
  %v1101 = vpop.f32.mrb[0].mxu0
  %v1102 = vadd.f32 0.0, %v1101
  %v1103 = vpop.f32.mrb[0].mxu0
  %1104 = vmatprep.mubr.f32.mxu0 0.0
  %1105 = vmatmul.mubr.f32.gmra.mrb[0].mxu0 %v823
  %v1106 = vpop.f32.mrb[0].mxu0
  %v1107 = vadd.f32 0.0, %v1106
  %v1108 = vpop.f32.mrb[0].mxu0
  %1109 = vmatprep.mubr.f32.mxu0 0.0
  %1110 = vmatmul.mubr.f32.gmra.mrb[0].mxu0 %v826
  %v1111 = vpop.f32.mrb[0].mxu0
  %v1112 = vadd.f32 0.0, %v1111
  %v1113 = vpop.f32.mrb[0].mxu0
  %1114 = vmatprep.mubr.f32.mxu0 0.0
  %1115 = vmatmul.mubr.f32.gmra.mrb[0].mxu0 %v829
  %v1116 = vpop.f32.mrb[0].mxu0
  %v1117 = vadd.f32 0.0, %v1116
  %v1118 = vpop.f32.mrb[0].mxu0
  %1119 = vmatprep.mubr.f32.mxu0 0.0
  %1120 = vmatmul.mubr.f32.gmra.mrb[0].mxu0 %v832
  %v1121 = vpop.f32.mrb[0].mxu0
  %v1122 = vadd.f32 0.0, %v1121
  %v1123 = vpop.f32.mrb[0].mxu0
  %1124 = vmatprep.mubr.f32.mxu0 0.0
  %1125 = vmatmul.mubr.f32.gmra.mrb[0].mxu0 %v835
  %v1126 = vpop.f32.mrb[0].mxu0
  %v1127 = vadd.f32 0.0, %v1126
  %v1128 = vpop.f32.mrb[0].mxu0
  %1129 = vmatprep.mubr.f32.mxu0 0.0
  %1130 = vmatmul.mubr.f32.gmra.mrb[0].mxu0 %v838
  %v1131 = vpop.f32.mrb[0].mxu0
  %v1132 = vadd.f32 0.0, %v1131
  %v1133 = vpop.f32.mrb[0].mxu0
  %1134 = vmatprep.mubr.f32.mxu0 0.0
  %1135 = vmatmul.mubr.f32.gmra.mrb[0].mxu0 %v841
  %v1136 = vpop.f32.mrb[0].mxu0
  %v1137 = vadd.f32 0.0, %v1136
  %v1138 = vpop.f32.mrb[0].mxu0
  %1139 = vmatprep.mubr.f32.mxu0 0.0
  %1140 = vmatmul.mubr.f32.gmra.mrb[0].mxu0 %v844
  %v1141 = vpop.f32.mrb[0].mxu0
  %v1142 = vadd.f32 0.0, %v1141
  %v1143 = vpop.f32.mrb[0].mxu0
  %1144 = vmatprep.mubr.f32.mxu0 0.0
  %1145 = vmatmul.mubr.f32.gmra.mrb[0].mxu0 %v847
  %v1146 = vpop.f32.mrb[0].mxu0
  %v1147 = vadd.f32 0.0, %v1146
  %v1148 = vpop.f32.mrb[0].mxu0
  %1149 = vmatprep.mubr.f32.mxu0 0.0
  %1150 = vmatmul.mubr.f32.gmra.mrb[0].mxu0 %v850
  %v1151 = vpop.f32.mrb[0].mxu0
  %v1152 = vadd.f32 0.0, %v1151
  %v1153 = vpop.f32.mrb[0].mxu0
  %1154 = vmatprep.mubr.f32.mxu0 0.0
  %1155 = vmatmul.mubr.f32.gmra.mrb[0].mxu0 %v853
  %v1156 = vpop.f32.mrb[0].mxu0
  %v1157 = vadd.f32 0.0, %v1156
  %v1158 = vpop.f32.mrb[0].mxu0
  %1159 = vmatprep.mubr.f32.mxu0 0.0
  %1160 = vmatmul.mubr.f32.gmra.mrb[0].mxu0 %v856
  %v1161 = vpop.f32.mrb[0].mxu0
  %v1162 = vadd.f32 0.0, %v1161
  %v1163 = vpop.f32.mrb[0].mxu0
  %1164 = vmatprep.mubr.f32.mxu0 0.0
  %1165 = vmatmul.mubr.f32.gmra.mrb[0].mxu0 %v859
  %v1166 = vpop.f32.mrb[0].mxu0
  %v1167 = vadd.f32 0.0, %v1166
  %v1168 = vpop.f32.mrb[0].mxu0
  %1169 = vdwg.mxu0
  %s1170 = scalar_lea.vmem %s12, 32
  %v1171 = vld [vmem:[%s1170] sm:$0xff]
  %v1172 = vld [vmem:[%s1170 + $0x8] sm:$0xff]
  %v1173 = vld [vmem:[%s1170 + $0x10] sm:$0xff]
  %v1174 = vld [vmem:[%s1170 + $0x18] sm:$0xff]
  %1175 = vmatprep.subr.mxu0 0.0
  %1176 = vmatpush1.msra.mxu0 %v1092
  %1177 = vmatprep.subr.mxu0 0.0
  %1178 = vmatpush1.msra.mxu0 %v1097
  %1179 = vmatprep.subr.mxu0 0.0
  %1180 = vmatpush1.msra.mxu0 %v1102
  %1181 = vmatprep.subr.mxu0 0.0
  %1182 = vmatpush1.msra.mxu0 %v1107
  %1183 = vmatprep.subr.mxu0 0.0
  %1184 = vmatpush1.msra.mxu0 %v1112
  %1185 = vmatprep.subr.mxu0 0.0
  %1186 = vmatpush1.msra.mxu0 %v1117
  %1187 = vmatprep.subr.mxu0 0.0
  %1188 = vmatpush1.msra.mxu0 %v1122
  %1189 = vmatprep.subr.mxu0 0.0
  %1190 = vmatpush1.msra.mxu0 %v1127
  %1191 = vmatprep.subr.mxu0 0.0
  %1192 = vmatpush1.msra.mxu0 %v1132
  %1193 = vmatprep.subr.mxu0 0.0
  %1194 = vmatpush1.msra.mxu0 %v1137
  %1195 = vmatprep.subr.mxu0 0.0
  %1196 = vmatpush1.msra.mxu0 %v1142
  %1197 = vmatprep.subr.mxu0 0.0
  %1198 = vmatpush1.msra.mxu0 %v1147
  %1199 = vmatprep.subr.mxu0 0.0
  %1200 = vmatpush1.msra.mxu0 %v1152
  %1201 = vmatprep.subr.mxu0 0.0
  %1202 = vmatpush1.msra.mxu0 %v1157
  %1203 = vmatprep.subr.mxu0 0.0
  %1204 = vmatpush1.msra.mxu0 %v1162
  %1205 = vmatprep.subr.mxu0 0.0
  %1206 = vmatpush1.msra.mxu0 %v1167
  %1207 = vmatprep.subr.mxu0 0.0
  %1208 = vmatpush1.msra.mxu0 0.0
  %1209 = vmatprep.subr.mxu0 0.0
  %1210 = vmatpush1.msra.mxu0 0.0
  %1211 = vmatprep.subr.mxu0 0.0
  %1212 = vmatpush1.msra.mxu0 0.0
  %1213 = vmatprep.subr.mxu0 0.0
  %1214 = vmatpush1.msra.mxu0 0.0
  %1215 = vmatprep.subr.mxu0 0.0
  %1216 = vmatpush1.msra.mxu0 0.0
  %1217 = vmatprep.subr.mxu0 0.0
  %1218 = vmatpush1.msra.mxu0 0.0
  %1219 = vmatprep.subr.mxu0 0.0
  %1220 = vmatpush1.msra.mxu0 0.0
  %1221 = vmatprep.subr.mxu0 0.0
  %1222 = vmatpush1.msra.mxu0 0.0
  %1223 = vmatprep.subr.mxu0 0.0
  %1224 = vmatpush1.msra.mxu0 0.0
  %1225 = vmatprep.subr.mxu0 0.0
  %1226 = vmatpush1.msra.mxu0 0.0
  %1227 = vmatprep.subr.mxu0 0.0
  %1228 = vmatpush1.msra.mxu0 0.0
  %1229 = vmatprep.subr.mxu0 0.0
  %1230 = vmatpush1.msra.mxu0 0.0
  %1231 = vmatprep.subr.mxu0 0.0
  %1232 = vmatpush1.msra.mxu0 0.0
  %1233 = vmatprep.subr.mxu0 0.0
  %1234 = vmatpush1.msra.mxu0 0.0
  %1235 = vmatprep.subr.mxu0 0.0
  %1236 = vmatpush1.msra.mxu0 0.0
  %1237 = vmatprep.subr.mxu0 0.0
  %1238 = vmatpush1.msra.mxu0 0.0
  %1239 = vmatprep.mubr.f32.mxu0 0.0
  %1240 = vmatmul.mubr.f32.gmra.mrb[0].mxu0 %v1171
  %v1241 = vpop.f32.mrb[0].mxu0
  %v1242 = vadd.f32 0.0, %v1241
  %v1243 = vpop.f32.mrb[0].mxu0
  %1244 = vmatprep.mubr.f32.mxu0 0.0
  %1245 = vmatmul.mubr.f32.gmra.mrb[0].mxu0 %v1172
  %v1246 = vpop.f32.mrb[0].mxu0
  %v1247 = vadd.f32 0.0, %v1246
  %v1248 = vpop.f32.mrb[0].mxu0
  %1249 = vmatprep.mubr.f32.mxu0 0.0
  %1250 = vmatmul.mubr.f32.gmra.mrb[0].mxu0 %v1173
  %v1251 = vpop.f32.mrb[0].mxu0
  %v1252 = vadd.f32 0.0, %v1251
  %v1253 = vpop.f32.mrb[0].mxu0
  %1254 = vmatprep.mubr.f32.mxu0 0.0
  %1255 = vmatmul.mubr.f32.gmra.mrb[0].mxu0 %v1174
  %v1256 = vpop.f32.mrb[0].mxu0
  %v1257 = vadd.f32 0.0, %v1256
  %v1258 = vpop.f32.mrb[0].mxu0
  %1259 = vdwg.mxu0
  %1260 = vmatprep.subr.mxu0 0.0
  %1261 = vmatpush1.msra.mxu0 %v932
  %1262 = vmatprep.subr.mxu0 0.0
  %1263 = vmatpush1.msra.mxu0 %v937
  %1264 = vmatprep.subr.mxu0 0.0
  %1265 = vmatpush1.msra.mxu0 %v942
  %1266 = vmatprep.subr.mxu0 0.0
  %1267 = vmatpush1.msra.mxu0 %v947
  %1268 = vmatprep.subr.mxu0 0.0
  %1269 = vmatpush1.msra.mxu0 %v952
  %1270 = vmatprep.subr.mxu0 0.0
  %1271 = vmatpush1.msra.mxu0 %v957
  %1272 = vmatprep.subr.mxu0 0.0
  %1273 = vmatpush1.msra.mxu0 %v962
  %1274 = vmatprep.subr.mxu0 0.0
  %1275 = vmatpush1.msra.mxu0 %v967
  %1276 = vmatprep.subr.mxu0 0.0
  %1277 = vmatpush1.msra.mxu0 %v972
  %1278 = vmatprep.subr.mxu0 0.0
  %1279 = vmatpush1.msra.mxu0 %v977
  %1280 = vmatprep.subr.mxu0 0.0
  %1281 = vmatpush1.msra.mxu0 %v982
  %1282 = vmatprep.subr.mxu0 0.0
  %1283 = vmatpush1.msra.mxu0 %v987
  %1284 = vmatprep.subr.mxu0 0.0
  %1285 = vmatpush1.msra.mxu0 %v992
  %1286 = vmatprep.subr.mxu0 0.0
  %1287 = vmatpush1.msra.mxu0 %v997
  %1288 = vmatprep.subr.mxu0 0.0
  %1289 = vmatpush1.msra.mxu0 %v1002
  %1290 = vmatprep.subr.mxu0 0.0
  %1291 = vmatpush1.msra.mxu0 %v1007
  %1292 = vmatprep.subr.mxu0 0.0
  %1293 = vmatpush1.msra.mxu0 0.0
  %1294 = vmatprep.subr.mxu0 0.0
  %1295 = vmatpush1.msra.mxu0 0.0
  %1296 = vmatprep.subr.mxu0 0.0
  %1297 = vmatpush1.msra.mxu0 0.0
  %1298 = vmatprep.subr.mxu0 0.0
  %1299 = vmatpush1.msra.mxu0 0.0
  %1300 = vmatprep.subr.mxu0 0.0
  %1301 = vmatpush1.msra.mxu0 0.0
  %1302 = vmatprep.subr.mxu0 0.0
  %1303 = vmatpush1.msra.mxu0 0.0
  %1304 = vmatprep.subr.mxu0 0.0
  %1305 = vmatpush1.msra.mxu0 0.0
  %1306 = vmatprep.subr.mxu0 0.0
  %1307 = vmatpush1.msra.mxu0 0.0
  %1308 = vmatprep.subr.mxu0 0.0
  %1309 = vmatpush1.msra.mxu0 0.0
  %1310 = vmatprep.subr.mxu0 0.0
  %1311 = vmatpush1.msra.mxu0 0.0
  %1312 = vmatprep.subr.mxu0 0.0
  %1313 = vmatpush1.msra.mxu0 0.0
  %1314 = vmatprep.subr.mxu0 0.0
  %1315 = vmatpush1.msra.mxu0 0.0
  %1316 = vmatprep.subr.mxu0 0.0
  %1317 = vmatpush1.msra.mxu0 0.0
  %1318 = vmatprep.subr.mxu0 0.0
  %1319 = vmatpush1.msra.mxu0 0.0
  %1320 = vmatprep.subr.mxu0 0.0
  %1321 = vmatpush1.msra.mxu0 0.0
  %1322 = vmatprep.subr.mxu0 0.0
  %1323 = vmatpush1.msra.mxu0 0.0
  %1324 = vmatprep.mubr.f32.mxu0 0.0
  %1325 = vmatmul.mubr.f32.gmra.mrb[0].mxu0 %v1010
  %v1326 = vpop.f32.mrb[0].mxu0
  %v1327 = vadd.f32 %v1242, %v1326
  %v1328 = vpop.f32.mrb[0].mxu0
  %1329 = vmatprep.mubr.f32.mxu0 0.0
  %1330 = vmatmul.mubr.f32.gmra.mrb[0].mxu0 %v1011
  %v1331 = vpop.f32.mrb[0].mxu0
  %v1332 = vadd.f32 %v1247, %v1331
  %v1333 = vpop.f32.mrb[0].mxu0
  %1334 = vmatprep.mubr.f32.mxu0 0.0
  %1335 = vmatmul.mubr.f32.gmra.mrb[0].mxu0 %v1012
  %v1336 = vpop.f32.mrb[0].mxu0
  %v1337 = vadd.f32 %v1252, %v1336
  %v1338 = vpop.f32.mrb[0].mxu0
  %1339 = vmatprep.mubr.f32.mxu0 0.0
  %1340 = vmatmul.mubr.f32.gmra.mrb[0].mxu0 %v1013
  %v1341 = vpop.f32.mrb[0].mxu0
  %v1342 = vadd.f32 %v1257, %v1341
  %v1343 = vpop.f32.mrb[0].mxu0
  %1344 = vdwg.mxu0
  %s1345 = scalar_lea.vmem %s13, 112
  %v1346 = vld [vmem:[%s1345] sm:$0xff]
  %v1347 = vld [vmem:[%s1345 + $0x8] sm:$0xff]
  %v1348 = vld [vmem:[%s1345 + $0x10] sm:$0xff]
  %v1349 = vld [vmem:[%s1345 + $0x18] sm:$0xff]
  %v1350 = vld [vmem:[%s1345 + $0x20] sm:$0xff]
  %v1351 = vld [vmem:[%s1345 + $0x28] sm:$0xff]
  %v1352 = vld [vmem:[%s1345 + $0x30] sm:$0x1]
  %v1354 = vsel %vm861, %v1352, 0
  %1356 = vmatprep.subr.mxu0 0.0
  %1357 = vmatpush1.msra.mxu0 %v1346
  %1358 = vmatprep.subr.mxu0 0.0
  %1359 = vmatpush1.msra.mxu0 %v1347
  %1360 = vmatprep.subr.mxu0 0.0
  %1361 = vmatpush1.msra.mxu0 %v1348
  %1362 = vmatprep.subr.mxu0 0.0
  %1363 = vmatpush1.msra.mxu0 %v1349
  %1364 = vmatprep.subr.mxu0 0.0
  %1365 = vmatpush1.msra.mxu0 %v1350
  %1366 = vmatprep.subr.mxu0 0.0
  %1367 = vmatpush1.msra.mxu0 %v1351
  %1368 = vmatprep.subr.mxu0 0.0
  %1369 = vmatpush1.msra.mxu0 %v1354
  %1370 = vmatprep.subr.mxu0 0.0
  %1371 = vmatpush1.msra.mxu0 0.0
  %1372 = vmatprep.subr.mxu0 0.0
  %1373 = vmatpush1.msra.mxu0 0.0
  %1374 = vmatprep.subr.mxu0 0.0
  %1375 = vmatpush1.msra.mxu0 0.0
  %1376 = vmatprep.subr.mxu0 0.0
  %1377 = vmatpush1.msra.mxu0 0.0
  %1378 = vmatprep.subr.mxu0 0.0
  %1379 = vmatpush1.msra.mxu0 0.0
  %1380 = vmatprep.subr.mxu0 0.0
  %1381 = vmatpush1.msra.mxu0 0.0
  %1382 = vmatprep.subr.mxu0 0.0
  %1383 = vmatpush1.msra.mxu0 0.0
  %1384 = vmatprep.subr.mxu0 0.0
  %1385 = vmatpush1.msra.mxu0 0.0
  %1386 = vmatprep.subr.mxu0 0.0
  %1387 = vmatpush1.msra.mxu0 0.0
  %1388 = vmatprep.subr.mxu0 0.0
  %1389 = vmatpush1.msra.mxu0 0.0
  %1390 = vmatprep.subr.mxu0 0.0
  %1391 = vmatpush1.msra.mxu0 0.0
  %1392 = vmatprep.subr.mxu0 0.0
  %1393 = vmatpush1.msra.mxu0 0.0
  %1394 = vmatprep.subr.mxu0 0.0
  %1395 = vmatpush1.msra.mxu0 0.0
  %1396 = vmatprep.subr.mxu0 0.0
  %1397 = vmatpush1.msra.mxu0 0.0
  %1398 = vmatprep.subr.mxu0 0.0
  %1399 = vmatpush1.msra.mxu0 0.0
  %1400 = vmatprep.subr.mxu0 0.0
  %1401 = vmatpush1.msra.mxu0 0.0
  %1402 = vmatprep.subr.mxu0 0.0
  %1403 = vmatpush1.msra.mxu0 0.0
  %1404 = vmatprep.subr.mxu0 0.0
  %1405 = vmatpush1.msra.mxu0 0.0
  %1406 = vmatprep.subr.mxu0 0.0
  %1407 = vmatpush1.msra.mxu0 0.0
  %1408 = vmatprep.subr.mxu0 0.0
  %1409 = vmatpush1.msra.mxu0 0.0
  %1410 = vmatprep.subr.mxu0 0.0
  %1411 = vmatpush1.msra.mxu0 0.0
  %1412 = vmatprep.subr.mxu0 0.0
  %1413 = vmatpush1.msra.mxu0 0.0
  %1414 = vmatprep.subr.mxu0 0.0
  %1415 = vmatpush1.msra.mxu0 0.0
  %1416 = vmatprep.subr.mxu0 0.0
  %1417 = vmatpush1.msra.mxu0 0.0
  %1418 = vmatprep.subr.mxu0 0.0
  %1419 = vmatpush1.msra.mxu0 0.0
  %1420 = vmatprep.mubr.f32.mxu0 0.0
  %1421 = vmatmul.mubr.f32.gmra.mrb[0].mxu0 %v814
  %v1422 = vpop.f32.mrb[0].mxu0
  %v1423 = vadd.f32 0.0, %v1422
  %v1424 = vpop.f32.mrb[0].mxu0
  %1425 = vmatprep.mubr.f32.mxu0 0.0
  %1426 = vmatmul.mubr.f32.gmra.mrb[0].mxu0 %v817
  %v1427 = vpop.f32.mrb[0].mxu0
  %v1428 = vadd.f32 0.0, %v1427
  %v1429 = vpop.f32.mrb[0].mxu0
  %1430 = vmatprep.mubr.f32.mxu0 0.0
  %1431 = vmatmul.mubr.f32.gmra.mrb[0].mxu0 %v820
  %v1432 = vpop.f32.mrb[0].mxu0
  %v1433 = vadd.f32 0.0, %v1432
  %v1434 = vpop.f32.mrb[0].mxu0
  %1435 = vmatprep.mubr.f32.mxu0 0.0
  %1436 = vmatmul.mubr.f32.gmra.mrb[0].mxu0 %v823
  %v1437 = vpop.f32.mrb[0].mxu0
  %v1438 = vadd.f32 0.0, %v1437
  %v1439 = vpop.f32.mrb[0].mxu0
  %1440 = vmatprep.mubr.f32.mxu0 0.0
  %1441 = vmatmul.mubr.f32.gmra.mrb[0].mxu0 %v826
  %v1442 = vpop.f32.mrb[0].mxu0
  %v1443 = vadd.f32 0.0, %v1442
  %v1444 = vpop.f32.mrb[0].mxu0
  %1445 = vmatprep.mubr.f32.mxu0 0.0
  %1446 = vmatmul.mubr.f32.gmra.mrb[0].mxu0 %v829
  %v1447 = vpop.f32.mrb[0].mxu0
  %v1448 = vadd.f32 0.0, %v1447
  %v1449 = vpop.f32.mrb[0].mxu0
  %1450 = vmatprep.mubr.f32.mxu0 0.0
  %1451 = vmatmul.mubr.f32.gmra.mrb[0].mxu0 %v832
  %v1452 = vpop.f32.mrb[0].mxu0
  %v1453 = vadd.f32 0.0, %v1452
  %v1454 = vpop.f32.mrb[0].mxu0
  %1455 = vmatprep.mubr.f32.mxu0 0.0
  %1456 = vmatmul.mubr.f32.gmra.mrb[0].mxu0 %v835
  %v1457 = vpop.f32.mrb[0].mxu0
  %v1458 = vadd.f32 0.0, %v1457
  %v1459 = vpop.f32.mrb[0].mxu0
  %1460 = vmatprep.mubr.f32.mxu0 0.0
  %1461 = vmatmul.mubr.f32.gmra.mrb[0].mxu0 %v838
  %v1462 = vpop.f32.mrb[0].mxu0
  %v1463 = vadd.f32 0.0, %v1462
  %v1464 = vpop.f32.mrb[0].mxu0
  %1465 = vmatprep.mubr.f32.mxu0 0.0
  %1466 = vmatmul.mubr.f32.gmra.mrb[0].mxu0 %v841
  %v1467 = vpop.f32.mrb[0].mxu0
  %v1468 = vadd.f32 0.0, %v1467
  %v1469 = vpop.f32.mrb[0].mxu0
  %1470 = vmatprep.mubr.f32.mxu0 0.0
  %1471 = vmatmul.mubr.f32.gmra.mrb[0].mxu0 %v844
  %v1472 = vpop.f32.mrb[0].mxu0
  %v1473 = vadd.f32 0.0, %v1472
  %v1474 = vpop.f32.mrb[0].mxu0
  %1475 = vmatprep.mubr.f32.mxu0 0.0
  %1476 = vmatmul.mubr.f32.gmra.mrb[0].mxu0 %v847
  %v1477 = vpop.f32.mrb[0].mxu0
  %v1478 = vadd.f32 0.0, %v1477
  %v1479 = vpop.f32.mrb[0].mxu0
  %1480 = vmatprep.mubr.f32.mxu0 0.0
  %1481 = vmatmul.mubr.f32.gmra.mrb[0].mxu0 %v850
  %v1482 = vpop.f32.mrb[0].mxu0
  %v1483 = vadd.f32 0.0, %v1482
  %v1484 = vpop.f32.mrb[0].mxu0
  %1485 = vmatprep.mubr.f32.mxu0 0.0
  %1486 = vmatmul.mubr.f32.gmra.mrb[0].mxu0 %v853
  %v1487 = vpop.f32.mrb[0].mxu0
  %v1488 = vadd.f32 0.0, %v1487
  %v1489 = vpop.f32.mrb[0].mxu0
  %1490 = vmatprep.mubr.f32.mxu0 0.0
  %1491 = vmatmul.mubr.f32.gmra.mrb[0].mxu0 %v856
  %v1492 = vpop.f32.mrb[0].mxu0
  %v1493 = vadd.f32 0.0, %v1492
  %v1494 = vpop.f32.mrb[0].mxu0
  %1495 = vmatprep.mubr.f32.mxu0 0.0
  %1496 = vmatmul.mubr.f32.gmra.mrb[0].mxu0 %v859
  %v1497 = vpop.f32.mrb[0].mxu0
  %v1498 = vadd.f32 0.0, %v1497
  %v1499 = vpop.f32.mrb[0].mxu0
  %1500 = vdwg.mxu0
  %s1501 = scalar_lea.vmem %s12, 64
  %v1502 = vld [vmem:[%s1501] sm:$0xff]
  %v1503 = vld [vmem:[%s1501 + $0x8] sm:$0xff]
  %v1504 = vld [vmem:[%s1501 + $0x10] sm:$0xff]
  %v1505 = vld [vmem:[%s1501 + $0x18] sm:$0xff]
  %1506 = vmatprep.subr.mxu0 0.0
  %1507 = vmatpush1.msra.mxu0 %v1423
  %1508 = vmatprep.subr.mxu0 0.0
  %1509 = vmatpush1.msra.mxu0 %v1428
  %1510 = vmatprep.subr.mxu0 0.0
  %1511 = vmatpush1.msra.mxu0 %v1433
  %1512 = vmatprep.subr.mxu0 0.0
  %1513 = vmatpush1.msra.mxu0 %v1438
  %1514 = vmatprep.subr.mxu0 0.0
  %1515 = vmatpush1.msra.mxu0 %v1443
  %1516 = vmatprep.subr.mxu0 0.0
  %1517 = vmatpush1.msra.mxu0 %v1448
  %1518 = vmatprep.subr.mxu0 0.0
  %1519 = vmatpush1.msra.mxu0 %v1453
  %1520 = vmatprep.subr.mxu0 0.0
  %1521 = vmatpush1.msra.mxu0 %v1458
  %1522 = vmatprep.subr.mxu0 0.0
  %1523 = vmatpush1.msra.mxu0 %v1463
  %1524 = vmatprep.subr.mxu0 0.0
  %1525 = vmatpush1.msra.mxu0 %v1468
  %1526 = vmatprep.subr.mxu0 0.0
  %1527 = vmatpush1.msra.mxu0 %v1473
  %1528 = vmatprep.subr.mxu0 0.0
  %1529 = vmatpush1.msra.mxu0 %v1478
  %1530 = vmatprep.subr.mxu0 0.0
  %1531 = vmatpush1.msra.mxu0 %v1483
  %1532 = vmatprep.subr.mxu0 0.0
  %1533 = vmatpush1.msra.mxu0 %v1488
  %1534 = vmatprep.subr.mxu0 0.0
  %1535 = vmatpush1.msra.mxu0 %v1493
  %1536 = vmatprep.subr.mxu0 0.0
  %1537 = vmatpush1.msra.mxu0 %v1498
  %1538 = vmatprep.subr.mxu0 0.0
  %1539 = vmatpush1.msra.mxu0 0.0
  %1540 = vmatprep.subr.mxu0 0.0
  %1541 = vmatpush1.msra.mxu0 0.0
  %1542 = vmatprep.subr.mxu0 0.0
  %1543 = vmatpush1.msra.mxu0 0.0
  %1544 = vmatprep.subr.mxu0 0.0
  %1545 = vmatpush1.msra.mxu0 0.0
  %1546 = vmatprep.subr.mxu0 0.0
  %1547 = vmatpush1.msra.mxu0 0.0
  %1548 = vmatprep.subr.mxu0 0.0
  %1549 = vmatpush1.msra.mxu0 0.0
  %1550 = vmatprep.subr.mxu0 0.0
  %1551 = vmatpush1.msra.mxu0 0.0
  %1552 = vmatprep.subr.mxu0 0.0
  %1553 = vmatpush1.msra.mxu0 0.0
  %1554 = vmatprep.subr.mxu0 0.0
  %1555 = vmatpush1.msra.mxu0 0.0
  %1556 = vmatprep.subr.mxu0 0.0
  %1557 = vmatpush1.msra.mxu0 0.0
  %1558 = vmatprep.subr.mxu0 0.0
  %1559 = vmatpush1.msra.mxu0 0.0
  %1560 = vmatprep.subr.mxu0 0.0
  %1561 = vmatpush1.msra.mxu0 0.0
  %1562 = vmatprep.subr.mxu0 0.0
  %1563 = vmatpush1.msra.mxu0 0.0
  %1564 = vmatprep.subr.mxu0 0.0
  %1565 = vmatpush1.msra.mxu0 0.0
  %1566 = vmatprep.subr.mxu0 0.0
  %1567 = vmatpush1.msra.mxu0 0.0
  %1568 = vmatprep.subr.mxu0 0.0
  %1569 = vmatpush1.msra.mxu0 0.0
  %1570 = vmatprep.mubr.f32.mxu0 0.0
  %1571 = vmatmul.mubr.f32.gmra.mrb[0].mxu0 %v1502
  %v1572 = vpop.f32.mrb[0].mxu0
  %v1573 = vadd.f32 0.0, %v1572
  %v1574 = vpop.f32.mrb[0].mxu0
  %1575 = vmatprep.mubr.f32.mxu0 0.0
  %1576 = vmatmul.mubr.f32.gmra.mrb[0].mxu0 %v1503
  %v1577 = vpop.f32.mrb[0].mxu0
  %v1578 = vadd.f32 0.0, %v1577
  %v1579 = vpop.f32.mrb[0].mxu0
  %1580 = vmatprep.mubr.f32.mxu0 0.0
  %1581 = vmatmul.mubr.f32.gmra.mrb[0].mxu0 %v1504
  %v1582 = vpop.f32.mrb[0].mxu0
  %v1583 = vadd.f32 0.0, %v1582
  %v1584 = vpop.f32.mrb[0].mxu0
  %1585 = vmatprep.mubr.f32.mxu0 0.0
  %1586 = vmatmul.mubr.f32.gmra.mrb[0].mxu0 %v1505
  %v1587 = vpop.f32.mrb[0].mxu0
  %v1588 = vadd.f32 0.0, %v1587
  %v1589 = vpop.f32.mrb[0].mxu0
  %1590 = vdwg.mxu0
  %v1591 = vadd.f32 %v1327, %v1573
  %v1592 = vadd.f32 %v1332, %v1578
  %v1593 = vadd.f32 %v1337, %v1583
  %v1594 = vadd.f32 %v1342, %v1588
  %s1595 = scalar_lea.vmem %s13, 168
  %v1596 = vld [vmem:[%s1595] sm:$0xff]
  %v1597 = vld [vmem:[%s1595 + $0x8] sm:$0xff]
  %v1598 = vld [vmem:[%s1595 + $0x10] sm:$0xff]
  %v1599 = vld [vmem:[%s1595 + $0x18] sm:$0xff]
  %v1600 = vld [vmem:[%s1595 + $0x20] sm:$0xff]
  %v1601 = vld [vmem:[%s1595 + $0x28] sm:$0xff]
  %v1602 = vld [vmem:[%s1595 + $0x30] sm:$0x1]
  %v1604 = vsel %vm861, %v1602, 0
  %1606 = vmatprep.subr.mxu0 0.0
  %1607 = vmatpush1.msra.mxu0 %v1596
  %1608 = vmatprep.subr.mxu0 0.0
  %1609 = vmatpush1.msra.mxu0 %v1597
  %1610 = vmatprep.subr.mxu0 0.0
  %1611 = vmatpush1.msra.mxu0 %v1598
  %1612 = vmatprep.subr.mxu0 0.0
  %1613 = vmatpush1.msra.mxu0 %v1599
  %1614 = vmatprep.subr.mxu0 0.0
  %1615 = vmatpush1.msra.mxu0 %v1600
  %1616 = vmatprep.subr.mxu0 0.0
  %1617 = vmatpush1.msra.mxu0 %v1601
  %1618 = vmatprep.subr.mxu0 0.0
  %1619 = vmatpush1.msra.mxu0 %v1604
  %1620 = vmatprep.subr.mxu0 0.0
  %1621 = vmatpush1.msra.mxu0 0.0
  %1622 = vmatprep.subr.mxu0 0.0
  %1623 = vmatpush1.msra.mxu0 0.0
  %1624 = vmatprep.subr.mxu0 0.0
  %1625 = vmatpush1.msra.mxu0 0.0
  %1626 = vmatprep.subr.mxu0 0.0
  %1627 = vmatpush1.msra.mxu0 0.0
  %1628 = vmatprep.subr.mxu0 0.0
  %1629 = vmatpush1.msra.mxu0 0.0
  %1630 = vmatprep.subr.mxu0 0.0
  %1631 = vmatpush1.msra.mxu0 0.0
  %1632 = vmatprep.subr.mxu0 0.0
  %1633 = vmatpush1.msra.mxu0 0.0
  %1634 = vmatprep.subr.mxu0 0.0
  %1635 = vmatpush1.msra.mxu0 0.0
  %1636 = vmatprep.subr.mxu0 0.0
  %1637 = vmatpush1.msra.mxu0 0.0
  %1638 = vmatprep.subr.mxu0 0.0
  %1639 = vmatpush1.msra.mxu0 0.0
  %1640 = vmatprep.subr.mxu0 0.0
  %1641 = vmatpush1.msra.mxu0 0.0
  %1642 = vmatprep.subr.mxu0 0.0
  %1643 = vmatpush1.msra.mxu0 0.0
  %1644 = vmatprep.subr.mxu0 0.0
  %1645 = vmatpush1.msra.mxu0 0.0
  %1646 = vmatprep.subr.mxu0 0.0
  %1647 = vmatpush1.msra.mxu0 0.0
  %1648 = vmatprep.subr.mxu0 0.0
  %1649 = vmatpush1.msra.mxu0 0.0
  %1650 = vmatprep.subr.mxu0 0.0
  %1651 = vmatpush1.msra.mxu0 0.0
  %1652 = vmatprep.subr.mxu0 0.0
  %1653 = vmatpush1.msra.mxu0 0.0
  %1654 = vmatprep.subr.mxu0 0.0
  %1655 = vmatpush1.msra.mxu0 0.0
  %1656 = vmatprep.subr.mxu0 0.0
  %1657 = vmatpush1.msra.mxu0 0.0
  %1658 = vmatprep.subr.mxu0 0.0
  %1659 = vmatpush1.msra.mxu0 0.0
  %1660 = vmatprep.subr.mxu0 0.0
  %1661 = vmatpush1.msra.mxu0 0.0
  %1662 = vmatprep.subr.mxu0 0.0
  %1663 = vmatpush1.msra.mxu0 0.0
  %1664 = vmatprep.subr.mxu0 0.0
  %1665 = vmatpush1.msra.mxu0 0.0
  %1666 = vmatprep.subr.mxu0 0.0
  %1667 = vmatpush1.msra.mxu0 0.0
  %1668 = vmatprep.subr.mxu0 0.0
  %1669 = vmatpush1.msra.mxu0 0.0
  %1670 = vmatprep.mubr.f32.mxu0 0.0
  %1671 = vmatmul.mubr.f32.gmra.mrb[0].mxu0 %v814
  %v1672 = vpop.f32.mrb[0].mxu0
  %v1673 = vadd.f32 0.0, %v1672
  %v1674 = vpop.f32.mrb[0].mxu0
  %1675 = vmatprep.mubr.f32.mxu0 0.0
  %1676 = vmatmul.mubr.f32.gmra.mrb[0].mxu0 %v817
  %v1677 = vpop.f32.mrb[0].mxu0
  %v1678 = vadd.f32 0.0, %v1677
  %v1679 = vpop.f32.mrb[0].mxu0
  %1680 = vmatprep.mubr.f32.mxu0 0.0
  %1681 = vmatmul.mubr.f32.gmra.mrb[0].mxu0 %v820
  %v1682 = vpop.f32.mrb[0].mxu0
  %v1683 = vadd.f32 0.0, %v1682
  %v1684 = vpop.f32.mrb[0].mxu0
  %1685 = vmatprep.mubr.f32.mxu0 0.0
  %1686 = vmatmul.mubr.f32.gmra.mrb[0].mxu0 %v823
  %v1687 = vpop.f32.mrb[0].mxu0
  %v1688 = vadd.f32 0.0, %v1687
  %v1689 = vpop.f32.mrb[0].mxu0
  %1690 = vmatprep.mubr.f32.mxu0 0.0
  %1691 = vmatmul.mubr.f32.gmra.mrb[0].mxu0 %v826
  %v1692 = vpop.f32.mrb[0].mxu0
  %v1693 = vadd.f32 0.0, %v1692
  %v1694 = vpop.f32.mrb[0].mxu0
  %1695 = vmatprep.mubr.f32.mxu0 0.0
  %1696 = vmatmul.mubr.f32.gmra.mrb[0].mxu0 %v829
  %v1697 = vpop.f32.mrb[0].mxu0
  %v1698 = vadd.f32 0.0, %v1697
  %v1699 = vpop.f32.mrb[0].mxu0
  %1700 = vmatprep.mubr.f32.mxu0 0.0
  %1701 = vmatmul.mubr.f32.gmra.mrb[0].mxu0 %v832
  %v1702 = vpop.f32.mrb[0].mxu0
  %v1703 = vadd.f32 0.0, %v1702
  %v1704 = vpop.f32.mrb[0].mxu0
  %1705 = vmatprep.mubr.f32.mxu0 0.0
  %1706 = vmatmul.mubr.f32.gmra.mrb[0].mxu0 %v835
  %v1707 = vpop.f32.mrb[0].mxu0
  %v1708 = vadd.f32 0.0, %v1707
  %v1709 = vpop.f32.mrb[0].mxu0
  %1710 = vmatprep.mubr.f32.mxu0 0.0
  %1711 = vmatmul.mubr.f32.gmra.mrb[0].mxu0 %v838
  %v1712 = vpop.f32.mrb[0].mxu0
  %v1713 = vadd.f32 0.0, %v1712
  %v1714 = vpop.f32.mrb[0].mxu0
  %1715 = vmatprep.mubr.f32.mxu0 0.0
  %1716 = vmatmul.mubr.f32.gmra.mrb[0].mxu0 %v841
  %v1717 = vpop.f32.mrb[0].mxu0
  %v1718 = vadd.f32 0.0, %v1717
  %v1719 = vpop.f32.mrb[0].mxu0
  %1720 = vmatprep.mubr.f32.mxu0 0.0
  %1721 = vmatmul.mubr.f32.gmra.mrb[0].mxu0 %v844
  %v1722 = vpop.f32.mrb[0].mxu0
  %v1723 = vadd.f32 0.0, %v1722
  %v1724 = vpop.f32.mrb[0].mxu0
  %1725 = vmatprep.mubr.f32.mxu0 0.0
  %1726 = vmatmul.mubr.f32.gmra.mrb[0].mxu0 %v847
  %v1727 = vpop.f32.mrb[0].mxu0
  %v1728 = vadd.f32 0.0, %v1727
  %v1729 = vpop.f32.mrb[0].mxu0
  %1730 = vmatprep.mubr.f32.mxu0 0.0
  %1731 = vmatmul.mubr.f32.gmra.mrb[0].mxu0 %v850
  %v1732 = vpop.f32.mrb[0].mxu0
  %v1733 = vadd.f32 0.0, %v1732
  %v1734 = vpop.f32.mrb[0].mxu0
  %1735 = vmatprep.mubr.f32.mxu0 0.0
  %1736 = vmatmul.mubr.f32.gmra.mrb[0].mxu0 %v853
  %v1737 = vpop.f32.mrb[0].mxu0
  %v1738 = vadd.f32 0.0, %v1737
  %v1739 = vpop.f32.mrb[0].mxu0
  %1740 = vmatprep.mubr.f32.mxu0 0.0
  %1741 = vmatmul.mubr.f32.gmra.mrb[0].mxu0 %v856
  %v1742 = vpop.f32.mrb[0].mxu0
  %v1743 = vadd.f32 0.0, %v1742
  %v1744 = vpop.f32.mrb[0].mxu0
  %1745 = vmatprep.mubr.f32.mxu0 0.0
  %1746 = vmatmul.mubr.f32.gmra.mrb[0].mxu0 %v859
  %v1747 = vpop.f32.mrb[0].mxu0
  %v1748 = vadd.f32 0.0, %v1747
  %v1749 = vpop.f32.mrb[0].mxu0
  %1750 = vdwg.mxu0
  %s1751 = scalar_lea.vmem %s12, 96
  %v1752 = vld [vmem:[%s1751] sm:$0xff]
  %v1753 = vld [vmem:[%s1751 + $0x8] sm:$0xff]
  %v1754 = vld [vmem:[%s1751 + $0x10] sm:$0xff]
  %v1755 = vld [vmem:[%s1751 + $0x18] sm:$0xff]
  %1756 = vmatprep.subr.mxu0 0.0
  %1757 = vmatpush1.msra.mxu0 %v1673
  %1758 = vmatprep.subr.mxu0 0.0
  %1759 = vmatpush1.msra.mxu0 %v1678
  %1760 = vmatprep.subr.mxu0 0.0
  %1761 = vmatpush1.msra.mxu0 %v1683
  %1762 = vmatprep.subr.mxu0 0.0
  %1763 = vmatpush1.msra.mxu0 %v1688
  %1764 = vmatprep.subr.mxu0 0.0
  %1765 = vmatpush1.msra.mxu0 %v1693
  %1766 = vmatprep.subr.mxu0 0.0
  %1767 = vmatpush1.msra.mxu0 %v1698
  %1768 = vmatprep.subr.mxu0 0.0
  %1769 = vmatpush1.msra.mxu0 %v1703
  %1770 = vmatprep.subr.mxu0 0.0
  %1771 = vmatpush1.msra.mxu0 %v1708
  %1772 = vmatprep.subr.mxu0 0.0
  %1773 = vmatpush1.msra.mxu0 %v1713
  %1774 = vmatprep.subr.mxu0 0.0
  %1775 = vmatpush1.msra.mxu0 %v1718
  %1776 = vmatprep.subr.mxu0 0.0
  %1777 = vmatpush1.msra.mxu0 %v1723
  %1778 = vmatprep.subr.mxu0 0.0
  %1779 = vmatpush1.msra.mxu0 %v1728
  %1780 = vmatprep.subr.mxu0 0.0
  %1781 = vmatpush1.msra.mxu0 %v1733
  %1782 = vmatprep.subr.mxu0 0.0
  %1783 = vmatpush1.msra.mxu0 %v1738
  %1784 = vmatprep.subr.mxu0 0.0
  %1785 = vmatpush1.msra.mxu0 %v1743
  %1786 = vmatprep.subr.mxu0 0.0
  %1787 = vmatpush1.msra.mxu0 %v1748
  %1788 = vmatprep.subr.mxu0 0.0
  %1789 = vmatpush1.msra.mxu0 0.0
  %1790 = vmatprep.subr.mxu0 0.0
  %1791 = vmatpush1.msra.mxu0 0.0
  %1792 = vmatprep.subr.mxu0 0.0
  %1793 = vmatpush1.msra.mxu0 0.0
  %1794 = vmatprep.subr.mxu0 0.0
  %1795 = vmatpush1.msra.mxu0 0.0
  %1796 = vmatprep.subr.mxu0 0.0
  %1797 = vmatpush1.msra.mxu0 0.0
  %1798 = vmatprep.subr.mxu0 0.0
  %1799 = vmatpush1.msra.mxu0 0.0
  %1800 = vmatprep.subr.mxu0 0.0
  %1801 = vmatpush1.msra.mxu0 0.0
  %1802 = vmatprep.subr.mxu0 0.0
  %1803 = vmatpush1.msra.mxu0 0.0
  %1804 = vmatprep.subr.mxu0 0.0
  %1805 = vmatpush1.msra.mxu0 0.0
  %1806 = vmatprep.subr.mxu0 0.0
  %1807 = vmatpush1.msra.mxu0 0.0
  %1808 = vmatprep.subr.mxu0 0.0
  %1809 = vmatpush1.msra.mxu0 0.0
  %1810 = vmatprep.subr.mxu0 0.0
  %1811 = vmatpush1.msra.mxu0 0.0
  %1812 = vmatprep.subr.mxu0 0.0
  %1813 = vmatpush1.msra.mxu0 0.0
  %1814 = vmatprep.subr.mxu0 0.0
  %1815 = vmatpush1.msra.mxu0 0.0
  %1816 = vmatprep.subr.mxu0 0.0
  %1817 = vmatpush1.msra.mxu0 0.0
  %1818 = vmatprep.subr.mxu0 0.0
  %1819 = vmatpush1.msra.mxu0 0.0
  %1820 = vmatprep.mubr.f32.mxu0 0.0
  %1821 = vmatmul.mubr.f32.gmra.mrb[0].mxu0 %v1752
  %v1822 = vpop.f32.mrb[0].mxu0
  %v1823 = vadd.f32 0.0, %v1822
  %v1824 = vpop.f32.mrb[0].mxu0
  %1825 = vmatprep.mubr.f32.mxu0 0.0
  %1826 = vmatmul.mubr.f32.gmra.mrb[0].mxu0 %v1753
  %v1827 = vpop.f32.mrb[0].mxu0
  %v1828 = vadd.f32 0.0, %v1827
  %v1829 = vpop.f32.mrb[0].mxu0
  %1830 = vmatprep.mubr.f32.mxu0 0.0
  %1831 = vmatmul.mubr.f32.gmra.mrb[0].mxu0 %v1754
  %v1832 = vpop.f32.mrb[0].mxu0
  %v1833 = vadd.f32 0.0, %v1832
  %v1834 = vpop.f32.mrb[0].mxu0
  %1835 = vmatprep.mubr.f32.mxu0 0.0
  %1836 = vmatmul.mubr.f32.gmra.mrb[0].mxu0 %v1755
  %v1837 = vpop.f32.mrb[0].mxu0
  %v1838 = vadd.f32 0.0, %v1837
  %v1839 = vpop.f32.mrb[0].mxu0
  %1840 = vdwg.mxu0
  %v1841 = vadd.f32 %v1591, %v1823
  %v1842 = vadd.f32 %v1592, %v1828
  %v1843 = vadd.f32 %v1593, %v1833
  %v1844 = vadd.f32 %v1594, %v1838
  %s1845 = scalar_lea.vmem %s13, 224
  %v1846 = vld [vmem:[%s1845] sm:$0xff]
  %v1847 = vld [vmem:[%s1845 + $0x8] sm:$0xff]
  %v1848 = vld [vmem:[%s1845 + $0x10] sm:$0xff]
  %v1849 = vld [vmem:[%s1845 + $0x18] sm:$0xff]
  %v1850 = vld [vmem:[%s1845 + $0x20] sm:$0xff]
  %v1851 = vld [vmem:[%s1845 + $0x28] sm:$0xff]
  %v1852 = vld [vmem:[%s1845 + $0x30] sm:$0x1]
  %v1854 = vsel %vm861, %v1852, 0
  %1856 = vmatprep.subr.mxu0 0.0
  %1857 = vmatpush1.msra.mxu0 %v1846
  %1858 = vmatprep.subr.mxu0 0.0
  %1859 = vmatpush1.msra.mxu0 %v1847
  %1860 = vmatprep.subr.mxu0 0.0
  %1861 = vmatpush1.msra.mxu0 %v1848
  %1862 = vmatprep.subr.mxu0 0.0
  %1863 = vmatpush1.msra.mxu0 %v1849
  %1864 = vmatprep.subr.mxu0 0.0
  %1865 = vmatpush1.msra.mxu0 %v1850
  %1866 = vmatprep.subr.mxu0 0.0
  %1867 = vmatpush1.msra.mxu0 %v1851
  %1868 = vmatprep.subr.mxu0 0.0
  %1869 = vmatpush1.msra.mxu0 %v1854
  %1870 = vmatprep.subr.mxu0 0.0
  %1871 = vmatpush1.msra.mxu0 0.0
  %1872 = vmatprep.subr.mxu0 0.0
  %1873 = vmatpush1.msra.mxu0 0.0
  %1874 = vmatprep.subr.mxu0 0.0
  %1875 = vmatpush1.msra.mxu0 0.0
  %1876 = vmatprep.subr.mxu0 0.0
  %1877 = vmatpush1.msra.mxu0 0.0
  %1878 = vmatprep.subr.mxu0 0.0
  %1879 = vmatpush1.msra.mxu0 0.0
  %1880 = vmatprep.subr.mxu0 0.0
  %1881 = vmatpush1.msra.mxu0 0.0
  %1882 = vmatprep.subr.mxu0 0.0
  %1883 = vmatpush1.msra.mxu0 0.0
  %1884 = vmatprep.subr.mxu0 0.0
  %1885 = vmatpush1.msra.mxu0 0.0
  %1886 = vmatprep.subr.mxu0 0.0
  %1887 = vmatpush1.msra.mxu0 0.0
  %1888 = vmatprep.subr.mxu0 0.0
  %1889 = vmatpush1.msra.mxu0 0.0
  %1890 = vmatprep.subr.mxu0 0.0
  %1891 = vmatpush1.msra.mxu0 0.0
  %1892 = vmatprep.subr.mxu0 0.0
  %1893 = vmatpush1.msra.mxu0 0.0
  %1894 = vmatprep.subr.mxu0 0.0
  %1895 = vmatpush1.msra.mxu0 0.0
  %1896 = vmatprep.subr.mxu0 0.0
  %1897 = vmatpush1.msra.mxu0 0.0
  %1898 = vmatprep.subr.mxu0 0.0
  %1899 = vmatpush1.msra.mxu0 0.0
  %1900 = vmatprep.subr.mxu0 0.0
  %1901 = vmatpush1.msra.mxu0 0.0
  %1902 = vmatprep.subr.mxu0 0.0
  %1903 = vmatpush1.msra.mxu0 0.0
  %1904 = vmatprep.subr.mxu0 0.0
  %1905 = vmatpush1.msra.mxu0 0.0
  %1906 = vmatprep.subr.mxu0 0.0
  %1907 = vmatpush1.msra.mxu0 0.0
  %1908 = vmatprep.subr.mxu0 0.0
  %1909 = vmatpush1.msra.mxu0 0.0
  %1910 = vmatprep.subr.mxu0 0.0
  %1911 = vmatpush1.msra.mxu0 0.0
  %1912 = vmatprep.subr.mxu0 0.0
  %1913 = vmatpush1.msra.mxu0 0.0
  %1914 = vmatprep.subr.mxu0 0.0
  %1915 = vmatpush1.msra.mxu0 0.0
  %1916 = vmatprep.subr.mxu0 0.0
  %1917 = vmatpush1.msra.mxu0 0.0
  %1918 = vmatprep.subr.mxu0 0.0
  %1919 = vmatpush1.msra.mxu0 0.0
  %1920 = vmatprep.mubr.f32.mxu0 0.0
  %1921 = vmatmul.mubr.f32.gmra.mrb[0].mxu0 %v814
  %v1922 = vpop.f32.mrb[0].mxu0
  %v1923 = vadd.f32 0.0, %v1922
  %v1924 = vpop.f32.mrb[0].mxu0
  %1925 = vmatprep.mubr.f32.mxu0 0.0
  %1926 = vmatmul.mubr.f32.gmra.mrb[0].mxu0 %v817
  %v1927 = vpop.f32.mrb[0].mxu0
  %v1928 = vadd.f32 0.0, %v1927
  %v1929 = vpop.f32.mrb[0].mxu0
  %1930 = vmatprep.mubr.f32.mxu0 0.0
  %1931 = vmatmul.mubr.f32.gmra.mrb[0].mxu0 %v820
  %v1932 = vpop.f32.mrb[0].mxu0
  %v1933 = vadd.f32 0.0, %v1932
  %v1934 = vpop.f32.mrb[0].mxu0
  %1935 = vmatprep.mubr.f32.mxu0 0.0
  %1936 = vmatmul.mubr.f32.gmra.mrb[0].mxu0 %v823
  %v1937 = vpop.f32.mrb[0].mxu0
  %v1938 = vadd.f32 0.0, %v1937
  %v1939 = vpop.f32.mrb[0].mxu0
  %1940 = vmatprep.mubr.f32.mxu0 0.0
  %1941 = vmatmul.mubr.f32.gmra.mrb[0].mxu0 %v826
  %v1942 = vpop.f32.mrb[0].mxu0
  %v1943 = vadd.f32 0.0, %v1942
  %v1944 = vpop.f32.mrb[0].mxu0
  %1945 = vmatprep.mubr.f32.mxu0 0.0
  %1946 = vmatmul.mubr.f32.gmra.mrb[0].mxu0 %v829
  %v1947 = vpop.f32.mrb[0].mxu0
  %v1948 = vadd.f32 0.0, %v1947
  %v1949 = vpop.f32.mrb[0].mxu0
  %1950 = vmatprep.mubr.f32.mxu0 0.0
  %1951 = vmatmul.mubr.f32.gmra.mrb[0].mxu0 %v832
  %v1952 = vpop.f32.mrb[0].mxu0
  %v1953 = vadd.f32 0.0, %v1952
  %v1954 = vpop.f32.mrb[0].mxu0
  %1955 = vmatprep.mubr.f32.mxu0 0.0
  %1956 = vmatmul.mubr.f32.gmra.mrb[0].mxu0 %v835
  %v1957 = vpop.f32.mrb[0].mxu0
  %v1958 = vadd.f32 0.0, %v1957
  %v1959 = vpop.f32.mrb[0].mxu0
  %1960 = vmatprep.mubr.f32.mxu0 0.0
  %1961 = vmatmul.mubr.f32.gmra.mrb[0].mxu0 %v838
  %v1962 = vpop.f32.mrb[0].mxu0
  %v1963 = vadd.f32 0.0, %v1962
  %v1964 = vpop.f32.mrb[0].mxu0
  %1965 = vmatprep.mubr.f32.mxu0 0.0
  %1966 = vmatmul.mubr.f32.gmra.mrb[0].mxu0 %v841
  %v1967 = vpop.f32.mrb[0].mxu0
  %v1968 = vadd.f32 0.0, %v1967
  %v1969 = vpop.f32.mrb[0].mxu0
  %1970 = vmatprep.mubr.f32.mxu0 0.0
  %1971 = vmatmul.mubr.f32.gmra.mrb[0].mxu0 %v844
  %v1972 = vpop.f32.mrb[0].mxu0
  %v1973 = vadd.f32 0.0, %v1972
  %v1974 = vpop.f32.mrb[0].mxu0
  %1975 = vmatprep.mubr.f32.mxu0 0.0
  %1976 = vmatmul.mubr.f32.gmra.mrb[0].mxu0 %v847
  %v1977 = vpop.f32.mrb[0].mxu0
  %v1978 = vadd.f32 0.0, %v1977
  %v1979 = vpop.f32.mrb[0].mxu0
  %1980 = vmatprep.mubr.f32.mxu0 0.0
  %1981 = vmatmul.mubr.f32.gmra.mrb[0].mxu0 %v850
  %v1982 = vpop.f32.mrb[0].mxu0
  %v1983 = vadd.f32 0.0, %v1982
  %v1984 = vpop.f32.mrb[0].mxu0
  %1985 = vmatprep.mubr.f32.mxu0 0.0
  %1986 = vmatmul.mubr.f32.gmra.mrb[0].mxu0 %v853
  %v1987 = vpop.f32.mrb[0].mxu0
  %v1988 = vadd.f32 0.0, %v1987
  %v1989 = vpop.f32.mrb[0].mxu0
  %1990 = vmatprep.mubr.f32.mxu0 0.0
  %1991 = vmatmul.mubr.f32.gmra.mrb[0].mxu0 %v856
  %v1992 = vpop.f32.mrb[0].mxu0
  %v1993 = vadd.f32 0.0, %v1992
  %v1994 = vpop.f32.mrb[0].mxu0
  %1995 = vmatprep.mubr.f32.mxu0 0.0
  %1996 = vmatmul.mubr.f32.gmra.mrb[0].mxu0 %v859
  %v1997 = vpop.f32.mrb[0].mxu0
  %v1998 = vadd.f32 0.0, %v1997
  %v1999 = vpop.f32.mrb[0].mxu0
  %2000 = vdwg.mxu0
  %s2001 = scalar_lea.vmem %s12, 128
  %v2002 = vld [vmem:[%s2001] sm:$0xff]
  %v2003 = vld [vmem:[%s2001 + $0x8] sm:$0xff]
  %v2004 = vld [vmem:[%s2001 + $0x10] sm:$0xff]
  %v2005 = vld [vmem:[%s2001 + $0x18] sm:$0xff]
  %2006 = vmatprep.subr.mxu0 0.0
  %2007 = vmatpush1.msra.mxu0 %v1923
  %2008 = vmatprep.subr.mxu0 0.0
  %2009 = vmatpush1.msra.mxu0 %v1928
  %2010 = vmatprep.subr.mxu0 0.0
  %2011 = vmatpush1.msra.mxu0 %v1933
  %2012 = vmatprep.subr.mxu0 0.0
  %2013 = vmatpush1.msra.mxu0 %v1938
  %2014 = vmatprep.subr.mxu0 0.0
  %2015 = vmatpush1.msra.mxu0 %v1943
  %2016 = vmatprep.subr.mxu0 0.0
  %2017 = vmatpush1.msra.mxu0 %v1948
  %2018 = vmatprep.subr.mxu0 0.0
  %2019 = vmatpush1.msra.mxu0 %v1953
  %2020 = vmatprep.subr.mxu0 0.0
  %2021 = vmatpush1.msra.mxu0 %v1958
  %2022 = vmatprep.subr.mxu0 0.0
  %2023 = vmatpush1.msra.mxu0 %v1963
  %2024 = vmatprep.subr.mxu0 0.0
  %2025 = vmatpush1.msra.mxu0 %v1968
  %2026 = vmatprep.subr.mxu0 0.0
  %2027 = vmatpush1.msra.mxu0 %v1973
  %2028 = vmatprep.subr.mxu0 0.0
  %2029 = vmatpush1.msra.mxu0 %v1978
  %2030 = vmatprep.subr.mxu0 0.0
  %2031 = vmatpush1.msra.mxu0 %v1983
  %2032 = vmatprep.subr.mxu0 0.0
  %2033 = vmatpush1.msra.mxu0 %v1988
  %2034 = vmatprep.subr.mxu0 0.0
  %2035 = vmatpush1.msra.mxu0 %v1993
  %2036 = vmatprep.subr.mxu0 0.0
  %2037 = vmatpush1.msra.mxu0 %v1998
  %2038 = vmatprep.subr.mxu0 0.0
  %2039 = vmatpush1.msra.mxu0 0.0
  %2040 = vmatprep.subr.mxu0 0.0
  %2041 = vmatpush1.msra.mxu0 0.0
  %2042 = vmatprep.subr.mxu0 0.0
  %2043 = vmatpush1.msra.mxu0 0.0
  %2044 = vmatprep.subr.mxu0 0.0
  %2045 = vmatpush1.msra.mxu0 0.0
  %2046 = vmatprep.subr.mxu0 0.0
  %2047 = vmatpush1.msra.mxu0 0.0
  %2048 = vmatprep.subr.mxu0 0.0
  %2049 = vmatpush1.msra.mxu0 0.0
  %2050 = vmatprep.subr.mxu0 0.0
  %2051 = vmatpush1.msra.mxu0 0.0
  %2052 = vmatprep.subr.mxu0 0.0
  %2053 = vmatpush1.msra.mxu0 0.0
  %2054 = vmatprep.subr.mxu0 0.0
  %2055 = vmatpush1.msra.mxu0 0.0
  %2056 = vmatprep.subr.mxu0 0.0
  %2057 = vmatpush1.msra.mxu0 0.0
  %2058 = vmatprep.subr.mxu0 0.0
  %2059 = vmatpush1.msra.mxu0 0.0
  %2060 = vmatprep.subr.mxu0 0.0
  %2061 = vmatpush1.msra.mxu0 0.0
  %2062 = vmatprep.subr.mxu0 0.0
  %2063 = vmatpush1.msra.mxu0 0.0
  %2064 = vmatprep.subr.mxu0 0.0
  %2065 = vmatpush1.msra.mxu0 0.0
  %2066 = vmatprep.subr.mxu0 0.0
  %2067 = vmatpush1.msra.mxu0 0.0
  %2068 = vmatprep.subr.mxu0 0.0
  %2069 = vmatpush1.msra.mxu0 0.0
  %2070 = vmatprep.mubr.f32.mxu0 0.0
  %2071 = vmatmul.mubr.f32.gmra.mrb[0].mxu0 %v2002
  %v2072 = vpop.f32.mrb[0].mxu0
  %v2073 = vadd.f32 0.0, %v2072
  %v2074 = vpop.f32.mrb[0].mxu0
  %2075 = vmatprep.mubr.f32.mxu0 0.0
  %2076 = vmatmul.mubr.f32.gmra.mrb[0].mxu0 %v2003
  %v2077 = vpop.f32.mrb[0].mxu0
  %v2078 = vadd.f32 0.0, %v2077
  %v2079 = vpop.f32.mrb[0].mxu0
  %2080 = vmatprep.mubr.f32.mxu0 0.0
  %2081 = vmatmul.mubr.f32.gmra.mrb[0].mxu0 %v2004
  %v2082 = vpop.f32.mrb[0].mxu0
  %v2083 = vadd.f32 0.0, %v2082
  %v2084 = vpop.f32.mrb[0].mxu0
  %2085 = vmatprep.mubr.f32.mxu0 0.0
  %2086 = vmatmul.mubr.f32.gmra.mrb[0].mxu0 %v2005
  %v2087 = vpop.f32.mrb[0].mxu0
  %v2088 = vadd.f32 0.0, %v2087
  %v2089 = vpop.f32.mrb[0].mxu0
  %2090 = vdwg.mxu0
  %v2091 = vadd.f32 %v1841, %v2073
  %v2092 = vadd.f32 %v1842, %v2078
  %v2093 = vadd.f32 %v1843, %v2083
  %v2094 = vadd.f32 %v1844, %v2088
  %s2095 = scalar_lea.vmem %s13, 280
  %v2096 = vld [vmem:[%s2095] sm:$0xff]
  %v2097 = vld [vmem:[%s2095 + $0x8] sm:$0xff]
  %v2098 = vld [vmem:[%s2095 + $0x10] sm:$0xff]
  %v2099 = vld [vmem:[%s2095 + $0x18] sm:$0xff]
  %v2100 = vld [vmem:[%s2095 + $0x20] sm:$0xff]
  %v2101 = vld [vmem:[%s2095 + $0x28] sm:$0xff]
  %v2102 = vld [vmem:[%s2095 + $0x30] sm:$0x1]
  %v2104 = vsel %vm861, %v2102, 0
  %2106 = vmatprep.subr.mxu0 0.0
  %2107 = vmatpush1.msra.mxu0 %v2096
  %2108 = vmatprep.subr.mxu0 0.0
  %2109 = vmatpush1.msra.mxu0 %v2097
  %2110 = vmatprep.subr.mxu0 0.0
  %2111 = vmatpush1.msra.mxu0 %v2098
  %2112 = vmatprep.subr.mxu0 0.0
  %2113 = vmatpush1.msra.mxu0 %v2099
  %2114 = vmatprep.subr.mxu0 0.0
  %2115 = vmatpush1.msra.mxu0 %v2100
  %2116 = vmatprep.subr.mxu0 0.0
  %2117 = vmatpush1.msra.mxu0 %v2101
  %2118 = vmatprep.subr.mxu0 0.0
  %2119 = vmatpush1.msra.mxu0 %v2104
  %2120 = vmatprep.subr.mxu0 0.0
  %2121 = vmatpush1.msra.mxu0 0.0
  %2122 = vmatprep.subr.mxu0 0.0
  %2123 = vmatpush1.msra.mxu0 0.0
  %2124 = vmatprep.subr.mxu0 0.0
  %2125 = vmatpush1.msra.mxu0 0.0
  %2126 = vmatprep.subr.mxu0 0.0
  %2127 = vmatpush1.msra.mxu0 0.0
  %2128 = vmatprep.subr.mxu0 0.0
  %2129 = vmatpush1.msra.mxu0 0.0
  %2130 = vmatprep.subr.mxu0 0.0
  %2131 = vmatpush1.msra.mxu0 0.0
  %2132 = vmatprep.subr.mxu0 0.0
  %2133 = vmatpush1.msra.mxu0 0.0
  %2134 = vmatprep.subr.mxu0 0.0
  %2135 = vmatpush1.msra.mxu0 0.0
  %2136 = vmatprep.subr.mxu0 0.0
  %2137 = vmatpush1.msra.mxu0 0.0
  %2138 = vmatprep.subr.mxu0 0.0
  %2139 = vmatpush1.msra.mxu0 0.0
  %2140 = vmatprep.subr.mxu0 0.0
  %2141 = vmatpush1.msra.mxu0 0.0
  %2142 = vmatprep.subr.mxu0 0.0
  %2143 = vmatpush1.msra.mxu0 0.0
  %2144 = vmatprep.subr.mxu0 0.0
  %2145 = vmatpush1.msra.mxu0 0.0
  %2146 = vmatprep.subr.mxu0 0.0
  %2147 = vmatpush1.msra.mxu0 0.0
  %2148 = vmatprep.subr.mxu0 0.0
  %2149 = vmatpush1.msra.mxu0 0.0
  %2150 = vmatprep.subr.mxu0 0.0
  %2151 = vmatpush1.msra.mxu0 0.0
  %2152 = vmatprep.subr.mxu0 0.0
  %2153 = vmatpush1.msra.mxu0 0.0
  %2154 = vmatprep.subr.mxu0 0.0
  %2155 = vmatpush1.msra.mxu0 0.0
  %2156 = vmatprep.subr.mxu0 0.0
  %2157 = vmatpush1.msra.mxu0 0.0
  %2158 = vmatprep.subr.mxu0 0.0
  %2159 = vmatpush1.msra.mxu0 0.0
  %2160 = vmatprep.subr.mxu0 0.0
  %2161 = vmatpush1.msra.mxu0 0.0
  %2162 = vmatprep.subr.mxu0 0.0
  %2163 = vmatpush1.msra.mxu0 0.0
  %2164 = vmatprep.subr.mxu0 0.0
  %2165 = vmatpush1.msra.mxu0 0.0
  %2166 = vmatprep.subr.mxu0 0.0
  %2167 = vmatpush1.msra.mxu0 0.0
  %2168 = vmatprep.subr.mxu0 0.0
  %2169 = vmatpush1.msra.mxu0 0.0
  %2170 = vmatprep.mubr.f32.mxu0 0.0
  %2171 = vmatmul.mubr.f32.gmra.mrb[0].mxu0 %v814
  %v2172 = vpop.f32.mrb[0].mxu0
  %v2173 = vadd.f32 0.0, %v2172
  %v2174 = vpop.f32.mrb[0].mxu0
  %2175 = vmatprep.mubr.f32.mxu0 0.0
  %2176 = vmatmul.mubr.f32.gmra.mrb[0].mxu0 %v817
  %v2177 = vpop.f32.mrb[0].mxu0
  %v2178 = vadd.f32 0.0, %v2177
  %v2179 = vpop.f32.mrb[0].mxu0
  %2180 = vmatprep.mubr.f32.mxu0 0.0
  %2181 = vmatmul.mubr.f32.gmra.mrb[0].mxu0 %v820
  %v2182 = vpop.f32.mrb[0].mxu0
  %v2183 = vadd.f32 0.0, %v2182
  %v2184 = vpop.f32.mrb[0].mxu0
  %2185 = vmatprep.mubr.f32.mxu0 0.0
  %2186 = vmatmul.mubr.f32.gmra.mrb[0].mxu0 %v823
  %v2187 = vpop.f32.mrb[0].mxu0
  %v2188 = vadd.f32 0.0, %v2187
  %v2189 = vpop.f32.mrb[0].mxu0
  %2190 = vmatprep.mubr.f32.mxu0 0.0
  %2191 = vmatmul.mubr.f32.gmra.mrb[0].mxu0 %v826
  %v2192 = vpop.f32.mrb[0].mxu0
  %v2193 = vadd.f32 0.0, %v2192
  %v2194 = vpop.f32.mrb[0].mxu0
  %2195 = vmatprep.mubr.f32.mxu0 0.0
  %2196 = vmatmul.mubr.f32.gmra.mrb[0].mxu0 %v829
  %v2197 = vpop.f32.mrb[0].mxu0
  %v2198 = vadd.f32 0.0, %v2197
  %v2199 = vpop.f32.mrb[0].mxu0
  %2200 = vmatprep.mubr.f32.mxu0 0.0
  %2201 = vmatmul.mubr.f32.gmra.mrb[0].mxu0 %v832
  %v2202 = vpop.f32.mrb[0].mxu0
  %v2203 = vadd.f32 0.0, %v2202
  %v2204 = vpop.f32.mrb[0].mxu0
  %2205 = vmatprep.mubr.f32.mxu0 0.0
  %2206 = vmatmul.mubr.f32.gmra.mrb[0].mxu0 %v835
  %v2207 = vpop.f32.mrb[0].mxu0
  %v2208 = vadd.f32 0.0, %v2207
  %v2209 = vpop.f32.mrb[0].mxu0
  %2210 = vmatprep.mubr.f32.mxu0 0.0
  %2211 = vmatmul.mubr.f32.gmra.mrb[0].mxu0 %v838
  %v2212 = vpop.f32.mrb[0].mxu0
  %v2213 = vadd.f32 0.0, %v2212
  %v2214 = vpop.f32.mrb[0].mxu0
  %2215 = vmatprep.mubr.f32.mxu0 0.0
  %2216 = vmatmul.mubr.f32.gmra.mrb[0].mxu0 %v841
  %v2217 = vpop.f32.mrb[0].mxu0
  %v2218 = vadd.f32 0.0, %v2217
  %v2219 = vpop.f32.mrb[0].mxu0
  %2220 = vmatprep.mubr.f32.mxu0 0.0
  %2221 = vmatmul.mubr.f32.gmra.mrb[0].mxu0 %v844
  %v2222 = vpop.f32.mrb[0].mxu0
  %v2223 = vadd.f32 0.0, %v2222
  %v2224 = vpop.f32.mrb[0].mxu0
  %2225 = vmatprep.mubr.f32.mxu0 0.0
  %2226 = vmatmul.mubr.f32.gmra.mrb[0].mxu0 %v847
  %v2227 = vpop.f32.mrb[0].mxu0
  %v2228 = vadd.f32 0.0, %v2227
  %v2229 = vpop.f32.mrb[0].mxu0
  %2230 = vmatprep.mubr.f32.mxu0 0.0
  %2231 = vmatmul.mubr.f32.gmra.mrb[0].mxu0 %v850
  %v2232 = vpop.f32.mrb[0].mxu0
  %v2233 = vadd.f32 0.0, %v2232
  %v2234 = vpop.f32.mrb[0].mxu0
  %2235 = vmatprep.mubr.f32.mxu0 0.0
  %2236 = vmatmul.mubr.f32.gmra.mrb[0].mxu0 %v853
  %v2237 = vpop.f32.mrb[0].mxu0
  %v2238 = vadd.f32 0.0, %v2237
  %v2239 = vpop.f32.mrb[0].mxu0
  %2240 = vmatprep.mubr.f32.mxu0 0.0
  %2241 = vmatmul.mubr.f32.gmra.mrb[0].mxu0 %v856
  %v2242 = vpop.f32.mrb[0].mxu0
  %v2243 = vadd.f32 0.0, %v2242
  %v2244 = vpop.f32.mrb[0].mxu0
  %2245 = vmatprep.mubr.f32.mxu0 0.0
  %2246 = vmatmul.mubr.f32.gmra.mrb[0].mxu0 %v859
  %v2247 = vpop.f32.mrb[0].mxu0
  %v2248 = vadd.f32 0.0, %v2247
  %v2249 = vpop.f32.mrb[0].mxu0
  %2250 = vdwg.mxu0
  %s2251 = scalar_lea.vmem %s12, 160
  %v2252 = vld [vmem:[%s2251] sm:$0xff]
  %v2253 = vld [vmem:[%s2251 + $0x8] sm:$0xff]
  %v2254 = vld [vmem:[%s2251 + $0x10] sm:$0xff]
  %v2255 = vld [vmem:[%s2251 + $0x18] sm:$0xff]
  %2256 = vmatprep.subr.mxu0 0.0
  %2257 = vmatpush1.msra.mxu0 %v2173
  %2258 = vmatprep.subr.mxu0 0.0
  %2259 = vmatpush1.msra.mxu0 %v2178
  %2260 = vmatprep.subr.mxu0 0.0
  %2261 = vmatpush1.msra.mxu0 %v2183
  %2262 = vmatprep.subr.mxu0 0.0
  %2263 = vmatpush1.msra.mxu0 %v2188
  %2264 = vmatprep.subr.mxu0 0.0
  %2265 = vmatpush1.msra.mxu0 %v2193
  %2266 = vmatprep.subr.mxu0 0.0
  %2267 = vmatpush1.msra.mxu0 %v2198
  %2268 = vmatprep.subr.mxu0 0.0
  %2269 = vmatpush1.msra.mxu0 %v2203
  %2270 = vmatprep.subr.mxu0 0.0
  %2271 = vmatpush1.msra.mxu0 %v2208
  %2272 = vmatprep.subr.mxu0 0.0
  %2273 = vmatpush1.msra.mxu0 %v2213
  %2274 = vmatprep.subr.mxu0 0.0
  %2275 = vmatpush1.msra.mxu0 %v2218
  %2276 = vmatprep.subr.mxu0 0.0
  %2277 = vmatpush1.msra.mxu0 %v2223
  %2278 = vmatprep.subr.mxu0 0.0
  %2279 = vmatpush1.msra.mxu0 %v2228
  %2280 = vmatprep.subr.mxu0 0.0
  %2281 = vmatpush1.msra.mxu0 %v2233
  %2282 = vmatprep.subr.mxu0 0.0
  %2283 = vmatpush1.msra.mxu0 %v2238
  %2284 = vmatprep.subr.mxu0 0.0
  %2285 = vmatpush1.msra.mxu0 %v2243
  %2286 = vmatprep.subr.mxu0 0.0
  %2287 = vmatpush1.msra.mxu0 %v2248
  %2288 = vmatprep.subr.mxu0 0.0
  %2289 = vmatpush1.msra.mxu0 0.0
  %2290 = vmatprep.subr.mxu0 0.0
  %2291 = vmatpush1.msra.mxu0 0.0
  %2292 = vmatprep.subr.mxu0 0.0
  %2293 = vmatpush1.msra.mxu0 0.0
  %2294 = vmatprep.subr.mxu0 0.0
  %2295 = vmatpush1.msra.mxu0 0.0
  %2296 = vmatprep.subr.mxu0 0.0
  %2297 = vmatpush1.msra.mxu0 0.0
  %2298 = vmatprep.subr.mxu0 0.0
  %2299 = vmatpush1.msra.mxu0 0.0
  %2300 = vmatprep.subr.mxu0 0.0
  %2301 = vmatpush1.msra.mxu0 0.0
  %2302 = vmatprep.subr.mxu0 0.0
  %2303 = vmatpush1.msra.mxu0 0.0
  %2304 = vmatprep.subr.mxu0 0.0
  %2305 = vmatpush1.msra.mxu0 0.0
  %2306 = vmatprep.subr.mxu0 0.0
  %2307 = vmatpush1.msra.mxu0 0.0
  %2308 = vmatprep.subr.mxu0 0.0
  %2309 = vmatpush1.msra.mxu0 0.0
  %2310 = vmatprep.subr.mxu0 0.0
  %2311 = vmatpush1.msra.mxu0 0.0
  %2312 = vmatprep.subr.mxu0 0.0
  %2313 = vmatpush1.msra.mxu0 0.0
  %2314 = vmatprep.subr.mxu0 0.0
  %2315 = vmatpush1.msra.mxu0 0.0
  %2316 = vmatprep.subr.mxu0 0.0
  %2317 = vmatpush1.msra.mxu0 0.0
  %2318 = vmatprep.subr.mxu0 0.0
  %2319 = vmatpush1.msra.mxu0 0.0
  %2320 = vmatprep.mubr.f32.mxu0 0.0
  %2321 = vmatmul.mubr.f32.gmra.mrb[0].mxu0 %v2252
  %v2322 = vpop.f32.mrb[0].mxu0
  %v2323 = vadd.f32 0.0, %v2322
  %v2324 = vpop.f32.mrb[0].mxu0
  %2325 = vmatprep.mubr.f32.mxu0 0.0
  %2326 = vmatmul.mubr.f32.gmra.mrb[0].mxu0 %v2253
  %v2327 = vpop.f32.mrb[0].mxu0
  %v2328 = vadd.f32 0.0, %v2327
  %v2329 = vpop.f32.mrb[0].mxu0
  %2330 = vmatprep.mubr.f32.mxu0 0.0
  %2331 = vmatmul.mubr.f32.gmra.mrb[0].mxu0 %v2254
  %v2332 = vpop.f32.mrb[0].mxu0
  %v2333 = vadd.f32 0.0, %v2332
  %v2334 = vpop.f32.mrb[0].mxu0
  %2335 = vmatprep.mubr.f32.mxu0 0.0
  %2336 = vmatmul.mubr.f32.gmra.mrb[0].mxu0 %v2255
  %v2337 = vpop.f32.mrb[0].mxu0
  %v2338 = vadd.f32 0.0, %v2337
  %v2339 = vpop.f32.mrb[0].mxu0
  %2340 = vdwg.mxu0
  %v2341 = vadd.f32 %v2091, %v2323
  %v2342 = vadd.f32 %v2092, %v2328
  %v2343 = vadd.f32 %v2093, %v2333
  %v2344 = vadd.f32 %v2094, %v2338
  %s2345 = scalar_lea.vmem %s13, 336
  %v2346 = vld [vmem:[%s2345] sm:$0xff]
  %v2347 = vld [vmem:[%s2345 + $0x8] sm:$0xff]
  %v2348 = vld [vmem:[%s2345 + $0x10] sm:$0xff]
  %v2349 = vld [vmem:[%s2345 + $0x18] sm:$0xff]
  %v2350 = vld [vmem:[%s2345 + $0x20] sm:$0xff]
  %v2351 = vld [vmem:[%s2345 + $0x28] sm:$0xff]
  %v2352 = vld [vmem:[%s2345 + $0x30] sm:$0x1]
  %v2354 = vsel %vm861, %v2352, 0
  %2356 = vmatprep.subr.mxu0 0.0
  %2357 = vmatpush1.msra.mxu0 %v2346
  %2358 = vmatprep.subr.mxu0 0.0
  %2359 = vmatpush1.msra.mxu0 %v2347
  %2360 = vmatprep.subr.mxu0 0.0
  %2361 = vmatpush1.msra.mxu0 %v2348
  %2362 = vmatprep.subr.mxu0 0.0
  %2363 = vmatpush1.msra.mxu0 %v2349
  %2364 = vmatprep.subr.mxu0 0.0
  %2365 = vmatpush1.msra.mxu0 %v2350
  %2366 = vmatprep.subr.mxu0 0.0
  %2367 = vmatpush1.msra.mxu0 %v2351
  %2368 = vmatprep.subr.mxu0 0.0
  %2369 = vmatpush1.msra.mxu0 %v2354
  %2370 = vmatprep.subr.mxu0 0.0
  %2371 = vmatpush1.msra.mxu0 0.0
  %2372 = vmatprep.subr.mxu0 0.0
  %2373 = vmatpush1.msra.mxu0 0.0
  %2374 = vmatprep.subr.mxu0 0.0
  %2375 = vmatpush1.msra.mxu0 0.0
  %2376 = vmatprep.subr.mxu0 0.0
  %2377 = vmatpush1.msra.mxu0 0.0
  %2378 = vmatprep.subr.mxu0 0.0
  %2379 = vmatpush1.msra.mxu0 0.0
  %2380 = vmatprep.subr.mxu0 0.0
  %2381 = vmatpush1.msra.mxu0 0.0
  %2382 = vmatprep.subr.mxu0 0.0
  %2383 = vmatpush1.msra.mxu0 0.0
  %2384 = vmatprep.subr.mxu0 0.0
  %2385 = vmatpush1.msra.mxu0 0.0
  %2386 = vmatprep.subr.mxu0 0.0
  %2387 = vmatpush1.msra.mxu0 0.0
  %2388 = vmatprep.subr.mxu0 0.0
  %2389 = vmatpush1.msra.mxu0 0.0
  %2390 = vmatprep.subr.mxu0 0.0
  %2391 = vmatpush1.msra.mxu0 0.0
  %2392 = vmatprep.subr.mxu0 0.0
  %2393 = vmatpush1.msra.mxu0 0.0
  %2394 = vmatprep.subr.mxu0 0.0
  %2395 = vmatpush1.msra.mxu0 0.0
  %2396 = vmatprep.subr.mxu0 0.0
  %2397 = vmatpush1.msra.mxu0 0.0
  %2398 = vmatprep.subr.mxu0 0.0
  %2399 = vmatpush1.msra.mxu0 0.0
  %2400 = vmatprep.subr.mxu0 0.0
  %2401 = vmatpush1.msra.mxu0 0.0
  %2402 = vmatprep.subr.mxu0 0.0
  %2403 = vmatpush1.msra.mxu0 0.0
  %2404 = vmatprep.subr.mxu0 0.0
  %2405 = vmatpush1.msra.mxu0 0.0
  %2406 = vmatprep.subr.mxu0 0.0
  %2407 = vmatpush1.msra.mxu0 0.0
  %2408 = vmatprep.subr.mxu0 0.0
  %2409 = vmatpush1.msra.mxu0 0.0
  %2410 = vmatprep.subr.mxu0 0.0
  %2411 = vmatpush1.msra.mxu0 0.0
  %2412 = vmatprep.subr.mxu0 0.0
  %2413 = vmatpush1.msra.mxu0 0.0
  %2414 = vmatprep.subr.mxu0 0.0
  %2415 = vmatpush1.msra.mxu0 0.0
  %2416 = vmatprep.subr.mxu0 0.0
  %2417 = vmatpush1.msra.mxu0 0.0
  %2418 = vmatprep.subr.mxu0 0.0
  %2419 = vmatpush1.msra.mxu0 0.0
  %2420 = vmatprep.mubr.f32.mxu0 0.0
  %2421 = vmatmul.mubr.f32.gmra.mrb[0].mxu0 %v814
  %v2422 = vpop.f32.mrb[0].mxu0
  %v2423 = vadd.f32 0.0, %v2422
  %v2424 = vpop.f32.mrb[0].mxu0
  %2425 = vmatprep.mubr.f32.mxu0 0.0
  %2426 = vmatmul.mubr.f32.gmra.mrb[0].mxu0 %v817
  %v2427 = vpop.f32.mrb[0].mxu0
  %v2428 = vadd.f32 0.0, %v2427
  %v2429 = vpop.f32.mrb[0].mxu0
  %2430 = vmatprep.mubr.f32.mxu0 0.0
  %2431 = vmatmul.mubr.f32.gmra.mrb[0].mxu0 %v820
  %v2432 = vpop.f32.mrb[0].mxu0
  %v2433 = vadd.f32 0.0, %v2432
  %v2434 = vpop.f32.mrb[0].mxu0
  %2435 = vmatprep.mubr.f32.mxu0 0.0
  %2436 = vmatmul.mubr.f32.gmra.mrb[0].mxu0 %v823
  %v2437 = vpop.f32.mrb[0].mxu0
  %v2438 = vadd.f32 0.0, %v2437
  %v2439 = vpop.f32.mrb[0].mxu0
  %2440 = vmatprep.mubr.f32.mxu0 0.0
  %2441 = vmatmul.mubr.f32.gmra.mrb[0].mxu0 %v826
  %v2442 = vpop.f32.mrb[0].mxu0
  %v2443 = vadd.f32 0.0, %v2442
  %v2444 = vpop.f32.mrb[0].mxu0
  %2445 = vmatprep.mubr.f32.mxu0 0.0
  %2446 = vmatmul.mubr.f32.gmra.mrb[0].mxu0 %v829
  %v2447 = vpop.f32.mrb[0].mxu0
  %v2448 = vadd.f32 0.0, %v2447
  %v2449 = vpop.f32.mrb[0].mxu0
  %2450 = vmatprep.mubr.f32.mxu0 0.0
  %2451 = vmatmul.mubr.f32.gmra.mrb[0].mxu0 %v832
  %v2452 = vpop.f32.mrb[0].mxu0
  %v2453 = vadd.f32 0.0, %v2452
  %v2454 = vpop.f32.mrb[0].mxu0
  %2455 = vmatprep.mubr.f32.mxu0 0.0
  %2456 = vmatmul.mubr.f32.gmra.mrb[0].mxu0 %v835
  %v2457 = vpop.f32.mrb[0].mxu0
  %v2458 = vadd.f32 0.0, %v2457
  %v2459 = vpop.f32.mrb[0].mxu0
  %2460 = vmatprep.mubr.f32.mxu0 0.0
  %2461 = vmatmul.mubr.f32.gmra.mrb[0].mxu0 %v838
  %v2462 = vpop.f32.mrb[0].mxu0
  %v2463 = vadd.f32 0.0, %v2462
  %v2464 = vpop.f32.mrb[0].mxu0
  %2465 = vmatprep.mubr.f32.mxu0 0.0
  %2466 = vmatmul.mubr.f32.gmra.mrb[0].mxu0 %v841
  %v2467 = vpop.f32.mrb[0].mxu0
  %v2468 = vadd.f32 0.0, %v2467
  %v2469 = vpop.f32.mrb[0].mxu0
  %2470 = vmatprep.mubr.f32.mxu0 0.0
  %2471 = vmatmul.mubr.f32.gmra.mrb[0].mxu0 %v844
  %v2472 = vpop.f32.mrb[0].mxu0
  %v2473 = vadd.f32 0.0, %v2472
  %v2474 = vpop.f32.mrb[0].mxu0
  %2475 = vmatprep.mubr.f32.mxu0 0.0
  %2476 = vmatmul.mubr.f32.gmra.mrb[0].mxu0 %v847
  %v2477 = vpop.f32.mrb[0].mxu0
  %v2478 = vadd.f32 0.0, %v2477
  %v2479 = vpop.f32.mrb[0].mxu0
  %2480 = vmatprep.mubr.f32.mxu0 0.0
  %2481 = vmatmul.mubr.f32.gmra.mrb[0].mxu0 %v850
  %v2482 = vpop.f32.mrb[0].mxu0
  %v2483 = vadd.f32 0.0, %v2482
  %v2484 = vpop.f32.mrb[0].mxu0
  %2485 = vmatprep.mubr.f32.mxu0 0.0
  %2486 = vmatmul.mubr.f32.gmra.mrb[0].mxu0 %v853
  %v2487 = vpop.f32.mrb[0].mxu0
  %v2488 = vadd.f32 0.0, %v2487
  %v2489 = vpop.f32.mrb[0].mxu0
  %2490 = vmatprep.mubr.f32.mxu0 0.0
  %2491 = vmatmul.mubr.f32.gmra.mrb[0].mxu0 %v856
  %v2492 = vpop.f32.mrb[0].mxu0
  %v2493 = vadd.f32 0.0, %v2492
  %v2494 = vpop.f32.mrb[0].mxu0
  %2495 = vmatprep.mubr.f32.mxu0 0.0
  %2496 = vmatmul.mubr.f32.gmra.mrb[0].mxu0 %v859
  %v2497 = vpop.f32.mrb[0].mxu0
  %v2498 = vadd.f32 0.0, %v2497
  %v2499 = vpop.f32.mrb[0].mxu0
  %2500 = vdwg.mxu0
  %s2501 = scalar_lea.vmem %s12, 192
  %v2502 = vld [vmem:[%s2501] sm:$0xff]
  %v2503 = vld [vmem:[%s2501 + $0x8] sm:$0xff]
  %v2504 = vld [vmem:[%s2501 + $0x10] sm:$0xff]
  %v2505 = vld [vmem:[%s2501 + $0x18] sm:$0xff]
  %2506 = vmatprep.subr.mxu0 0.0
  %2507 = vmatpush1.msra.mxu0 %v2423
  %2508 = vmatprep.subr.mxu0 0.0
  %2509 = vmatpush1.msra.mxu0 %v2428
  %2510 = vmatprep.subr.mxu0 0.0
  %2511 = vmatpush1.msra.mxu0 %v2433
  %2512 = vmatprep.subr.mxu0 0.0
  %2513 = vmatpush1.msra.mxu0 %v2438
  %2514 = vmatprep.subr.mxu0 0.0
  %2515 = vmatpush1.msra.mxu0 %v2443
  %2516 = vmatprep.subr.mxu0 0.0
  %2517 = vmatpush1.msra.mxu0 %v2448
  %2518 = vmatprep.subr.mxu0 0.0
  %2519 = vmatpush1.msra.mxu0 %v2453
  %2520 = vmatprep.subr.mxu0 0.0
  %2521 = vmatpush1.msra.mxu0 %v2458
  %2522 = vmatprep.subr.mxu0 0.0
  %2523 = vmatpush1.msra.mxu0 %v2463
  %2524 = vmatprep.subr.mxu0 0.0
  %2525 = vmatpush1.msra.mxu0 %v2468
  %2526 = vmatprep.subr.mxu0 0.0
  %2527 = vmatpush1.msra.mxu0 %v2473
  %2528 = vmatprep.subr.mxu0 0.0
  %2529 = vmatpush1.msra.mxu0 %v2478
  %2530 = vmatprep.subr.mxu0 0.0
  %2531 = vmatpush1.msra.mxu0 %v2483
  %2532 = vmatprep.subr.mxu0 0.0
  %2533 = vmatpush1.msra.mxu0 %v2488
  %2534 = vmatprep.subr.mxu0 0.0
  %2535 = vmatpush1.msra.mxu0 %v2493
  %2536 = vmatprep.subr.mxu0 0.0
  %2537 = vmatpush1.msra.mxu0 %v2498
  %2538 = vmatprep.subr.mxu0 0.0
  %2539 = vmatpush1.msra.mxu0 0.0
  %2540 = vmatprep.subr.mxu0 0.0
  %2541 = vmatpush1.msra.mxu0 0.0
  %2542 = vmatprep.subr.mxu0 0.0
  %2543 = vmatpush1.msra.mxu0 0.0
  %2544 = vmatprep.subr.mxu0 0.0
  %2545 = vmatpush1.msra.mxu0 0.0
  %2546 = vmatprep.subr.mxu0 0.0
  %2547 = vmatpush1.msra.mxu0 0.0
  %2548 = vmatprep.subr.mxu0 0.0
  %2549 = vmatpush1.msra.mxu0 0.0
  %2550 = vmatprep.subr.mxu0 0.0
  %2551 = vmatpush1.msra.mxu0 0.0
  %2552 = vmatprep.subr.mxu0 0.0
  %2553 = vmatpush1.msra.mxu0 0.0
  %2554 = vmatprep.subr.mxu0 0.0
  %2555 = vmatpush1.msra.mxu0 0.0
  %2556 = vmatprep.subr.mxu0 0.0
  %2557 = vmatpush1.msra.mxu0 0.0
  %2558 = vmatprep.subr.mxu0 0.0
  %2559 = vmatpush1.msra.mxu0 0.0
  %2560 = vmatprep.subr.mxu0 0.0
  %2561 = vmatpush1.msra.mxu0 0.0
  %2562 = vmatprep.subr.mxu0 0.0
  %2563 = vmatpush1.msra.mxu0 0.0
  %2564 = vmatprep.subr.mxu0 0.0
  %2565 = vmatpush1.msra.mxu0 0.0
  %2566 = vmatprep.subr.mxu0 0.0
  %2567 = vmatpush1.msra.mxu0 0.0
  %2568 = vmatprep.subr.mxu0 0.0
  %2569 = vmatpush1.msra.mxu0 0.0
  %2570 = vmatprep.mubr.f32.mxu0 0.0
  %2571 = vmatmul.mubr.f32.gmra.mrb[0].mxu0 %v2502
  %v2572 = vpop.f32.mrb[0].mxu0
  %v2573 = vadd.f32 0.0, %v2572
  %v2574 = vpop.f32.mrb[0].mxu0
  %2575 = vmatprep.mubr.f32.mxu0 0.0
  %2576 = vmatmul.mubr.f32.gmra.mrb[0].mxu0 %v2503
  %v2577 = vpop.f32.mrb[0].mxu0
  %v2578 = vadd.f32 0.0, %v2577
  %v2579 = vpop.f32.mrb[0].mxu0
  %2580 = vmatprep.mubr.f32.mxu0 0.0
  %2581 = vmatmul.mubr.f32.gmra.mrb[0].mxu0 %v2504
  %v2582 = vpop.f32.mrb[0].mxu0
  %v2583 = vadd.f32 0.0, %v2582
  %v2584 = vpop.f32.mrb[0].mxu0
  %2585 = vmatprep.mubr.f32.mxu0 0.0
  %2586 = vmatmul.mubr.f32.gmra.mrb[0].mxu0 %v2505
  %v2587 = vpop.f32.mrb[0].mxu0
  %v2588 = vadd.f32 0.0, %v2587
  %v2589 = vpop.f32.mrb[0].mxu0
  %2590 = vdwg.mxu0
  %v2591 = vadd.f32 %v2341, %v2573
  %v2592 = vadd.f32 %v2342, %v2578
  %v2593 = vadd.f32 %v2343, %v2583
  %v2594 = vadd.f32 %v2344, %v2588
  %s2595 = scalar_lea.vmem %s13, 392
  %v2596 = vld [vmem:[%s2595] sm:$0xff]
  %v2597 = vld [vmem:[%s2595 + $0x8] sm:$0xff]
  %v2598 = vld [vmem:[%s2595 + $0x10] sm:$0xff]
  %v2599 = vld [vmem:[%s2595 + $0x18] sm:$0xff]
  %v2600 = vld [vmem:[%s2595 + $0x20] sm:$0xff]
  %v2601 = vld [vmem:[%s2595 + $0x28] sm:$0xff]
  %v2602 = vld [vmem:[%s2595 + $0x30] sm:$0x1]
  %v2604 = vsel %vm861, %v2602, 0
  %2606 = vmatprep.subr.mxu0 0.0
  %2607 = vmatpush1.msra.mxu0 %v2596
  %2608 = vmatprep.subr.mxu0 0.0
  %2609 = vmatpush1.msra.mxu0 %v2597
  %2610 = vmatprep.subr.mxu0 0.0
  %2611 = vmatpush1.msra.mxu0 %v2598
  %2612 = vmatprep.subr.mxu0 0.0
  %2613 = vmatpush1.msra.mxu0 %v2599
  %2614 = vmatprep.subr.mxu0 0.0
  %2615 = vmatpush1.msra.mxu0 %v2600
  %2616 = vmatprep.subr.mxu0 0.0
  %2617 = vmatpush1.msra.mxu0 %v2601
  %2618 = vmatprep.subr.mxu0 0.0
  %2619 = vmatpush1.msra.mxu0 %v2604
  %2620 = vmatprep.subr.mxu0 0.0
  %2621 = vmatpush1.msra.mxu0 0.0
  %2622 = vmatprep.subr.mxu0 0.0
  %2623 = vmatpush1.msra.mxu0 0.0
  %2624 = vmatprep.subr.mxu0 0.0
  %2625 = vmatpush1.msra.mxu0 0.0
  %2626 = vmatprep.subr.mxu0 0.0
  %2627 = vmatpush1.msra.mxu0 0.0
  %2628 = vmatprep.subr.mxu0 0.0
  %2629 = vmatpush1.msra.mxu0 0.0
  %2630 = vmatprep.subr.mxu0 0.0
  %2631 = vmatpush1.msra.mxu0 0.0
  %2632 = vmatprep.subr.mxu0 0.0
  %2633 = vmatpush1.msra.mxu0 0.0
  %2634 = vmatprep.subr.mxu0 0.0
  %2635 = vmatpush1.msra.mxu0 0.0
  %2636 = vmatprep.subr.mxu0 0.0
  %2637 = vmatpush1.msra.mxu0 0.0
  %2638 = vmatprep.subr.mxu0 0.0
  %2639 = vmatpush1.msra.mxu0 0.0
  %2640 = vmatprep.subr.mxu0 0.0
  %2641 = vmatpush1.msra.mxu0 0.0
  %2642 = vmatprep.subr.mxu0 0.0
  %2643 = vmatpush1.msra.mxu0 0.0
  %2644 = vmatprep.subr.mxu0 0.0
  %2645 = vmatpush1.msra.mxu0 0.0
  %2646 = vmatprep.subr.mxu0 0.0
  %2647 = vmatpush1.msra.mxu0 0.0
  %2648 = vmatprep.subr.mxu0 0.0
  %2649 = vmatpush1.msra.mxu0 0.0
  %2650 = vmatprep.subr.mxu0 0.0
  %2651 = vmatpush1.msra.mxu0 0.0
  %2652 = vmatprep.subr.mxu0 0.0
  %2653 = vmatpush1.msra.mxu0 0.0
  %2654 = vmatprep.subr.mxu0 0.0
  %2655 = vmatpush1.msra.mxu0 0.0
  %2656 = vmatprep.subr.mxu0 0.0
  %2657 = vmatpush1.msra.mxu0 0.0
  %2658 = vmatprep.subr.mxu0 0.0
  %2659 = vmatpush1.msra.mxu0 0.0
  %2660 = vmatprep.subr.mxu0 0.0
  %2661 = vmatpush1.msra.mxu0 0.0
  %2662 = vmatprep.subr.mxu0 0.0
  %2663 = vmatpush1.msra.mxu0 0.0
  %2664 = vmatprep.subr.mxu0 0.0
  %2665 = vmatpush1.msra.mxu0 0.0
  %2666 = vmatprep.subr.mxu0 0.0
  %2667 = vmatpush1.msra.mxu0 0.0
  %2668 = vmatprep.subr.mxu0 0.0
  %2669 = vmatpush1.msra.mxu0 0.0
  %2670 = vmatprep.mubr.f32.mxu0 0.0
  %2671 = vmatmul.mubr.f32.gmra.mrb[0].mxu0 %v814
  %v2672 = vpop.f32.mrb[0].mxu0
  %v2673 = vadd.f32 0.0, %v2672
  %v2674 = vpop.f32.mrb[0].mxu0
  %2675 = vmatprep.mubr.f32.mxu0 0.0
  %2676 = vmatmul.mubr.f32.gmra.mrb[0].mxu0 %v817
  %v2677 = vpop.f32.mrb[0].mxu0
  %v2678 = vadd.f32 0.0, %v2677
  %v2679 = vpop.f32.mrb[0].mxu0
  %2680 = vmatprep.mubr.f32.mxu0 0.0
  %2681 = vmatmul.mubr.f32.gmra.mrb[0].mxu0 %v820
  %v2682 = vpop.f32.mrb[0].mxu0
  %v2683 = vadd.f32 0.0, %v2682
  %v2684 = vpop.f32.mrb[0].mxu0
  %2685 = vmatprep.mubr.f32.mxu0 0.0
  %2686 = vmatmul.mubr.f32.gmra.mrb[0].mxu0 %v823
  %v2687 = vpop.f32.mrb[0].mxu0
  %v2688 = vadd.f32 0.0, %v2687
  %v2689 = vpop.f32.mrb[0].mxu0
  %2690 = vmatprep.mubr.f32.mxu0 0.0
  %2691 = vmatmul.mubr.f32.gmra.mrb[0].mxu0 %v826
  %v2692 = vpop.f32.mrb[0].mxu0
  %v2693 = vadd.f32 0.0, %v2692
  %v2694 = vpop.f32.mrb[0].mxu0
  %2695 = vmatprep.mubr.f32.mxu0 0.0
  %2696 = vmatmul.mubr.f32.gmra.mrb[0].mxu0 %v829
  %v2697 = vpop.f32.mrb[0].mxu0
  %v2698 = vadd.f32 0.0, %v2697
  %v2699 = vpop.f32.mrb[0].mxu0
  %2700 = vmatprep.mubr.f32.mxu0 0.0
  %2701 = vmatmul.mubr.f32.gmra.mrb[0].mxu0 %v832
  %v2702 = vpop.f32.mrb[0].mxu0
  %v2703 = vadd.f32 0.0, %v2702
  %v2704 = vpop.f32.mrb[0].mxu0
  %2705 = vmatprep.mubr.f32.mxu0 0.0
  %2706 = vmatmul.mubr.f32.gmra.mrb[0].mxu0 %v835
  %v2707 = vpop.f32.mrb[0].mxu0
  %v2708 = vadd.f32 0.0, %v2707
  %v2709 = vpop.f32.mrb[0].mxu0
  %2710 = vmatprep.mubr.f32.mxu0 0.0
  %2711 = vmatmul.mubr.f32.gmra.mrb[0].mxu0 %v838
  %v2712 = vpop.f32.mrb[0].mxu0
  %v2713 = vadd.f32 0.0, %v2712
  %v2714 = vpop.f32.mrb[0].mxu0
  %2715 = vmatprep.mubr.f32.mxu0 0.0
  %2716 = vmatmul.mubr.f32.gmra.mrb[0].mxu0 %v841
  %v2717 = vpop.f32.mrb[0].mxu0
  %v2718 = vadd.f32 0.0, %v2717
  %v2719 = vpop.f32.mrb[0].mxu0
  %2720 = vmatprep.mubr.f32.mxu0 0.0
  %2721 = vmatmul.mubr.f32.gmra.mrb[0].mxu0 %v844
  %v2722 = vpop.f32.mrb[0].mxu0
  %v2723 = vadd.f32 0.0, %v2722
  %v2724 = vpop.f32.mrb[0].mxu0
  %2725 = vmatprep.mubr.f32.mxu0 0.0
  %2726 = vmatmul.mubr.f32.gmra.mrb[0].mxu0 %v847
  %v2727 = vpop.f32.mrb[0].mxu0
  %v2728 = vadd.f32 0.0, %v2727
  %v2729 = vpop.f32.mrb[0].mxu0
  %2730 = vmatprep.mubr.f32.mxu0 0.0
  %2731 = vmatmul.mubr.f32.gmra.mrb[0].mxu0 %v850
  %v2732 = vpop.f32.mrb[0].mxu0
  %v2733 = vadd.f32 0.0, %v2732
  %v2734 = vpop.f32.mrb[0].mxu0
  %2735 = vmatprep.mubr.f32.mxu0 0.0
  %2736 = vmatmul.mubr.f32.gmra.mrb[0].mxu0 %v853
  %v2737 = vpop.f32.mrb[0].mxu0
  %v2738 = vadd.f32 0.0, %v2737
  %v2739 = vpop.f32.mrb[0].mxu0
  %2740 = vmatprep.mubr.f32.mxu0 0.0
  %2741 = vmatmul.mubr.f32.gmra.mrb[0].mxu0 %v856
  %v2742 = vpop.f32.mrb[0].mxu0
  %v2743 = vadd.f32 0.0, %v2742
  %v2744 = vpop.f32.mrb[0].mxu0
  %2745 = vmatprep.mubr.f32.mxu0 0.0
  %2746 = vmatmul.mubr.f32.gmra.mrb[0].mxu0 %v859
  %v2747 = vpop.f32.mrb[0].mxu0
  %v2748 = vadd.f32 0.0, %v2747
  %v2749 = vpop.f32.mrb[0].mxu0
  %2750 = vdwg.mxu0
  %s2751 = scalar_lea.vmem %s12, 224
  %v2752 = vld [vmem:[%s2751] sm:$0xff]
  %v2753 = vld [vmem:[%s2751 + $0x8] sm:$0xff]
  %v2754 = vld [vmem:[%s2751 + $0x10] sm:$0xff]
  %v2755 = vld [vmem:[%s2751 + $0x18] sm:$0xff]
  %2756 = vmatprep.subr.mxu0 0.0
  %2757 = vmatpush1.msra.mxu0 %v2673
  %2758 = vmatprep.subr.mxu0 0.0
  %2759 = vmatpush1.msra.mxu0 %v2678
  %2760 = vmatprep.subr.mxu0 0.0
  %2761 = vmatpush1.msra.mxu0 %v2683
  %2762 = vmatprep.subr.mxu0 0.0
  %2763 = vmatpush1.msra.mxu0 %v2688
  %2764 = vmatprep.subr.mxu0 0.0
  %2765 = vmatpush1.msra.mxu0 %v2693
  %2766 = vmatprep.subr.mxu0 0.0
  %2767 = vmatpush1.msra.mxu0 %v2698
  %2768 = vmatprep.subr.mxu0 0.0
  %2769 = vmatpush1.msra.mxu0 %v2703
  %2770 = vmatprep.subr.mxu0 0.0
  %2771 = vmatpush1.msra.mxu0 %v2708
  %2772 = vmatprep.subr.mxu0 0.0
  %2773 = vmatpush1.msra.mxu0 %v2713
  %2774 = vmatprep.subr.mxu0 0.0
  %2775 = vmatpush1.msra.mxu0 %v2718
  %2776 = vmatprep.subr.mxu0 0.0
  %2777 = vmatpush1.msra.mxu0 %v2723
  %2778 = vmatprep.subr.mxu0 0.0
  %2779 = vmatpush1.msra.mxu0 %v2728
  %2780 = vmatprep.subr.mxu0 0.0
  %2781 = vmatpush1.msra.mxu0 %v2733
  %2782 = vmatprep.subr.mxu0 0.0
  %2783 = vmatpush1.msra.mxu0 %v2738
  %2784 = vmatprep.subr.mxu0 0.0
  %2785 = vmatpush1.msra.mxu0 %v2743
  %2786 = vmatprep.subr.mxu0 0.0
  %2787 = vmatpush1.msra.mxu0 %v2748
  %2788 = vmatprep.subr.mxu0 0.0
  %2789 = vmatpush1.msra.mxu0 0.0
  %2790 = vmatprep.subr.mxu0 0.0
  %2791 = vmatpush1.msra.mxu0 0.0
  %2792 = vmatprep.subr.mxu0 0.0
  %2793 = vmatpush1.msra.mxu0 0.0
  %2794 = vmatprep.subr.mxu0 0.0
  %2795 = vmatpush1.msra.mxu0 0.0
  %2796 = vmatprep.subr.mxu0 0.0
  %2797 = vmatpush1.msra.mxu0 0.0
  %2798 = vmatprep.subr.mxu0 0.0
  %2799 = vmatpush1.msra.mxu0 0.0
  %2800 = vmatprep.subr.mxu0 0.0
  %2801 = vmatpush1.msra.mxu0 0.0
  %2802 = vmatprep.subr.mxu0 0.0
  %2803 = vmatpush1.msra.mxu0 0.0
  %2804 = vmatprep.subr.mxu0 0.0
  %2805 = vmatpush1.msra.mxu0 0.0
  %2806 = vmatprep.subr.mxu0 0.0
  %2807 = vmatpush1.msra.mxu0 0.0
  %2808 = vmatprep.subr.mxu0 0.0
  %2809 = vmatpush1.msra.mxu0 0.0
  %2810 = vmatprep.subr.mxu0 0.0
  %2811 = vmatpush1.msra.mxu0 0.0
  %2812 = vmatprep.subr.mxu0 0.0
  %2813 = vmatpush1.msra.mxu0 0.0
  %2814 = vmatprep.subr.mxu0 0.0
  %2815 = vmatpush1.msra.mxu0 0.0
  %2816 = vmatprep.subr.mxu0 0.0
  %2817 = vmatpush1.msra.mxu0 0.0
  %2818 = vmatprep.subr.mxu0 0.0
  %2819 = vmatpush1.msra.mxu0 0.0
  %2820 = vmatprep.mubr.f32.mxu0 0.0
  %2821 = vmatmul.mubr.f32.gmra.mrb[0].mxu0 %v2752
  %v2822 = vpop.f32.mrb[0].mxu0
  %v2823 = vadd.f32 0.0, %v2822
  %v2824 = vpop.f32.mrb[0].mxu0
  %2825 = vmatprep.mubr.f32.mxu0 0.0
  %2826 = vmatmul.mubr.f32.gmra.mrb[0].mxu0 %v2753
  %v2827 = vpop.f32.mrb[0].mxu0
  %v2828 = vadd.f32 0.0, %v2827
  %v2829 = vpop.f32.mrb[0].mxu0
  %2830 = vmatprep.mubr.f32.mxu0 0.0
  %2831 = vmatmul.mubr.f32.gmra.mrb[0].mxu0 %v2754
  %v2832 = vpop.f32.mrb[0].mxu0
  %v2833 = vadd.f32 0.0, %v2832
  %v2834 = vpop.f32.mrb[0].mxu0
  %2835 = vmatprep.mubr.f32.mxu0 0.0
  %2836 = vmatmul.mubr.f32.gmra.mrb[0].mxu0 %v2755
  %v2837 = vpop.f32.mrb[0].mxu0
  %v2838 = vadd.f32 0.0, %v2837
  %v2839 = vpop.f32.mrb[0].mxu0
  %2840 = vdwg.mxu0
  %v2841 = vadd.f32 %v2591, %v2823
  %v2842 = vadd.f32 %v2592, %v2828
  %v2843 = vadd.f32 %v2593, %v2833
  %v2844 = vadd.f32 %v2594, %v2838
  %s2845 = scalar_lea.vmem %s13, 448
  %v2846 = vld [vmem:[%s2845] sm:$0xff]
  %v2847 = vld [vmem:[%s2845 + $0x8] sm:$0xff]
  %v2848 = vld [vmem:[%s2845 + $0x10] sm:$0xff]
  %v2849 = vld [vmem:[%s2845 + $0x18] sm:$0xff]
  %v2850 = vld [vmem:[%s2845 + $0x20] sm:$0xff]
  %v2851 = vld [vmem:[%s2845 + $0x28] sm:$0xff]
  %v2852 = vld [vmem:[%s2845 + $0x30] sm:$0x1]
  %v2854 = vsel %vm861, %v2852, 0
  %2856 = vmatprep.subr.mxu0 0.0
  %2857 = vmatpush1.msra.mxu0 %v2846
  %2858 = vmatprep.subr.mxu0 0.0
  %2859 = vmatpush1.msra.mxu0 %v2847
  %2860 = vmatprep.subr.mxu0 0.0
  %2861 = vmatpush1.msra.mxu0 %v2848
  %2862 = vmatprep.subr.mxu0 0.0
  %2863 = vmatpush1.msra.mxu0 %v2849
  %2864 = vmatprep.subr.mxu0 0.0
  %2865 = vmatpush1.msra.mxu0 %v2850
  %2866 = vmatprep.subr.mxu0 0.0
  %2867 = vmatpush1.msra.mxu0 %v2851
  %2868 = vmatprep.subr.mxu0 0.0
  %2869 = vmatpush1.msra.mxu0 %v2854
  %2870 = vmatprep.subr.mxu0 0.0
  %2871 = vmatpush1.msra.mxu0 0.0
  %2872 = vmatprep.subr.mxu0 0.0
  %2873 = vmatpush1.msra.mxu0 0.0
  %2874 = vmatprep.subr.mxu0 0.0
  %2875 = vmatpush1.msra.mxu0 0.0
  %2876 = vmatprep.subr.mxu0 0.0
  %2877 = vmatpush1.msra.mxu0 0.0
  %2878 = vmatprep.subr.mxu0 0.0
  %2879 = vmatpush1.msra.mxu0 0.0
  %2880 = vmatprep.subr.mxu0 0.0
  %2881 = vmatpush1.msra.mxu0 0.0
  %2882 = vmatprep.subr.mxu0 0.0
  %2883 = vmatpush1.msra.mxu0 0.0
  %2884 = vmatprep.subr.mxu0 0.0
  %2885 = vmatpush1.msra.mxu0 0.0
  %2886 = vmatprep.subr.mxu0 0.0
  %2887 = vmatpush1.msra.mxu0 0.0
  %2888 = vmatprep.subr.mxu0 0.0
  %2889 = vmatpush1.msra.mxu0 0.0
  %2890 = vmatprep.subr.mxu0 0.0
  %2891 = vmatpush1.msra.mxu0 0.0
  %2892 = vmatprep.subr.mxu0 0.0
  %2893 = vmatpush1.msra.mxu0 0.0
  %2894 = vmatprep.subr.mxu0 0.0
  %2895 = vmatpush1.msra.mxu0 0.0
  %2896 = vmatprep.subr.mxu0 0.0
  %2897 = vmatpush1.msra.mxu0 0.0
  %2898 = vmatprep.subr.mxu0 0.0
  %2899 = vmatpush1.msra.mxu0 0.0
  %2900 = vmatprep.subr.mxu0 0.0
  %2901 = vmatpush1.msra.mxu0 0.0
  %2902 = vmatprep.subr.mxu0 0.0
  %2903 = vmatpush1.msra.mxu0 0.0
  %2904 = vmatprep.subr.mxu0 0.0
  %2905 = vmatpush1.msra.mxu0 0.0
  %2906 = vmatprep.subr.mxu0 0.0
  %2907 = vmatpush1.msra.mxu0 0.0
  %2908 = vmatprep.subr.mxu0 0.0
  %2909 = vmatpush1.msra.mxu0 0.0
  %2910 = vmatprep.subr.mxu0 0.0
  %2911 = vmatpush1.msra.mxu0 0.0
  %2912 = vmatprep.subr.mxu0 0.0
  %2913 = vmatpush1.msra.mxu0 0.0
  %2914 = vmatprep.subr.mxu0 0.0
  %2915 = vmatpush1.msra.mxu0 0.0
  %2916 = vmatprep.subr.mxu0 0.0
  %2917 = vmatpush1.msra.mxu0 0.0
  %2918 = vmatprep.subr.mxu0 0.0
  %2919 = vmatpush1.msra.mxu0 0.0
  %2920 = vmatprep.mubr.f32.mxu0 0.0
  %2921 = vmatmul.mubr.f32.gmra.mrb[0].mxu0 %v814
  %v2922 = vpop.f32.mrb[0].mxu0
  %v2923 = vadd.f32 0.0, %v2922
  %v2924 = vpop.f32.mrb[0].mxu0
  %2925 = vmatprep.mubr.f32.mxu0 0.0
  %2926 = vmatmul.mubr.f32.gmra.mrb[0].mxu0 %v817
  %v2927 = vpop.f32.mrb[0].mxu0
  %v2928 = vadd.f32 0.0, %v2927
  %v2929 = vpop.f32.mrb[0].mxu0
  %2930 = vmatprep.mubr.f32.mxu0 0.0
  %2931 = vmatmul.mubr.f32.gmra.mrb[0].mxu0 %v820
  %v2932 = vpop.f32.mrb[0].mxu0
  %v2933 = vadd.f32 0.0, %v2932
  %v2934 = vpop.f32.mrb[0].mxu0
  %2935 = vmatprep.mubr.f32.mxu0 0.0
  %2936 = vmatmul.mubr.f32.gmra.mrb[0].mxu0 %v823
  %v2937 = vpop.f32.mrb[0].mxu0
  %v2938 = vadd.f32 0.0, %v2937
  %v2939 = vpop.f32.mrb[0].mxu0
  %2940 = vmatprep.mubr.f32.mxu0 0.0
  %2941 = vmatmul.mubr.f32.gmra.mrb[0].mxu0 %v826
  %v2942 = vpop.f32.mrb[0].mxu0
  %v2943 = vadd.f32 0.0, %v2942
  %v2944 = vpop.f32.mrb[0].mxu0
  %2945 = vmatprep.mubr.f32.mxu0 0.0
  %2946 = vmatmul.mubr.f32.gmra.mrb[0].mxu0 %v829
  %v2947 = vpop.f32.mrb[0].mxu0
  %v2948 = vadd.f32 0.0, %v2947
  %v2949 = vpop.f32.mrb[0].mxu0
  %2950 = vmatprep.mubr.f32.mxu0 0.0
  %2951 = vmatmul.mubr.f32.gmra.mrb[0].mxu0 %v832
  %v2952 = vpop.f32.mrb[0].mxu0
  %v2953 = vadd.f32 0.0, %v2952
  %v2954 = vpop.f32.mrb[0].mxu0
  %2955 = vmatprep.mubr.f32.mxu0 0.0
  %2956 = vmatmul.mubr.f32.gmra.mrb[0].mxu0 %v835
  %v2957 = vpop.f32.mrb[0].mxu0
  %v2958 = vadd.f32 0.0, %v2957
  %v2959 = vpop.f32.mrb[0].mxu0
  %2960 = vmatprep.mubr.f32.mxu0 0.0
  %2961 = vmatmul.mubr.f32.gmra.mrb[0].mxu0 %v838
  %v2962 = vpop.f32.mrb[0].mxu0
  %v2963 = vadd.f32 0.0, %v2962
  %v2964 = vpop.f32.mrb[0].mxu0
  %2965 = vmatprep.mubr.f32.mxu0 0.0
  %2966 = vmatmul.mubr.f32.gmra.mrb[0].mxu0 %v841
  %v2967 = vpop.f32.mrb[0].mxu0
  %v2968 = vadd.f32 0.0, %v2967
  %v2969 = vpop.f32.mrb[0].mxu0
  %2970 = vmatprep.mubr.f32.mxu0 0.0
  %2971 = vmatmul.mubr.f32.gmra.mrb[0].mxu0 %v844
  %v2972 = vpop.f32.mrb[0].mxu0
  %v2973 = vadd.f32 0.0, %v2972
  %v2974 = vpop.f32.mrb[0].mxu0
  %2975 = vmatprep.mubr.f32.mxu0 0.0
  %2976 = vmatmul.mubr.f32.gmra.mrb[0].mxu0 %v847
  %v2977 = vpop.f32.mrb[0].mxu0
  %v2978 = vadd.f32 0.0, %v2977
  %v2979 = vpop.f32.mrb[0].mxu0
  %2980 = vmatprep.mubr.f32.mxu0 0.0
  %2981 = vmatmul.mubr.f32.gmra.mrb[0].mxu0 %v850
  %v2982 = vpop.f32.mrb[0].mxu0
  %v2983 = vadd.f32 0.0, %v2982
  %v2984 = vpop.f32.mrb[0].mxu0
  %2985 = vmatprep.mubr.f32.mxu0 0.0
  %2986 = vmatmul.mubr.f32.gmra.mrb[0].mxu0 %v853
  %v2987 = vpop.f32.mrb[0].mxu0
  %v2988 = vadd.f32 0.0, %v2987
  %v2989 = vpop.f32.mrb[0].mxu0
  %2990 = vmatprep.mubr.f32.mxu0 0.0
  %2991 = vmatmul.mubr.f32.gmra.mrb[0].mxu0 %v856
  %v2992 = vpop.f32.mrb[0].mxu0
  %v2993 = vadd.f32 0.0, %v2992
  %v2994 = vpop.f32.mrb[0].mxu0
  %2995 = vmatprep.mubr.f32.mxu0 0.0
  %2996 = vmatmul.mubr.f32.gmra.mrb[0].mxu0 %v859
  %v2997 = vpop.f32.mrb[0].mxu0
  %v2998 = vadd.f32 0.0, %v2997
  %v2999 = vpop.f32.mrb[0].mxu0
  %3000 = vdwg.mxu0
  %s3001 = scalar_lea.vmem %s12, 256
  %v3002 = vld [vmem:[%s3001] sm:$0xff]
  %v3003 = vld [vmem:[%s3001 + $0x8] sm:$0xff]
  %v3004 = vld [vmem:[%s3001 + $0x10] sm:$0xff]
  %v3005 = vld [vmem:[%s3001 + $0x18] sm:$0xff]
  %3006 = vmatprep.subr.mxu0 0.0
  %3007 = vmatpush1.msra.mxu0 %v2923
  %3008 = vmatprep.subr.mxu0 0.0
  %3009 = vmatpush1.msra.mxu0 %v2928
  %3010 = vmatprep.subr.mxu0 0.0
  %3011 = vmatpush1.msra.mxu0 %v2933
  %3012 = vmatprep.subr.mxu0 0.0
  %3013 = vmatpush1.msra.mxu0 %v2938
  %3014 = vmatprep.subr.mxu0 0.0
  %3015 = vmatpush1.msra.mxu0 %v2943
  %3016 = vmatprep.subr.mxu0 0.0
  %3017 = vmatpush1.msra.mxu0 %v2948
  %3018 = vmatprep.subr.mxu0 0.0
  %3019 = vmatpush1.msra.mxu0 %v2953
  %3020 = vmatprep.subr.mxu0 0.0
  %3021 = vmatpush1.msra.mxu0 %v2958
  %3022 = vmatprep.subr.mxu0 0.0
  %3023 = vmatpush1.msra.mxu0 %v2963
  %3024 = vmatprep.subr.mxu0 0.0
  %3025 = vmatpush1.msra.mxu0 %v2968
  %3026 = vmatprep.subr.mxu0 0.0
  %3027 = vmatpush1.msra.mxu0 %v2973
  %3028 = vmatprep.subr.mxu0 0.0
  %3029 = vmatpush1.msra.mxu0 %v2978
  %3030 = vmatprep.subr.mxu0 0.0
  %3031 = vmatpush1.msra.mxu0 %v2983
  %3032 = vmatprep.subr.mxu0 0.0
  %3033 = vmatpush1.msra.mxu0 %v2988
  %3034 = vmatprep.subr.mxu0 0.0
  %3035 = vmatpush1.msra.mxu0 %v2993
  %3036 = vmatprep.subr.mxu0 0.0
  %3037 = vmatpush1.msra.mxu0 %v2998
  %3038 = vmatprep.subr.mxu0 0.0
  %3039 = vmatpush1.msra.mxu0 0.0
  %3040 = vmatprep.subr.mxu0 0.0
  %3041 = vmatpush1.msra.mxu0 0.0
  %3042 = vmatprep.subr.mxu0 0.0
  %3043 = vmatpush1.msra.mxu0 0.0
  %3044 = vmatprep.subr.mxu0 0.0
  %3045 = vmatpush1.msra.mxu0 0.0
  %3046 = vmatprep.subr.mxu0 0.0
  %3047 = vmatpush1.msra.mxu0 0.0
  %3048 = vmatprep.subr.mxu0 0.0
  %3049 = vmatpush1.msra.mxu0 0.0
  %3050 = vmatprep.subr.mxu0 0.0
  %3051 = vmatpush1.msra.mxu0 0.0
  %3052 = vmatprep.subr.mxu0 0.0
  %3053 = vmatpush1.msra.mxu0 0.0
  %3054 = vmatprep.subr.mxu0 0.0
  %3055 = vmatpush1.msra.mxu0 0.0
  %3056 = vmatprep.subr.mxu0 0.0
  %3057 = vmatpush1.msra.mxu0 0.0
  %3058 = vmatprep.subr.mxu0 0.0
  %3059 = vmatpush1.msra.mxu0 0.0
  %3060 = vmatprep.subr.mxu0 0.0
  %3061 = vmatpush1.msra.mxu0 0.0
  %3062 = vmatprep.subr.mxu0 0.0
  %3063 = vmatpush1.msra.mxu0 0.0
  %3064 = vmatprep.subr.mxu0 0.0
  %3065 = vmatpush1.msra.mxu0 0.0
  %3066 = vmatprep.subr.mxu0 0.0
  %3067 = vmatpush1.msra.mxu0 0.0
  %3068 = vmatprep.subr.mxu0 0.0
  %3069 = vmatpush1.msra.mxu0 0.0
  %3070 = vmatprep.mubr.f32.mxu0 0.0
  %3071 = vmatmul.mubr.f32.gmra.mrb[0].mxu0 %v3002
  %v3072 = vpop.f32.mrb[0].mxu0
  %v3073 = vadd.f32 0.0, %v3072
  %v3074 = vpop.f32.mrb[0].mxu0
  %3075 = vmatprep.mubr.f32.mxu0 0.0
  %3076 = vmatmul.mubr.f32.gmra.mrb[0].mxu0 %v3003
  %v3077 = vpop.f32.mrb[0].mxu0
  %v3078 = vadd.f32 0.0, %v3077
  %v3079 = vpop.f32.mrb[0].mxu0
  %3080 = vmatprep.mubr.f32.mxu0 0.0
  %3081 = vmatmul.mubr.f32.gmra.mrb[0].mxu0 %v3004
  %v3082 = vpop.f32.mrb[0].mxu0
  %v3083 = vadd.f32 0.0, %v3082
  %v3084 = vpop.f32.mrb[0].mxu0
  %3085 = vmatprep.mubr.f32.mxu0 0.0
  %3086 = vmatmul.mubr.f32.gmra.mrb[0].mxu0 %v3005
  %v3087 = vpop.f32.mrb[0].mxu0
  %v3088 = vadd.f32 0.0, %v3087
  %v3089 = vpop.f32.mrb[0].mxu0
  %3090 = vdwg.mxu0
  %v3091 = vadd.f32 %v2841, %v3073
  %v3092 = vadd.f32 %v2842, %v3078
  %v3093 = vadd.f32 %v2843, %v3083
  %v3094 = vadd.f32 %v2844, %v3088
  %3095 = vst.msk [vmem:[#allocation2] sm:$0xff] %vm812, %v3091
  %3096 = vst.msk [vmem:[#allocation2 + $0x8] sm:$0xff] %vm812, %v3092
  %3097 = vst.msk [vmem:[#allocation2 + $0x10] sm:$0xff] %vm812, %v3093
  %3098 = vst.msk [vmem:[#allocation2 + $0x18] sm:$0xff] %vm812, %v3094
  %s3099 = scalar_lea.vmem %s14, 1184
  %s3100 = scalar_lea.sflag [#allocation3], 11
  %p3102 = scmp.lt.u32.totalorder 32, 8
  %p3103 = pneg %p3102
  // Predicated region
  $region388: #{forward.1} parent=0 // pred_check
    _
  $region389: #{forward.1} parent=0 // pred_check_branch
    %3105 = sbr.rel (%p3102) target = $region391
  $region390: #{forward.1} parent=0 // pred_region
    %s3120 = sand.u32 32, 7
    %p3121 = scmp.eq.s32.totalorder %s3120, 0
    // Predicated region
    $region403: #{forward.1} parent=390 // pred_check
      %p3122 = pneg %p3121
    $region404: #{forward.1} parent=390 // pred_check_branch
      %3124 = sbr.rel (%p3122) target = $region406
    $region405: #{forward.1} parent=390 // pred_region
      loop: start=0, step=1, limit=1
      $region407: #{forward.1} parent=405 // loop_pre_header
        _
      $region408: #{forward.1} parent=405 // loop_header
        %s3126 = sphi 0, %s3130
        %p3127 = scmp.ge.s32.totalorder %s3126, 1
        %s3131 = sphi [#allocation2], [#allocation2]
        %s3132 = sphi %s3099, %s3099
      $region409: #{forward.1} parent=405 // loop_header_branch
        %3129 = sbr.rel (%p3127) target = $region413
      $region410: #{forward.1} parent=405 // loop_body
        %v3133 = vld [vmem:[%s3131] sm:$0xff]
        %3134 = vst [vmem:[%s3132] sm:$0xff] %v3133
        %v3135 = vld [vmem:[%s3131 + $0x8] sm:$0xff]
        %3136 = vst [vmem:[%s3132 + $0x8] sm:$0xff] %v3135
        %v3137 = vld [vmem:[%s3131 + $0x10] sm:$0xff]
        %3138 = vst [vmem:[%s3132 + $0x10] sm:$0xff] %v3137
        %v3139 = vld [vmem:[%s3131 + $0x18] sm:$0xff]
        %3140 = vst [vmem:[%s3132 + $0x18] sm:$0xff] %v3139
      $region411: #{forward.1} parent=405 // loop_footer
        %s3130 = sadd.s32 1, %s3126
      $region412: #{forward.1} parent=405 // loop_footer_branch
        %3125 = sbr.rel target = $region408
      $region413: #{forward.1} parent=405 // loop_exit
        _
    $region406: #{forward.1} parent=390 // pred_fallthru
      _
    %p3141 = pneg %p3121
    // Predicated region
    $region414: #{forward.1} parent=390 // pred_check
      _
    $region415: #{forward.1} parent=390 // pred_check_branch
      %3143 = sbr.rel (%p3121) target = $region417
    $region416: #{forward.1} parent=390 // pred_region
      %s3144 = sand.u32 32, 7
    $region417: #{forward.1} parent=390 // pred_fallthru
      _
  $region391: #{forward.1} parent=0 // pred_fallthru
    _
  // Predicated region
  $region392: #{forward.1} parent=0 // pred_check
    %p3106 = pneg %p3102
  $region393: #{forward.1} parent=0 // pred_check_branch
    %3108 = sbr.rel (%p3106) target = $region395
  $region394: #{forward.1} parent=0 // pred_region
    %s3109 = sshllo.u32 0, 32
    loop: start=0, step=1, limit=1
    $region396: #{forward.1} parent=394 // loop_pre_header
      _
    $region397: #{forward.1} parent=394 // loop_header
      %s3111 = sphi 0, %s3115
      %p3112 = scmp.ge.s32.totalorder %s3111, 1
      %s3116 = sphi [#allocation2], [#allocation2]
      %s3117 = sphi %s3099, %s3099
    $region398: #{forward.1} parent=394 // loop_header_branch
      %3114 = sbr.rel (%p3112) target = $region402
    $region399: #{forward.1} parent=394 // loop_body
      %v3118 = vld [vmem:[%s3116] sm:%s3109]
      %3119 = vst [vmem:[%s3117] sm:%s3109] %v3118
    $region400: #{forward.1} parent=394 // loop_footer
      %s3115 = sadd.s32 1, %s3111
    $region401: #{forward.1} parent=394 // loop_footer_branch
      %3110 = sbr.rel target = $region397
    $region402: #{forward.1} parent=394 // loop_exit
      _
  $region395: #{forward.1} parent=0 // pred_fallthru
    _
  // Predicated region
  $region418: #{forward.1} parent=0 // pred_check
    _
  $region419: #{forward.1} parent=0 // pred_check_branch
    %3147 = sbr.rel (0) target = $region421
  $region420: #{forward.1} parent=0 // pred_region
    %3148 = vsyncadd %s3100, 512
  $region421: #{forward.1} parent=0 // pred_fallthru
    _
  %s3149 = smul.u32 896, 1
  %s3150 = sshll.u32 %s3149, 4
  %3151 = dma.done [#allocation3], %s3150
  %s3152 = smul.u32 32, 1
  %s3153 = sshll.u32 %s3152, 4
  %3154 = dma.done %s290, %s3153
  %s3155 = sshll.u32 %s3152, 4
  %3156 = dma.done %s340, %s3155
  %s3157 = sshll.u32 %s3152, 4
  %3158 = dma.done %s390, %s3157
  %s3159 = sshll.u32 %s3152, 4
  %3160 = dma.done %s440, %s3159
  %s3161 = sshll.u32 %s3152, 4
  %3162 = dma.done %s490, %s3161
  %s3163 = sshll.u32 %s3152, 4
  %3164 = dma.done %s540, %s3163
  %s3165 = sshll.u32 %s3152, 4
  %3166 = dma.done %s590, %s3165
  %s3167 = sshll.u32 %s3152, 4
  %3168 = dma.done %s640, %s3167
  %s3169 = sshll.u32 %s3152, 4
  %3170 = dma.done %s690, %s3169
  %s3171 = sshll.u32 %s3152, 4
  %3172 = dma.done %s740, %s3171
  %s3173 = sshll.u32 %s3152, 4
  %3174 = dma.done %s3100, %s3173
  %3175 = vsyncmov [#allocation3]
  %s3176 = vpop.sfrf %3175
  %p3177 = scmp.eq.s32.totalorder %s3176, 0
  %p3178 = pneg %p3177
  %3180 = shalt.err (%p3178)
  %s3181 = scalar_lea.sflag [#allocation3], 1
  %3182 = vsyncmov %s3181
  %s3183 = vpop.sfrf %3182
  %p3184 = scmp.eq.s32.totalorder %s3183, 0
  %p3185 = pneg %p3184
  %3187 = shalt.err (%p3185)
  %s3188 = scalar_lea.sflag [#allocation3], 2
  %3189 = vsyncmov %s3188
  %s3190 = vpop.sfrf %3189
  %p3191 = scmp.eq.s32.totalorder %s3190, 0
  %p3192 = pneg %p3191
  %3194 = shalt.err (%p3192)
  %s3195 = scalar_lea.sflag [#allocation3], 3
  %3196 = vsyncmov %s3195
  %s3197 = vpop.sfrf %3196
  %p3198 = scmp.eq.s32.totalorder %s3197, 0
  %p3199 = pneg %p3198
  %3201 = shalt.err (%p3199)
  %s3202 = scalar_lea.sflag [#allocation3], 4
  %3203 = vsyncmov %s3202
  %s3204 = vpop.sfrf %3203
  %p3205 = scmp.eq.s32.totalorder %s3204, 0
  %p3206 = pneg %p3205
  %3208 = shalt.err (%p3206)
  %s3209 = scalar_lea.sflag [#allocation3], 5
  %3210 = vsyncmov %s3209
  %s3211 = vpop.sfrf %3210
  %p3212 = scmp.eq.s32.totalorder %s3211, 0
  %p3213 = pneg %p3212
  %3215 = shalt.err (%p3213)
  %s3216 = scalar_lea.sflag [#allocation3], 6
  %3217 = vsyncmov %s3216
  %s3218 = vpop.sfrf %3217
  %p3219 = scmp.eq.s32.totalorder %s3218, 0
  %p3220 = pneg %p3219
  %3222 = shalt.err (%p3220)
  %s3223 = scalar_lea.sflag [#allocation3], 7
  %3224 = vsyncmov %s3223
  %s3225 = vpop.sfrf %3224
  %p3226 = scmp.eq.s32.totalorder %s3225, 0
  %p3227 = pneg %p3226
  %3229 = shalt.err (%p3227)
  %s3230 = scalar_lea.sflag [#allocation3], 8
  %3231 = vsyncmov %s3230
  %s3232 = vpop.sfrf %3231
  %p3233 = scmp.eq.s32.totalorder %s3232, 0
  %p3234 = pneg %p3233
  %3236 = shalt.err (%p3234)
  %s3237 = scalar_lea.sflag [#allocation3], 9
  %3238 = vsyncmov %s3237
  %s3239 = vpop.sfrf %3238
  %p3240 = scmp.eq.s32.totalorder %s3239, 0
  %p3241 = pneg %p3240
  %3243 = shalt.err (%p3241)
  %s3244 = scalar_lea.sflag [#allocation3], 10
  %3245 = vsyncmov %s3244
  %s3246 = vpop.sfrf %3245
  %p3247 = scmp.eq.s32.totalorder %s3246, 0
  %p3248 = pneg %p3247
  %3250 = shalt.err (%p3248)
  %s3251 = scalar_lea.sflag [#allocation3], 11
  %3252 = vsyncmov %s3251
  %s3253 = vpop.sfrf %3252
  %p3254 = scmp.eq.s32.totalorder %s3253, 0
  %p3255 = pneg %p3254
  %3257 = shalt.err (%p3255)

</llo_original>
